<compile_context>
chip_gen: v6e
topology: v6e:2x2x1
jax: 0.10.0
libtpu: 0.0.40
codegen_flags: <defaults>
</compile_context>

<pallas_src>
import math

import jax
import jax.numpy as jnp
from jax.experimental import pallas as pl
from jax.experimental.pallas import tpu as pltpu

# ---- model hyper-parameters (PyTorch module defaults) ----
INPUT_SIZE = 16
HIDDEN = 64
NUM_LAYERS = 2
NUM_HEADS = 2
HEAD_DIM = HIDDEN // NUM_HEADS
FF = HIDDEN * 4
EPS = 1e-5          # nn.LayerNorm default

BATCH = 2
SEQ = 8

PARAM_ORDER = (
    "wp", "bp",
    "wqkv", "bqkv",
    "wo", "bo",
    "w1", "b1", "w2", "b2",
    "ln",                 # (L, 4, H): [norm1.w, norm1.b, norm2.w, norm2.b]
)


def _layer_norm(h, w, b):
    mu = jnp.mean(h, axis=-1, keepdims=True)
    var = jnp.mean((h - mu) ** 2, axis=-1, keepdims=True)
    return (h - mu) * jax.lax.rsqrt(var + EPS) * w + b


def transformer_kernel(x_ref, pe_ref,
                       wp_ref, bp_ref,
                       wqkv_ref, bqkv_ref,
                       wo_ref, bo_ref,
                       w1_ref, b1_ref, w2_ref, b2_ref,
                       ln_ref,
                       o_ref):
    B, T, F = x_ref.shape
    scale = 1.0 / math.sqrt(HEAD_DIM)

    # positional encoding + input projection; fold batch into matmul M dim.
    x = x_ref[...] + pe_ref[...]                       # (B, T, F)
    x2 = x.reshape(B * T, F)                           # layout no-op (T % 8 == 0)
    h = jnp.dot(x2, wp_ref[...],
                preferred_element_type=jnp.float32) + bp_ref[...]   # (B*T, H)

    for l in range(NUM_LAYERS):
        # ---- self attention (post-norm TransformerEncoderLayer) ----
        qkv = jnp.dot(h, wqkv_ref[l],
                      preferred_element_type=jnp.float32) + bqkv_ref[l]  # (B*T, 3H)
        q = qkv[:, 0 * HIDDEN:1 * HIDDEN] * scale      # fold 1/sqrt(hd) into q
        k = qkv[:, 1 * HIDDEN:2 * HIDDEN]
        v = qkv[:, 2 * HIDDEN:3 * HIDDEN]

        wo_l = wo_ref[l]                               # (H, H)
        attn = jnp.zeros_like(h)                       # (B*T, H)
        for hi in range(NUM_HEADS):
            s0 = hi * HEAD_DIM
            # per-head slices, batched over B with single-batch-dim dots
            qh = q[:, s0:s0 + HEAD_DIM].reshape(B, T, HEAD_DIM)
            kh = k[:, s0:s0 + HEAD_DIM].reshape(B, T, HEAD_DIM)
            vh = v[:, s0:s0 + HEAD_DIM].reshape(B, T, HEAD_DIM)

            scores = jnp.einsum('bqd,bkd->bqk', qh, kh,
                                preferred_element_type=jnp.float32)     # (B, T, T)
            m = jnp.max(scores, axis=-1, keepdims=True)
            p = jnp.exp(scores - m)
            denom = jnp.sum(p, axis=-1, keepdims=True)
            p = p * pl.reciprocal(denom, approx=True)

            ctx = jnp.einsum('bqk,bkd->bqd', p, vh,
                             preferred_element_type=jnp.float32)        # (B, T, hd)
            ctx2 = ctx.reshape(B * T, HEAD_DIM)
            # split output projection by head rows -> no lane-axis concat
            attn = attn + jnp.dot(ctx2, wo_l[s0:s0 + HEAD_DIM, :],
                                  preferred_element_type=jnp.float32)
        attn = attn + bo_ref[l]

        lnl = ln_ref[l]                                # (4, H)
        h = _layer_norm(h + attn, lnl[0:1], lnl[1:2])

        # ---- feed forward (relu activation, PyTorch default) ----
        ff = jnp.maximum(
            jnp.dot(h, w1_ref[l], preferred_element_type=jnp.float32) + b1_ref[l],
            0.0)
        ff = jnp.dot(ff, w2_ref[l], preferred_element_type=jnp.float32) + b2_ref[l]

        h = _layer_norm(h + ff, lnl[2:3], lnl[3:4])

    # out[-1]: last time step of every batch row -> lane-dense (B, H) store
    o_ref[...] = h.reshape(B, T, HIDDEN)[:, T - 1, :]


@jax.jit
def transformer_forward(x, pe, params):
    N, T, F = x.shape
    # Whole batch per grid step (trivially fits VMEM at these sizes).
    # For large N, pick b_tile as a divisor of N with b_tile % 8 == 0 and
    # size the block to the per-generation VMEM budget (v7x has half of v6e).
    b_tile = N
    grid = (N // b_tile,)

    in_specs = [
        pl.BlockSpec((b_tile, T, F), lambda n: (n, 0, 0)),   # x: batch tile
        pl.BlockSpec((T, F), lambda n: (0, 0)),              # positional encoding
    ]
    args = [x, pe]
    for name in PARAM_ORDER:
        arr = params[name]
        in_specs.append(pl.BlockSpec(arr.shape, lambda n, _z=(0,) * arr.ndim: _z))
        args.append(arr)

    out = pl.pallas_call(
        transformer_kernel,
        out_shape=jax.ShapeDtypeStruct((N, HIDDEN), jnp.float32),
        grid=grid,
        in_specs=in_specs,
        out_specs=pl.BlockSpec((b_tile, HIDDEN), lambda n: (n, 0)),
        compiler_params=pltpu.CompilerParams(
            dimension_semantics=("parallel",)),
    )(*args)
    return out


# -------------------------- parameter / PE construction --------------------------
def make_positional_encoding(T, d):
    pos = jnp.arange(T, dtype=jnp.float32)[:, None]
    div = jnp.exp(jnp.arange(0, d, 2, dtype=jnp.float32) * (-math.log(10000.0) / d))
    ang = pos * div
    pe = jnp.zeros((T, d), dtype=jnp.float32)
    pe = pe.at[:, 0::2].set(jnp.sin(ang))
    pe = pe.at[:, 1::2].set(jnp.cos(ang))
    return pe


def make_params(key):
    ks = jax.random.split(key, 12)

    def rnd(k, shape, scale=0.1):
        return (scale * jax.random.normal(k, shape)).astype(jnp.float32)

    L, H, F = NUM_LAYERS, HIDDEN, INPUT_SIZE
    ln_row = jnp.stack([jnp.ones((H,)), jnp.zeros((H,)),
                        jnp.ones((H,)), jnp.zeros((H,))]).astype(jnp.float32)
    params = {
        "wp": rnd(ks[0], (F, H)),
        "bp": rnd(ks[1], (1, H)),
        "wqkv": rnd(ks[2], (L, H, 3 * H)),
        "bqkv": rnd(ks[3], (L, 1, 3 * H)),
        "wo": rnd(ks[4], (L, H, H)),
        "bo": rnd(ks[5], (L, 1, H)),
        "w1": rnd(ks[6], (L, H, FF)),
        "b1": rnd(ks[7], (L, 1, FF)),
        "w2": rnd(ks[8], (L, FF, H)),
        "b2": rnd(ks[9], (L, 1, H)),
        "ln": jnp.tile(ln_row[None], (L, 1, 1)),
    }
    return params


# -------------------------- pure-JAX reference (for checking) --------------------------
def ref_forward_single(xb, pe, P):
    h = (xb + pe) @ P["wp"] + P["bp"][0]
    scale = 1.0 / math.sqrt(HEAD_DIM)
    for l in range(NUM_LAYERS):
        qkv = h @ P["wqkv"][l] + P["bqkv"][l, 0]
        q = qkv[:, 0 * HIDDEN:1 * HIDDEN]
        k = qkv[:, 1 * HIDDEN:2 * HIDDEN]
        v = qkv[:, 2 * HIDDEN:3 * HIDDEN]
        heads = []
        for hi in range(NUM_HEADS):
            s0 = hi * HEAD_DIM
            qh, kh, vh = (q[:, s0:s0 + HEAD_DIM], k[:, s0:s0 + HEAD_DIM],
                          v[:, s0:s0 + HEAD_DIM])
            p = jax.nn.softmax(qh @ kh.T * scale, axis=-1)
            heads.append(p @ vh)
        attn = jnp.concatenate(heads, -1) @ P["wo"][l] + P["bo"][l, 0]
        h = _layer_norm(h + attn, P["ln"][l, 0], P["ln"][l, 1])
        ff = jnp.maximum(h @ P["w1"][l] + P["b1"][l, 0], 0.0)
        ff = ff @ P["w2"][l] + P["b2"][l, 0]
        h = _layer_norm(h + ff, P["ln"][l, 2], P["ln"][l, 3])
    return h[-1]


if __name__ == "__main__":
    key = jax.random.PRNGKey(0)
    kx, kp = jax.random.split(key)

    x = jax.random.normal(kx, (BATCH, SEQ, INPUT_SIZE), dtype=jnp.float32)
    pe = make_positional_encoding(SEQ, INPUT_SIZE)
    params = make_params(kp)

    out = transformer_forward(x, pe, params)
    out = jax.block_until_ready(out)
    assert out.shape == (BATCH, HIDDEN)

    ref = jax.vmap(lambda xb: ref_forward_single(xb, pe, params))(x)
    assert jnp.all(jnp.isfinite(out))
    # default (bf16-pass) matmul precision + approx reciprocal -> relaxed tol
    assert jnp.allclose(out, ref, atol=2e-2, rtol=2e-2), (
        f"max abs diff {jnp.max(jnp.abs(out - ref))}")

    print("KERNEL_OK")
</pallas_src>

<mosaic_0001>
module attributes {stable_mosaic.version = 11 : i64} {
  func.func @transformer_kernel(%arg0: i32, %arg1: memref<2x8x16xf32, #tpu.memory_space<vmem>>, %arg2: memref<8x16xf32, #tpu.memory_space<vmem>>, %arg3: memref<16x64xf32, #tpu.memory_space<vmem>>, %arg4: memref<1x64xf32, #tpu.memory_space<vmem>>, %arg5: memref<2x64x192xf32, #tpu.memory_space<vmem>>, %arg6: memref<2x1x192xf32, #tpu.memory_space<vmem>>, %arg7: memref<2x64x64xf32, #tpu.memory_space<vmem>>, %arg8: memref<2x1x64xf32, #tpu.memory_space<vmem>>, %arg9: memref<2x64x256xf32, #tpu.memory_space<vmem>>, %arg10: memref<2x1x256xf32, #tpu.memory_space<vmem>>, %arg11: memref<2x256x64xf32, #tpu.memory_space<vmem>>, %arg12: memref<2x1x64xf32, #tpu.memory_space<vmem>>, %arg13: memref<2x4x64xf32, #tpu.memory_space<vmem>>, %arg14: memref<2x64xf32, #tpu.memory_space<vmem>>) attributes {dimension_semantics = [#tpu.dimension_semantics<parallel>], iteration_bounds = array<i64: 1>, scalar_prefetch = 0 : i64, scratch_operands = 0 : i64, tpu.core_type = #tpu.core_type<tc>, window_params = [{transform_indices = @transform_0, window_bounds = array<i64: 2, 8, 16>}, {pipeline_mode = #tpu.pipeline_mode<synchronous>, transform_indices = @transform_1, window_bounds = array<i64: 8, 16>}, {pipeline_mode = #tpu.pipeline_mode<synchronous>, transform_indices = @transform_2, window_bounds = array<i64: 16, 64>}, {pipeline_mode = #tpu.pipeline_mode<synchronous>, transform_indices = @transform_3, window_bounds = array<i64: 1, 64>}, {pipeline_mode = #tpu.pipeline_mode<synchronous>, transform_indices = @transform_4, window_bounds = array<i64: 2, 64, 192>}, {pipeline_mode = #tpu.pipeline_mode<synchronous>, transform_indices = @transform_5, window_bounds = array<i64: 2, 1, 192>}, {pipeline_mode = #tpu.pipeline_mode<synchronous>, transform_indices = @transform_6, window_bounds = array<i64: 2, 64, 64>}, {pipeline_mode = #tpu.pipeline_mode<synchronous>, transform_indices = @transform_7, window_bounds = array<i64: 2, 1, 64>}, {pipeline_mode = #tpu.pipeline_mode<synchronous>, transform_indices = @transform_8, window_bounds = array<i64: 2, 64, 256>}, {pipeline_mode = #tpu.pipeline_mode<synchronous>, transform_indices = @transform_9, window_bounds = array<i64: 2, 1, 256>}, {pipeline_mode = #tpu.pipeline_mode<synchronous>, transform_indices = @transform_10, window_bounds = array<i64: 2, 256, 64>}, {pipeline_mode = #tpu.pipeline_mode<synchronous>, transform_indices = @transform_11, window_bounds = array<i64: 2, 1, 64>}, {pipeline_mode = #tpu.pipeline_mode<synchronous>, transform_indices = @transform_12, window_bounds = array<i64: 2, 4, 64>}, {transform_indices = @transform_13, window_bounds = array<i64: 2, 64>}]} {
    %c0 = arith.constant 0 : index
    %c0_0 = arith.constant 0 : index
    %c0_1 = arith.constant 0 : index
    %0 = vector.load %arg1[%c0, %c0_0, %c0_1] : memref<2x8x16xf32, #tpu.memory_space<vmem>>, vector<2x8x16xf32>
    %c0_2 = arith.constant 0 : index
    %c0_3 = arith.constant 0 : index
    %1 = vector.load %arg2[%c0_2, %c0_3] : memref<8x16xf32, #tpu.memory_space<vmem>>, vector<8x16xf32>
    %2 = vector.shape_cast %1 : vector<8x16xf32> to vector<1x8x16xf32>
    %3 = vector.broadcast %2 : vector<1x8x16xf32> to vector<2x8x16xf32>
    %4 = arith.addf %0, %3 : vector<2x8x16xf32>
    %5 = vector.shape_cast %4 : vector<2x8x16xf32> to vector<16x16xf32>
    %c0_4 = arith.constant 0 : index
    %c0_5 = arith.constant 0 : index
    %6 = vector.load %arg3[%c0_4, %c0_5] : memref<16x64xf32, #tpu.memory_space<vmem>>, vector<16x64xf32>
    %cst = arith.constant dense<0.000000e+00> : vector<16x64xf32>
    %7 = tpu.matmul %5, %6, %cst {dimension_numbers = #tpu.dot_dimension_numbers<[1], [0], [0], [1], [0, 0, 1, 1], [], []>} : vector<16x16xf32>, vector<16x64xf32>, vector<16x64xf32> -> vector<16x64xf32>
    %c0_6 = arith.constant 0 : index
    %c0_7 = arith.constant 0 : index
    %8 = vector.load %arg4[%c0_6, %c0_7] : memref<1x64xf32, #tpu.memory_space<vmem>>, vector<1x64xf32>
    %9 = vector.broadcast %8 : vector<1x64xf32> to vector<16x64xf32>
    %10 = arith.addf %7, %9 : vector<16x64xf32>
    %c0_8 = arith.constant 0 : index
    %c0_9 = arith.constant 0 : index
    %c0_10 = arith.constant 0 : index
    %11 = vector.load %arg5[%c0_8, %c0_9, %c0_10] : memref<2x64x192xf32, #tpu.memory_space<vmem>>, vector<1x64x192xf32>
    %12 = vector.shape_cast %11 : vector<1x64x192xf32> to vector<64x192xf32>
    %cst_11 = arith.constant dense<0.000000e+00> : vector<16x192xf32>
    %13 = tpu.matmul %10, %12, %cst_11 {dimension_numbers = #tpu.dot_dimension_numbers<[1], [0], [0], [1], [0, 0, 1, 1], [], []>} : vector<16x64xf32>, vector<64x192xf32>, vector<16x192xf32> -> vector<16x192xf32>
    %c0_12 = arith.constant 0 : index
    %c0_13 = arith.constant 0 : index
    %c0_14 = arith.constant 0 : index
    %14 = vector.load %arg6[%c0_12, %c0_13, %c0_14] : memref<2x1x192xf32, #tpu.memory_space<vmem>>, vector<1x1x192xf32>
    %15 = vector.shape_cast %14 : vector<1x1x192xf32> to vector<1x192xf32>
    %16 = vector.broadcast %15 : vector<1x192xf32> to vector<16x192xf32>
    %17 = arith.addf %13, %16 : vector<16x192xf32>
    %18 = vector.extract_strided_slice %17 {offsets = [0, 0], sizes = [16, 64], strides = [1, 1]} : vector<16x192xf32> to vector<16x64xf32>
    %cst_15 = arith.constant 0.176776692 : f32
    %19 = vector.broadcast %cst_15 : f32 to vector<16x64xf32>
    %20 = arith.mulf %18, %19 : vector<16x64xf32>
    %21 = vector.extract_strided_slice %17 {offsets = [0, 64], sizes = [16, 64], strides = [1, 1]} : vector<16x192xf32> to vector<16x64xf32>
    %22 = vector.extract_strided_slice %17 {offsets = [0, 128], sizes = [16, 64], strides = [1, 1]} : vector<16x192xf32> to vector<16x64xf32>
    %c0_16 = arith.constant 0 : index
    %c0_17 = arith.constant 0 : index
    %c0_18 = arith.constant 0 : index
    %23 = vector.load %arg7[%c0_16, %c0_17, %c0_18] : memref<2x64x64xf32, #tpu.memory_space<vmem>>, vector<1x64x64xf32>
    %24 = vector.shape_cast %23 : vector<1x64x64xf32> to vector<64x64xf32>
    %cst_19 = arith.constant 0.000000e+00 : f32
    %25 = vector.broadcast %cst_19 : f32 to vector<16x64xf32>
    %26 = vector.extract_strided_slice %20 {offsets = [0, 0], sizes = [16, 32], strides = [1, 1]} : vector<16x64xf32> to vector<16x32xf32>
    %27 = vector.shape_cast %26 : vector<16x32xf32> to vector<2x8x32xf32>
    %28 = vector.extract_strided_slice %21 {offsets = [0, 0], sizes = [16, 32], strides = [1, 1]} : vector<16x64xf32> to vector<16x32xf32>
    %29 = vector.shape_cast %28 : vector<16x32xf32> to vector<2x8x32xf32>
    %30 = vector.extract_strided_slice %22 {offsets = [0, 0], sizes = [16, 32], strides = [1, 1]} : vector<16x64xf32> to vector<16x32xf32>
    %31 = vector.shape_cast %30 : vector<16x32xf32> to vector<2x8x32xf32>
    "tpu.trace_start"() <{level = 10 : i32, message = "bqd,bkd->bqk"}> : () -> ()
    %cst_20 = arith.constant dense<0.000000e+00> : vector<2x8x8xf32>
    %32 = tpu.matmul %27, %29, %cst_20 {dimension_numbers = #tpu.dot_dimension_numbers<[2], [2], [1], [1], [0, 0, 0, 1, 1, 1], [0], [0]>} : vector<2x8x32xf32>, vector<2x8x32xf32>, vector<2x8x8xf32> -> vector<2x8x8xf32>
    "tpu.trace_stop"() : () -> ()
    %cst_21 = arith.constant dense<0xFF800000> : vector<2x8xf32>
    %33 = vector.multi_reduction <maximumf>, %32, %cst_21 [2] : vector<2x8x8xf32> to vector<2x8xf32>
    %34 = vector.shape_cast %33 : vector<2x8xf32> to vector<2x8x1xf32>
    %35 = vector.broadcast %34 : vector<2x8x1xf32> to vector<2x8x8xf32>
    %36 = arith.subf %32, %35 : vector<2x8x8xf32>
    %37 = math.exp %36 : vector<2x8x8xf32>
    %cst_22 = arith.constant dense<0.000000e+00> : vector<2x8xf32>
    %38 = vector.multi_reduction <add>, %37, %cst_22 [2] : vector<2x8x8xf32> to vector<2x8xf32>
    %39 = vector.shape_cast %38 : vector<2x8xf32> to vector<2x8x1xf32>
    %40 = tpu.reciprocal %39 {approx = true} : vector<2x8x1xf32> -> vector<2x8x1xf32>
    %41 = vector.broadcast %40 : vector<2x8x1xf32> to vector<2x8x8xf32>
    %42 = arith.mulf %37, %41 : vector<2x8x8xf32>
    "tpu.trace_start"() <{level = 10 : i32, message = "bqk,bkd->bqd"}> : () -> ()
    %cst_23 = arith.constant dense<0.000000e+00> : vector<2x8x32xf32>
    %43 = tpu.matmul %42, %31, %cst_23 {dimension_numbers = #tpu.dot_dimension_numbers<[2], [1], [1], [2], [0, 0, 0, 1, 1, 2], [0], [0]>} : vector<2x8x8xf32>, vector<2x8x32xf32>, vector<2x8x32xf32> -> vector<2x8x32xf32>
    "tpu.trace_stop"() : () -> ()
    %44 = vector.shape_cast %43 : vector<2x8x32xf32> to vector<16x32xf32>
    %45 = vector.extract_strided_slice %24 {offsets = [0, 0], sizes = [32, 64], strides = [1, 1]} : vector<64x64xf32> to vector<32x64xf32>
    %cst_24 = arith.constant dense<0.000000e+00> : vector<16x64xf32>
    %46 = tpu.matmul %44, %45, %cst_24 {dimension_numbers = #tpu.dot_dimension_numbers<[1], [0], [0], [1], [0, 0, 1, 1], [], []>} : vector<16x32xf32>, vector<32x64xf32>, vector<16x64xf32> -> vector<16x64xf32>
    %47 = arith.addf %25, %46 : vector<16x64xf32>
    %48 = vector.extract_strided_slice %20 {offsets = [0, 32], sizes = [16, 32], strides = [1, 1]} : vector<16x64xf32> to vector<16x32xf32>
    %49 = vector.shape_cast %48 : vector<16x32xf32> to vector<2x8x32xf32>
    %50 = vector.extract_strided_slice %21 {offsets = [0, 32], sizes = [16, 32], strides = [1, 1]} : vector<16x64xf32> to vector<16x32xf32>
    %51 = vector.shape_cast %50 : vector<16x32xf32> to vector<2x8x32xf32>
    %52 = vector.extract_strided_slice %22 {offsets = [0, 32], sizes = [16, 32], strides = [1, 1]} : vector<16x64xf32> to vector<16x32xf32>
    %53 = vector.shape_cast %52 : vector<16x32xf32> to vector<2x8x32xf32>
    "tpu.trace_start"() <{level = 10 : i32, message = "bqd,bkd->bqk"}> : () -> ()
    %cst_25 = arith.constant dense<0.000000e+00> : vector<2x8x8xf32>
    %54 = tpu.matmul %49, %51, %cst_25 {dimension_numbers = #tpu.dot_dimension_numbers<[2], [2], [1], [1], [0, 0, 0, 1, 1, 1], [0], [0]>} : vector<2x8x32xf32>, vector<2x8x32xf32>, vector<2x8x8xf32> -> vector<2x8x8xf32>
    "tpu.trace_stop"() : () -> ()
    %cst_26 = arith.constant dense<0xFF800000> : vector<2x8xf32>
    %55 = vector.multi_reduction <maximumf>, %54, %cst_26 [2] : vector<2x8x8xf32> to vector<2x8xf32>
    %56 = vector.shape_cast %55 : vector<2x8xf32> to vector<2x8x1xf32>
    %57 = vector.broadcast %56 : vector<2x8x1xf32> to vector<2x8x8xf32>
    %58 = arith.subf %54, %57 : vector<2x8x8xf32>
    %59 = math.exp %58 : vector<2x8x8xf32>
    %cst_27 = arith.constant dense<0.000000e+00> : vector<2x8xf32>
    %60 = vector.multi_reduction <add>, %59, %cst_27 [2] : vector<2x8x8xf32> to vector<2x8xf32>
    %61 = vector.shape_cast %60 : vector<2x8xf32> to vector<2x8x1xf32>
    %62 = tpu.reciprocal %61 {approx = true} : vector<2x8x1xf32> -> vector<2x8x1xf32>
    %63 = vector.broadcast %62 : vector<2x8x1xf32> to vector<2x8x8xf32>
    %64 = arith.mulf %59, %63 : vector<2x8x8xf32>
    "tpu.trace_start"() <{level = 10 : i32, message = "bqk,bkd->bqd"}> : () -> ()
    %cst_28 = arith.constant dense<0.000000e+00> : vector<2x8x32xf32>
    %65 = tpu.matmul %64, %53, %cst_28 {dimension_numbers = #tpu.dot_dimension_numbers<[2], [1], [1], [2], [0, 0, 0, 1, 1, 2], [0], [0]>} : vector<2x8x8xf32>, vector<2x8x32xf32>, vector<2x8x32xf32> -> vector<2x8x32xf32>
    "tpu.trace_stop"() : () -> ()
    %66 = vector.shape_cast %65 : vector<2x8x32xf32> to vector<16x32xf32>
    %67 = vector.extract_strided_slice %24 {offsets = [32, 0], sizes = [32, 64], strides = [1, 1]} : vector<64x64xf32> to vector<32x64xf32>
    %cst_29 = arith.constant dense<0.000000e+00> : vector<16x64xf32>
    %68 = tpu.matmul %66, %67, %cst_29 {dimension_numbers = #tpu.dot_dimension_numbers<[1], [0], [0], [1], [0, 0, 1, 1], [], []>} : vector<16x32xf32>, vector<32x64xf32>, vector<16x64xf32> -> vector<16x64xf32>
    %69 = arith.addf %47, %68 : vector<16x64xf32>
    %c0_30 = arith.constant 0 : index
    %c0_31 = arith.constant 0 : index
    %c0_32 = arith.constant 0 : index
    %70 = vector.load %arg8[%c0_30, %c0_31, %c0_32] : memref<2x1x64xf32, #tpu.memory_space<vmem>>, vector<1x1x64xf32>
    %71 = vector.shape_cast %70 : vector<1x1x64xf32> to vector<1x64xf32>
    %72 = vector.broadcast %71 : vector<1x64xf32> to vector<16x64xf32>
    %73 = arith.addf %69, %72 : vector<16x64xf32>
    %c0_33 = arith.constant 0 : index
    %c0_34 = arith.constant 0 : index
    %c0_35 = arith.constant 0 : index
    %74 = vector.load %arg13[%c0_33, %c0_34, %c0_35] : memref<2x4x64xf32, #tpu.memory_space<vmem>>, vector<1x4x64xf32>
    %75 = vector.shape_cast %74 : vector<1x4x64xf32> to vector<4x64xf32>
    %76 = arith.addf %10, %73 : vector<16x64xf32>
    %77 = vector.extract_strided_slice %75 {offsets = [0, 0], sizes = [1, 64], strides = [1, 1]} : vector<4x64xf32> to vector<1x64xf32>
    %78 = vector.extract_strided_slice %75 {offsets = [1, 0], sizes = [1, 64], strides = [1, 1]} : vector<4x64xf32> to vector<1x64xf32>
    %cst_36 = arith.constant dense<0.000000e+00> : vector<16xf32>
    %79 = vector.multi_reduction <add>, %76, %cst_36 [1] : vector<16x64xf32> to vector<16xf32>
    %80 = vector.shape_cast %79 : vector<16xf32> to vector<16x1xf32>
    %cst_37 = arith.constant 6.400000e+01 : f32
    %81 = vector.broadcast %cst_37 : f32 to vector<16x1xf32>
    %82 = arith.divf %80, %81 : vector<16x1xf32>
    %83 = vector.broadcast %82 : vector<16x1xf32> to vector<16x64xf32>
    %84 = arith.subf %76, %83 : vector<16x64xf32>
    %85 = arith.mulf %84, %84 : vector<16x64xf32>
    %cst_38 = arith.constant dense<0.000000e+00> : vector<16xf32>
    %86 = vector.multi_reduction <add>, %85, %cst_38 [1] : vector<16x64xf32> to vector<16xf32>
    %87 = vector.shape_cast %86 : vector<16xf32> to vector<16x1xf32>
    %cst_39 = arith.constant 6.400000e+01 : f32
    %88 = vector.broadcast %cst_39 : f32 to vector<16x1xf32>
    %89 = arith.divf %87, %88 : vector<16x1xf32>
    %90 = vector.broadcast %82 : vector<16x1xf32> to vector<16x64xf32>
    %91 = arith.subf %76, %90 : vector<16x64xf32>
    %cst_40 = arith.constant 9.99999974E-6 : f32
    %92 = vector.broadcast %cst_40 : f32 to vector<16x1xf32>
    %93 = arith.addf %89, %92 : vector<16x1xf32>
    %94 = math.rsqrt %93 : vector<16x1xf32>
    %95 = vector.broadcast %94 : vector<16x1xf32> to vector<16x64xf32>
    %96 = arith.mulf %91, %95 : vector<16x64xf32>
    %97 = vector.broadcast %77 : vector<1x64xf32> to vector<16x64xf32>
    %98 = arith.mulf %96, %97 : vector<16x64xf32>
    %99 = vector.broadcast %78 : vector<1x64xf32> to vector<16x64xf32>
    %100 = arith.addf %98, %99 : vector<16x64xf32>
    %c0_41 = arith.constant 0 : index
    %c0_42 = arith.constant 0 : index
    %c0_43 = arith.constant 0 : index
    %101 = vector.load %arg9[%c0_41, %c0_42, %c0_43] : memref<2x64x256xf32, #tpu.memory_space<vmem>>, vector<1x64x256xf32>
    %102 = vector.shape_cast %101 : vector<1x64x256xf32> to vector<64x256xf32>
    %cst_44 = arith.constant dense<0.000000e+00> : vector<16x256xf32>
    %103 = tpu.matmul %100, %102, %cst_44 {dimension_numbers = #tpu.dot_dimension_numbers<[1], [0], [0], [1], [0, 0, 1, 1], [], []>} : vector<16x64xf32>, vector<64x256xf32>, vector<16x256xf32> -> vector<16x256xf32>
    %c0_45 = arith.constant 0 : index
    %c0_46 = arith.constant 0 : index
    %c0_47 = arith.constant 0 : index
    %104 = vector.load %arg10[%c0_45, %c0_46, %c0_47] : memref<2x1x256xf32, #tpu.memory_space<vmem>>, vector<1x1x256xf32>
    %105 = vector.shape_cast %104 : vector<1x1x256xf32> to vector<1x256xf32>
    %106 = vector.broadcast %105 : vector<1x256xf32> to vector<16x256xf32>
    %107 = arith.addf %103, %106 : vector<16x256xf32>
    %cst_48 = arith.constant 0.000000e+00 : f32
    %108 = vector.broadcast %cst_48 : f32 to vector<16x256xf32>
    %109 = arith.maximumf %107, %108 : vector<16x256xf32>
    %c0_49 = arith.constant 0 : index
    %c0_50 = arith.constant 0 : index
    %c0_51 = arith.constant 0 : index
    %110 = vector.load %arg11[%c0_49, %c0_50, %c0_51] : memref<2x256x64xf32, #tpu.memory_space<vmem>>, vector<1x256x64xf32>
    %111 = vector.shape_cast %110 : vector<1x256x64xf32> to vector<256x64xf32>
    %cst_52 = arith.constant dense<0.000000e+00> : vector<16x64xf32>
    %112 = tpu.matmul %109, %111, %cst_52 {dimension_numbers = #tpu.dot_dimension_numbers<[1], [0], [0], [1], [0, 0, 1, 1], [], []>} : vector<16x256xf32>, vector<256x64xf32>, vector<16x64xf32> -> vector<16x64xf32>
    %c0_53 = arith.constant 0 : index
    %c0_54 = arith.constant 0 : index
    %c0_55 = arith.constant 0 : index
    %113 = vector.load %arg12[%c0_53, %c0_54, %c0_55] : memref<2x1x64xf32, #tpu.memory_space<vmem>>, vector<1x1x64xf32>
    %114 = vector.shape_cast %113 : vector<1x1x64xf32> to vector<1x64xf32>
    %115 = vector.broadcast %114 : vector<1x64xf32> to vector<16x64xf32>
    %116 = arith.addf %112, %115 : vector<16x64xf32>
    %117 = arith.addf %100, %116 : vector<16x64xf32>
    %118 = vector.extract_strided_slice %75 {offsets = [2, 0], sizes = [1, 64], strides = [1, 1]} : vector<4x64xf32> to vector<1x64xf32>
    %119 = vector.extract_strided_slice %75 {offsets = [3, 0], sizes = [1, 64], strides = [1, 1]} : vector<4x64xf32> to vector<1x64xf32>
    %cst_56 = arith.constant dense<0.000000e+00> : vector<16xf32>
    %120 = vector.multi_reduction <add>, %117, %cst_56 [1] : vector<16x64xf32> to vector<16xf32>
    %121 = vector.shape_cast %120 : vector<16xf32> to vector<16x1xf32>
    %cst_57 = arith.constant 6.400000e+01 : f32
    %122 = vector.broadcast %cst_57 : f32 to vector<16x1xf32>
    %123 = arith.divf %121, %122 : vector<16x1xf32>
    %124 = vector.broadcast %123 : vector<16x1xf32> to vector<16x64xf32>
    %125 = arith.subf %117, %124 : vector<16x64xf32>
    %126 = arith.mulf %125, %125 : vector<16x64xf32>
    %cst_58 = arith.constant dense<0.000000e+00> : vector<16xf32>
    %127 = vector.multi_reduction <add>, %126, %cst_58 [1] : vector<16x64xf32> to vector<16xf32>
    %128 = vector.shape_cast %127 : vector<16xf32> to vector<16x1xf32>
    %cst_59 = arith.constant 6.400000e+01 : f32
    %129 = vector.broadcast %cst_59 : f32 to vector<16x1xf32>
    %130 = arith.divf %128, %129 : vector<16x1xf32>
    %131 = vector.broadcast %123 : vector<16x1xf32> to vector<16x64xf32>
    %132 = arith.subf %117, %131 : vector<16x64xf32>
    %cst_60 = arith.constant 9.99999974E-6 : f32
    %133 = vector.broadcast %cst_60 : f32 to vector<16x1xf32>
    %134 = arith.addf %130, %133 : vector<16x1xf32>
    %135 = math.rsqrt %134 : vector<16x1xf32>
    %136 = vector.broadcast %135 : vector<16x1xf32> to vector<16x64xf32>
    %137 = arith.mulf %132, %136 : vector<16x64xf32>
    %138 = vector.broadcast %118 : vector<1x64xf32> to vector<16x64xf32>
    %139 = arith.mulf %137, %138 : vector<16x64xf32>
    %140 = vector.broadcast %119 : vector<1x64xf32> to vector<16x64xf32>
    %141 = arith.addf %139, %140 : vector<16x64xf32>
    %c1 = arith.constant 1 : index
    %c0_61 = arith.constant 0 : index
    %c0_62 = arith.constant 0 : index
    %142 = vector.load %arg5[%c1, %c0_61, %c0_62] : memref<2x64x192xf32, #tpu.memory_space<vmem>>, vector<1x64x192xf32>
    %143 = vector.shape_cast %142 : vector<1x64x192xf32> to vector<64x192xf32>
    %cst_63 = arith.constant dense<0.000000e+00> : vector<16x192xf32>
    %144 = tpu.matmul %141, %143, %cst_63 {dimension_numbers = #tpu.dot_dimension_numbers<[1], [0], [0], [1], [0, 0, 1, 1], [], []>} : vector<16x64xf32>, vector<64x192xf32>, vector<16x192xf32> -> vector<16x192xf32>
    %c1_64 = arith.constant 1 : index
    %c0_65 = arith.constant 0 : index
    %c0_66 = arith.constant 0 : index
    %145 = vector.load %arg6[%c1_64, %c0_65, %c0_66] : memref<2x1x192xf32, #tpu.memory_space<vmem>>, vector<1x1x192xf32>
    %146 = vector.shape_cast %145 : vector<1x1x192xf32> to vector<1x192xf32>
    %147 = vector.broadcast %146 : vector<1x192xf32> to vector<16x192xf32>
    %148 = arith.addf %144, %147 : vector<16x192xf32>
    %149 = vector.extract_strided_slice %148 {offsets = [0, 0], sizes = [16, 64], strides = [1, 1]} : vector<16x192xf32> to vector<16x64xf32>
    %cst_67 = arith.constant 0.176776692 : f32
    %150 = vector.broadcast %cst_67 : f32 to vector<16x64xf32>
    %151 = arith.mulf %149, %150 : vector<16x64xf32>
    %152 = vector.extract_strided_slice %148 {offsets = [0, 64], sizes = [16, 64], strides = [1, 1]} : vector<16x192xf32> to vector<16x64xf32>
    %153 = vector.extract_strided_slice %148 {offsets = [0, 128], sizes = [16, 64], strides = [1, 1]} : vector<16x192xf32> to vector<16x64xf32>
    %c1_68 = arith.constant 1 : index
    %c0_69 = arith.constant 0 : index
    %c0_70 = arith.constant 0 : index
    %154 = vector.load %arg7[%c1_68, %c0_69, %c0_70] : memref<2x64x64xf32, #tpu.memory_space<vmem>>, vector<1x64x64xf32>
    %155 = vector.shape_cast %154 : vector<1x64x64xf32> to vector<64x64xf32>
    %cst_71 = arith.constant 0.000000e+00 : f32
    %156 = vector.broadcast %cst_71 : f32 to vector<16x64xf32>
    %157 = vector.extract_strided_slice %151 {offsets = [0, 0], sizes = [16, 32], strides = [1, 1]} : vector<16x64xf32> to vector<16x32xf32>
    %158 = vector.shape_cast %157 : vector<16x32xf32> to vector<2x8x32xf32>
    %159 = vector.extract_strided_slice %152 {offsets = [0, 0], sizes = [16, 32], strides = [1, 1]} : vector<16x64xf32> to vector<16x32xf32>
    %160 = vector.shape_cast %159 : vector<16x32xf32> to vector<2x8x32xf32>
    %161 = vector.extract_strided_slice %153 {offsets = [0, 0], sizes = [16, 32], strides = [1, 1]} : vector<16x64xf32> to vector<16x32xf32>
    %162 = vector.shape_cast %161 : vector<16x32xf32> to vector<2x8x32xf32>
    "tpu.trace_start"() <{level = 10 : i32, message = "bqd,bkd->bqk"}> : () -> ()
    %cst_72 = arith.constant dense<0.000000e+00> : vector<2x8x8xf32>
    %163 = tpu.matmul %158, %160, %cst_72 {dimension_numbers = #tpu.dot_dimension_numbers<[2], [2], [1], [1], [0, 0, 0, 1, 1, 1], [0], [0]>} : vector<2x8x32xf32>, vector<2x8x32xf32>, vector<2x8x8xf32> -> vector<2x8x8xf32>
    "tpu.trace_stop"() : () -> ()
    %cst_73 = arith.constant dense<0xFF800000> : vector<2x8xf32>
    %164 = vector.multi_reduction <maximumf>, %163, %cst_73 [2] : vector<2x8x8xf32> to vector<2x8xf32>
    %165 = vector.shape_cast %164 : vector<2x8xf32> to vector<2x8x1xf32>
    %166 = vector.broadcast %165 : vector<2x8x1xf32> to vector<2x8x8xf32>
    %167 = arith.subf %163, %166 : vector<2x8x8xf32>
    %168 = math.exp %167 : vector<2x8x8xf32>
    %cst_74 = arith.constant dense<0.000000e+00> : vector<2x8xf32>
    %169 = vector.multi_reduction <add>, %168, %cst_74 [2] : vector<2x8x8xf32> to vector<2x8xf32>
    %170 = vector.shape_cast %169 : vector<2x8xf32> to vector<2x8x1xf32>
    %171 = tpu.reciprocal %170 {approx = true} : vector<2x8x1xf32> -> vector<2x8x1xf32>
    %172 = vector.broadcast %171 : vector<2x8x1xf32> to vector<2x8x8xf32>
    %173 = arith.mulf %168, %172 : vector<2x8x8xf32>
    "tpu.trace_start"() <{level = 10 : i32, message = "bqk,bkd->bqd"}> : () -> ()
    %cst_75 = arith.constant dense<0.000000e+00> : vector<2x8x32xf32>
    %174 = tpu.matmul %173, %162, %cst_75 {dimension_numbers = #tpu.dot_dimension_numbers<[2], [1], [1], [2], [0, 0, 0, 1, 1, 2], [0], [0]>} : vector<2x8x8xf32>, vector<2x8x32xf32>, vector<2x8x32xf32> -> vector<2x8x32xf32>
    "tpu.trace_stop"() : () -> ()
    %175 = vector.shape_cast %174 : vector<2x8x32xf32> to vector<16x32xf32>
    %176 = vector.extract_strided_slice %155 {offsets = [0, 0], sizes = [32, 64], strides = [1, 1]} : vector<64x64xf32> to vector<32x64xf32>
    %cst_76 = arith.constant dense<0.000000e+00> : vector<16x64xf32>
    %177 = tpu.matmul %175, %176, %cst_76 {dimension_numbers = #tpu.dot_dimension_numbers<[1], [0], [0], [1], [0, 0, 1, 1], [], []>} : vector<16x32xf32>, vector<32x64xf32>, vector<16x64xf32> -> vector<16x64xf32>
    %178 = arith.addf %156, %177 : vector<16x64xf32>
    %179 = vector.extract_strided_slice %151 {offsets = [0, 32], sizes = [16, 32], strides = [1, 1]} : vector<16x64xf32> to vector<16x32xf32>
    %180 = vector.shape_cast %179 : vector<16x32xf32> to vector<2x8x32xf32>
    %181 = vector.extract_strided_slice %152 {offsets = [0, 32], sizes = [16, 32], strides = [1, 1]} : vector<16x64xf32> to vector<16x32xf32>
    %182 = vector.shape_cast %181 : vector<16x32xf32> to vector<2x8x32xf32>
    %183 = vector.extract_strided_slice %153 {offsets = [0, 32], sizes = [16, 32], strides = [1, 1]} : vector<16x64xf32> to vector<16x32xf32>
    %184 = vector.shape_cast %183 : vector<16x32xf32> to vector<2x8x32xf32>
    "tpu.trace_start"() <{level = 10 : i32, message = "bqd,bkd->bqk"}> : () -> ()
    %cst_77 = arith.constant dense<0.000000e+00> : vector<2x8x8xf32>
    %185 = tpu.matmul %180, %182, %cst_77 {dimension_numbers = #tpu.dot_dimension_numbers<[2], [2], [1], [1], [0, 0, 0, 1, 1, 1], [0], [0]>} : vector<2x8x32xf32>, vector<2x8x32xf32>, vector<2x8x8xf32> -> vector<2x8x8xf32>
    "tpu.trace_stop"() : () -> ()
    %cst_78 = arith.constant dense<0xFF800000> : vector<2x8xf32>
    %186 = vector.multi_reduction <maximumf>, %185, %cst_78 [2] : vector<2x8x8xf32> to vector<2x8xf32>
    %187 = vector.shape_cast %186 : vector<2x8xf32> to vector<2x8x1xf32>
    %188 = vector.broadcast %187 : vector<2x8x1xf32> to vector<2x8x8xf32>
    %189 = arith.subf %185, %188 : vector<2x8x8xf32>
    %190 = math.exp %189 : vector<2x8x8xf32>
    %cst_79 = arith.constant dense<0.000000e+00> : vector<2x8xf32>
    %191 = vector.multi_reduction <add>, %190, %cst_79 [2] : vector<2x8x8xf32> to vector<2x8xf32>
    %192 = vector.shape_cast %191 : vector<2x8xf32> to vector<2x8x1xf32>
    %193 = tpu.reciprocal %192 {approx = true} : vector<2x8x1xf32> -> vector<2x8x1xf32>
    %194 = vector.broadcast %193 : vector<2x8x1xf32> to vector<2x8x8xf32>
    %195 = arith.mulf %190, %194 : vector<2x8x8xf32>
    "tpu.trace_start"() <{level = 10 : i32, message = "bqk,bkd->bqd"}> : () -> ()
    %cst_80 = arith.constant dense<0.000000e+00> : vector<2x8x32xf32>
    %196 = tpu.matmul %195, %184, %cst_80 {dimension_numbers = #tpu.dot_dimension_numbers<[2], [1], [1], [2], [0, 0, 0, 1, 1, 2], [0], [0]>} : vector<2x8x8xf32>, vector<2x8x32xf32>, vector<2x8x32xf32> -> vector<2x8x32xf32>
    "tpu.trace_stop"() : () -> ()
    %197 = vector.shape_cast %196 : vector<2x8x32xf32> to vector<16x32xf32>
    %198 = vector.extract_strided_slice %155 {offsets = [32, 0], sizes = [32, 64], strides = [1, 1]} : vector<64x64xf32> to vector<32x64xf32>
    %cst_81 = arith.constant dense<0.000000e+00> : vector<16x64xf32>
    %199 = tpu.matmul %197, %198, %cst_81 {dimension_numbers = #tpu.dot_dimension_numbers<[1], [0], [0], [1], [0, 0, 1, 1], [], []>} : vector<16x32xf32>, vector<32x64xf32>, vector<16x64xf32> -> vector<16x64xf32>
    %200 = arith.addf %178, %199 : vector<16x64xf32>
    %c1_82 = arith.constant 1 : index
    %c0_83 = arith.constant 0 : index
    %c0_84 = arith.constant 0 : index
    %201 = vector.load %arg8[%c1_82, %c0_83, %c0_84] : memref<2x1x64xf32, #tpu.memory_space<vmem>>, vector<1x1x64xf32>
    %202 = vector.shape_cast %201 : vector<1x1x64xf32> to vector<1x64xf32>
    %203 = vector.broadcast %202 : vector<1x64xf32> to vector<16x64xf32>
    %204 = arith.addf %200, %203 : vector<16x64xf32>
    %c1_85 = arith.constant 1 : index
    %c0_86 = arith.constant 0 : index
    %c0_87 = arith.constant 0 : index
    %205 = vector.load %arg13[%c1_85, %c0_86, %c0_87] : memref<2x4x64xf32, #tpu.memory_space<vmem>>, vector<1x4x64xf32>
    %206 = vector.shape_cast %205 : vector<1x4x64xf32> to vector<4x64xf32>
    %207 = arith.addf %141, %204 : vector<16x64xf32>
    %208 = vector.extract_strided_slice %206 {offsets = [0, 0], sizes = [1, 64], strides = [1, 1]} : vector<4x64xf32> to vector<1x64xf32>
    %209 = vector.extract_strided_slice %206 {offsets = [1, 0], sizes = [1, 64], strides = [1, 1]} : vector<4x64xf32> to vector<1x64xf32>
    %cst_88 = arith.constant dense<0.000000e+00> : vector<16xf32>
    %210 = vector.multi_reduction <add>, %207, %cst_88 [1] : vector<16x64xf32> to vector<16xf32>
    %211 = vector.shape_cast %210 : vector<16xf32> to vector<16x1xf32>
    %cst_89 = arith.constant 6.400000e+01 : f32
    %212 = vector.broadcast %cst_89 : f32 to vector<16x1xf32>
    %213 = arith.divf %211, %212 : vector<16x1xf32>
    %214 = vector.broadcast %213 : vector<16x1xf32> to vector<16x64xf32>
    %215 = arith.subf %207, %214 : vector<16x64xf32>
    %216 = arith.mulf %215, %215 : vector<16x64xf32>
    %cst_90 = arith.constant dense<0.000000e+00> : vector<16xf32>
    %217 = vector.multi_reduction <add>, %216, %cst_90 [1] : vector<16x64xf32> to vector<16xf32>
    %218 = vector.shape_cast %217 : vector<16xf32> to vector<16x1xf32>
    %cst_91 = arith.constant 6.400000e+01 : f32
    %219 = vector.broadcast %cst_91 : f32 to vector<16x1xf32>
    %220 = arith.divf %218, %219 : vector<16x1xf32>
    %221 = vector.broadcast %213 : vector<16x1xf32> to vector<16x64xf32>
    %222 = arith.subf %207, %221 : vector<16x64xf32>
    %cst_92 = arith.constant 9.99999974E-6 : f32
    %223 = vector.broadcast %cst_92 : f32 to vector<16x1xf32>
    %224 = arith.addf %220, %223 : vector<16x1xf32>
    %225 = math.rsqrt %224 : vector<16x1xf32>
    %226 = vector.broadcast %225 : vector<16x1xf32> to vector<16x64xf32>
    %227 = arith.mulf %222, %226 : vector<16x64xf32>
    %228 = vector.broadcast %208 : vector<1x64xf32> to vector<16x64xf32>
    %229 = arith.mulf %227, %228 : vector<16x64xf32>
    %230 = vector.broadcast %209 : vector<1x64xf32> to vector<16x64xf32>
    %231 = arith.addf %229, %230 : vector<16x64xf32>
    %c1_93 = arith.constant 1 : index
    %c0_94 = arith.constant 0 : index
    %c0_95 = arith.constant 0 : index
    %232 = vector.load %arg9[%c1_93, %c0_94, %c0_95] : memref<2x64x256xf32, #tpu.memory_space<vmem>>, vector<1x64x256xf32>
    %233 = vector.shape_cast %232 : vector<1x64x256xf32> to vector<64x256xf32>
    %cst_96 = arith.constant dense<0.000000e+00> : vector<16x256xf32>
    %234 = tpu.matmul %231, %233, %cst_96 {dimension_numbers = #tpu.dot_dimension_numbers<[1], [0], [0], [1], [0, 0, 1, 1], [], []>} : vector<16x64xf32>, vector<64x256xf32>, vector<16x256xf32> -> vector<16x256xf32>
    %c1_97 = arith.constant 1 : index
    %c0_98 = arith.constant 0 : index
    %c0_99 = arith.constant 0 : index
    %235 = vector.load %arg10[%c1_97, %c0_98, %c0_99] : memref<2x1x256xf32, #tpu.memory_space<vmem>>, vector<1x1x256xf32>
    %236 = vector.shape_cast %235 : vector<1x1x256xf32> to vector<1x256xf32>
    %237 = vector.broadcast %236 : vector<1x256xf32> to vector<16x256xf32>
    %238 = arith.addf %234, %237 : vector<16x256xf32>
    %cst_100 = arith.constant 0.000000e+00 : f32
    %239 = vector.broadcast %cst_100 : f32 to vector<16x256xf32>
    %240 = arith.maximumf %238, %239 : vector<16x256xf32>
    %c1_101 = arith.constant 1 : index
    %c0_102 = arith.constant 0 : index
    %c0_103 = arith.constant 0 : index
    %241 = vector.load %arg11[%c1_101, %c0_102, %c0_103] : memref<2x256x64xf32, #tpu.memory_space<vmem>>, vector<1x256x64xf32>
    %242 = vector.shape_cast %241 : vector<1x256x64xf32> to vector<256x64xf32>
    %cst_104 = arith.constant dense<0.000000e+00> : vector<16x64xf32>
    %243 = tpu.matmul %240, %242, %cst_104 {dimension_numbers = #tpu.dot_dimension_numbers<[1], [0], [0], [1], [0, 0, 1, 1], [], []>} : vector<16x256xf32>, vector<256x64xf32>, vector<16x64xf32> -> vector<16x64xf32>
    %c1_105 = arith.constant 1 : index
    %c0_106 = arith.constant 0 : index
    %c0_107 = arith.constant 0 : index
    %244 = vector.load %arg12[%c1_105, %c0_106, %c0_107] : memref<2x1x64xf32, #tpu.memory_space<vmem>>, vector<1x1x64xf32>
    %245 = vector.shape_cast %244 : vector<1x1x64xf32> to vector<1x64xf32>
    %246 = vector.broadcast %245 : vector<1x64xf32> to vector<16x64xf32>
    %247 = arith.addf %243, %246 : vector<16x64xf32>
    %248 = arith.addf %231, %247 : vector<16x64xf32>
    %249 = vector.extract_strided_slice %206 {offsets = [2, 0], sizes = [1, 64], strides = [1, 1]} : vector<4x64xf32> to vector<1x64xf32>
    %250 = vector.extract_strided_slice %206 {offsets = [3, 0], sizes = [1, 64], strides = [1, 1]} : vector<4x64xf32> to vector<1x64xf32>
    %cst_108 = arith.constant dense<0.000000e+00> : vector<16xf32>
    %251 = vector.multi_reduction <add>, %248, %cst_108 [1] : vector<16x64xf32> to vector<16xf32>
    %252 = vector.shape_cast %251 : vector<16xf32> to vector<16x1xf32>
    %cst_109 = arith.constant 6.400000e+01 : f32
    %253 = vector.broadcast %cst_109 : f32 to vector<16x1xf32>
    %254 = arith.divf %252, %253 : vector<16x1xf32>
    %255 = vector.broadcast %254 : vector<16x1xf32> to vector<16x64xf32>
    %256 = arith.subf %248, %255 : vector<16x64xf32>
    %257 = arith.mulf %256, %256 : vector<16x64xf32>
    %cst_110 = arith.constant dense<0.000000e+00> : vector<16xf32>
    %258 = vector.multi_reduction <add>, %257, %cst_110 [1] : vector<16x64xf32> to vector<16xf32>
    %259 = vector.shape_cast %258 : vector<16xf32> to vector<16x1xf32>
    %cst_111 = arith.constant 6.400000e+01 : f32
    %260 = vector.broadcast %cst_111 : f32 to vector<16x1xf32>
    %261 = arith.divf %259, %260 : vector<16x1xf32>
    %262 = vector.broadcast %254 : vector<16x1xf32> to vector<16x64xf32>
    %263 = arith.subf %248, %262 : vector<16x64xf32>
    %cst_112 = arith.constant 9.99999974E-6 : f32
    %264 = vector.broadcast %cst_112 : f32 to vector<16x1xf32>
    %265 = arith.addf %261, %264 : vector<16x1xf32>
    %266 = math.rsqrt %265 : vector<16x1xf32>
    %267 = vector.broadcast %266 : vector<16x1xf32> to vector<16x64xf32>
    %268 = arith.mulf %263, %267 : vector<16x64xf32>
    %269 = vector.broadcast %249 : vector<1x64xf32> to vector<16x64xf32>
    %270 = arith.mulf %268, %269 : vector<16x64xf32>
    %271 = vector.broadcast %250 : vector<1x64xf32> to vector<16x64xf32>
    %272 = arith.addf %270, %271 : vector<16x64xf32>
    %273 = vector.shape_cast %272 : vector<16x64xf32> to vector<2x8x64xf32>
    %274 = vector.extract_strided_slice %273 {offsets = [0, 7, 0], sizes = [2, 1, 64], strides = [1, 1, 1]} : vector<2x8x64xf32> to vector<2x1x64xf32>
    %275 = vector.shape_cast %274 : vector<2x1x64xf32> to vector<2x64xf32>
    %c0_113 = arith.constant 0 : index
    %c0_114 = arith.constant 0 : index
    %276 = vector.load %arg14[%c0_113, %c0_114] : memref<2x64xf32, #tpu.memory_space<vmem>>, vector<2x64xf32>
    tpu.vector_store %arg14[%c0_113, %c0_114], %275 {strides = array<i32>} : memref<2x64xf32, #tpu.memory_space<vmem>>, vector<2x64xf32>,
    return
  }
  func.func @transform_0(%arg0: i32) -> (i32, i32, i32) {
    %c0_i32 = arith.constant 0 : i32
    %c0_i32_0 = arith.constant 0 : i32
    %c0_i32_1 = arith.constant 0 : i32
    return %arg0, %c0_i32, %c0_i32_0 : i32, i32, i32
  }
  func.func @transform_1(%arg0: i32) -> (i32, i32) {
    %c0_i32 = arith.constant 0 : i32
    %c0_i32_0 = arith.constant 0 : i32
    %c0_i32_1 = arith.constant 0 : i32
    return %c0_i32, %c0_i32_0 : i32, i32
  }
  func.func @transform_2(%arg0: i32) -> (i32, i32) {
    %c0_i32 = arith.constant 0 : i32
    %c0_i32_0 = arith.constant 0 : i32
    %c0_i32_1 = arith.constant 0 : i32
    return %c0_i32, %c0_i32_0 : i32, i32
  }
  func.func @transform_3(%arg0: i32) -> (i32, i32) {
    %c0_i32 = arith.constant 0 : i32
    %c0_i32_0 = arith.constant 0 : i32
    %c0_i32_1 = arith.constant 0 : i32
    return %c0_i32, %c0_i32_0 : i32, i32
  }
  func.func @transform_4(%arg0: i32) -> (i32, i32, i32) {
    %c0_i32 = arith.constant 0 : i32
    %c0_i32_0 = arith.constant 0 : i32
    %c0_i32_1 = arith.constant 0 : i32
    %c0_i32_2 = arith.constant 0 : i32
    return %c0_i32, %c0_i32_0, %c0_i32_1 : i32, i32, i32
  }
  func.func @transform_5(%arg0: i32) -> (i32, i32, i32) {
    %c0_i32 = arith.constant 0 : i32
    %c0_i32_0 = arith.constant 0 : i32
    %c0_i32_1 = arith.constant 0 : i32
    %c0_i32_2 = arith.constant 0 : i32
    return %c0_i32, %c0_i32_0, %c0_i32_1 : i32, i32, i32
  }
  func.func @transform_6(%arg0: i32) -> (i32, i32, i32) {
    %c0_i32 = arith.constant 0 : i32
    %c0_i32_0 = arith.constant 0 : i32
    %c0_i32_1 = arith.constant 0 : i32
    %c0_i32_2 = arith.constant 0 : i32
    return %c0_i32, %c0_i32_0, %c0_i32_1 : i32, i32, i32
  }
  func.func @transform_7(%arg0: i32) -> (i32, i32, i32) {
    %c0_i32 = arith.constant 0 : i32
    %c0_i32_0 = arith.constant 0 : i32
    %c0_i32_1 = arith.constant 0 : i32
    %c0_i32_2 = arith.constant 0 : i32
    return %c0_i32, %c0_i32_0, %c0_i32_1 : i32, i32, i32
  }
  func.func @transform_8(%arg0: i32) -> (i32, i32, i32) {
    %c0_i32 = arith.constant 0 : i32
    %c0_i32_0 = arith.constant 0 : i32
    %c0_i32_1 = arith.constant 0 : i32
    %c0_i32_2 = arith.constant 0 : i32
    return %c0_i32, %c0_i32_0, %c0_i32_1 : i32, i32, i32
  }
  func.func @transform_9(%arg0: i32) -> (i32, i32, i32) {
    %c0_i32 = arith.constant 0 : i32
    %c0_i32_0 = arith.constant 0 : i32
    %c0_i32_1 = arith.constant 0 : i32
    %c0_i32_2 = arith.constant 0 : i32
    return %c0_i32, %c0_i32_0, %c0_i32_1 : i32, i32, i32
  }
  func.func @transform_10(%arg0: i32) -> (i32, i32, i32) {
    %c0_i32 = arith.constant 0 : i32
    %c0_i32_0 = arith.constant 0 : i32
    %c0_i32_1 = arith.constant 0 : i32
    %c0_i32_2 = arith.constant 0 : i32
    return %c0_i32, %c0_i32_0, %c0_i32_1 : i32, i32, i32
  }
  func.func @transform_11(%arg0: i32) -> (i32, i32, i32) {
    %c0_i32 = arith.constant 0 : i32
    %c0_i32_0 = arith.constant 0 : i32
    %c0_i32_1 = arith.constant 0 : i32
    %c0_i32_2 = arith.constant 0 : i32
    return %c0_i32, %c0_i32_0, %c0_i32_1 : i32, i32, i32
  }
  func.func @transform_12(%arg0: i32) -> (i32, i32, i32) {
    %c0_i32 = arith.constant 0 : i32
    %c0_i32_0 = arith.constant 0 : i32
    %c0_i32_1 = arith.constant 0 : i32
    %c0_i32_2 = arith.constant 0 : i32
    return %c0_i32, %c0_i32_0, %c0_i32_1 : i32, i32, i32
  }
  func.func @transform_13(%arg0: i32) -> (i32, i32) {
    %c0_i32 = arith.constant 0 : i32
    %c0_i32_0 = arith.constant 0 : i32
    return %arg0, %c0_i32 : i32, i32
  }
}

</mosaic_0001>

<llo_original>
// kernel: transformer_forward.1
$region0: #{transformer_forward.1}
  #allocation0 [shape = 'u32[]', space=smem, size = 0x4, offset = 0x4, fixed_abs, tag = 'smem constant byte address 0x4 - core index']
  #allocation1 [shape = 'u32[144,128]{1,0:T(1,128)}', space=vmem, size = 0x12000, scoped, tag = 'internal scratch']
  %s0 = inlined_call_operand.vmem [shape: f32[2,8,16], index: 0, kind: input, shape index: {}]
  %s1 = inlined_call_operand.vmem [shape: f32[8,16], index: 1, kind: input, shape index: {}]
  %s2 = inlined_call_operand.vmem [shape: f32[16,64], index: 2, kind: input, shape index: {}]
  %s3 = inlined_call_operand.vmem [shape: f32[1,64], index: 3, kind: input, shape index: {}]
  %s4 = inlined_call_operand.vmem [shape: f32[2,64,192], index: 4, kind: input, shape index: {}]
  %s5 = inlined_call_operand.vmem [shape: f32[2,1,192], index: 5, kind: input, shape index: {}]
  %s6 = inlined_call_operand.vmem [shape: f32[2,64,64], index: 6, kind: input, shape index: {}]
  %s7 = inlined_call_operand.vmem [shape: f32[2,1,64], index: 7, kind: input, shape index: {}]
  %s8 = inlined_call_operand.vmem [shape: f32[2,64,256], index: 8, kind: input, shape index: {}]
  %s9 = inlined_call_operand.vmem [shape: f32[2,1,256], index: 9, kind: input, shape index: {}]
  %s10 = inlined_call_operand.vmem [shape: f32[2,256,64], index: 10, kind: input, shape index: {}]
  %s11 = inlined_call_operand.vmem [shape: f32[2,1,64], index: 11, kind: input, shape index: {}]
  %s12 = inlined_call_operand.vmem [shape: f32[2,4,64], index: 12, kind: input, shape index: {}]
  %s13 = inlined_call_operand.hbm [shape: f32[2,64], index: 13, kind: output, shape index: {}]
  %s14 = sld [smem:[#allocation0]]
  $region62: #{transformer_forward.1} parent=0
    _
  %s16 = ssub.s32 1, %s14
  %s17 = scalar_select 0, %s16, %s14
  $region1: #{transformer_forward.1} parent=0
    #allocation2 [shape = 'u8[1024]{0}', space=vmem, size = 0x400, scoped, tag = 'output window, operand 0, single buffered']
    #allocation3 [shape = 's32[1]{0}', space=sflag, size = 0x4, scoped, tag = 'scoped memory for transformer_forward.1']
    %18 = vsyncpa [#allocation3], 0
    // Predicated region
    $region2: #{transformer_forward.1} parent=1 // pred_check
      _
    $region3: #{transformer_forward.1} parent=1 // pred_check_branch
      %20 = sbr.rel (0) target = $region5
    $region4: #{transformer_forward.1} parent=1 // pred_region
      _
    $region5: #{transformer_forward.1} parent=1 // pred_fallthru
      _
    // Predicated region
    $region6: #{transformer_forward.1} parent=1 // pred_check
      _
    $region7: #{transformer_forward.1} parent=1 // pred_check_branch
      %22 = sbr.rel (0) target = $region9
    $region8: #{transformer_forward.1} parent=1 // pred_region
      _
    $region9: #{transformer_forward.1} parent=1 // pred_fallthru
      _
    // Predicated region
    $region10: #{transformer_forward.1} parent=1 // pred_check
      _
    $region11: #{transformer_forward.1} parent=1 // pred_check_branch
      %24 = sbr.rel (0) target = $region13
    $region12: #{transformer_forward.1} parent=1 // pred_region
      _
    $region13: #{transformer_forward.1} parent=1 // pred_fallthru
      _
    // Predicated region
    $region14: #{transformer_forward.1} parent=1 // pred_check
      _
    $region15: #{transformer_forward.1} parent=1 // pred_check_branch
      %26 = sbr.rel (0) target = $region17
    $region16: #{transformer_forward.1} parent=1 // pred_region
      _
    $region17: #{transformer_forward.1} parent=1 // pred_fallthru
      _
    // Predicated region
    $region18: #{transformer_forward.1} parent=1 // pred_check
      _
    $region19: #{transformer_forward.1} parent=1 // pred_check_branch
      %28 = sbr.rel (0) target = $region21
    $region20: #{transformer_forward.1} parent=1 // pred_region
      _
    $region21: #{transformer_forward.1} parent=1 // pred_fallthru
      _
    // Predicated region
    $region22: #{transformer_forward.1} parent=1 // pred_check
      _
    $region23: #{transformer_forward.1} parent=1 // pred_check_branch
      %30 = sbr.rel (0) target = $region25
    $region24: #{transformer_forward.1} parent=1 // pred_region
      _
    $region25: #{transformer_forward.1} parent=1 // pred_fallthru
      _
    // Predicated region
    $region26: #{transformer_forward.1} parent=1 // pred_check
      _
    $region27: #{transformer_forward.1} parent=1 // pred_check_branch
      %32 = sbr.rel (0) target = $region29
    $region28: #{transformer_forward.1} parent=1 // pred_region
      _
    $region29: #{transformer_forward.1} parent=1 // pred_fallthru
      _
    // Predicated region
    $region30: #{transformer_forward.1} parent=1 // pred_check
      _
    $region31: #{transformer_forward.1} parent=1 // pred_check_branch
      %34 = sbr.rel (0) target = $region33
    $region32: #{transformer_forward.1} parent=1 // pred_region
      _
    $region33: #{transformer_forward.1} parent=1 // pred_fallthru
      _
    // Predicated region
    $region34: #{transformer_forward.1} parent=1 // pred_check
      _
    $region35: #{transformer_forward.1} parent=1 // pred_check_branch
      %36 = sbr.rel (0) target = $region37
    $region36: #{transformer_forward.1} parent=1 // pred_region
      _
    $region37: #{transformer_forward.1} parent=1 // pred_fallthru
      _
    // Predicated region
    $region38: #{transformer_forward.1} parent=1 // pred_check
      _
    $region39: #{transformer_forward.1} parent=1 // pred_check_branch
      %38 = sbr.rel (0) target = $region41
    $region40: #{transformer_forward.1} parent=1 // pred_region
      _
    $region41: #{transformer_forward.1} parent=1 // pred_fallthru
      _
    // Predicated region
    $region42: #{transformer_forward.1} parent=1 // pred_check
      _
    $region43: #{transformer_forward.1} parent=1 // pred_check_branch
      %40 = sbr.rel (0) target = $region45
    $region44: #{transformer_forward.1} parent=1 // pred_region
      _
    $region45: #{transformer_forward.1} parent=1 // pred_fallthru
      _
    // Predicated region
    $region46: #{transformer_forward.1} parent=1 // pred_check
      _
    $region47: #{transformer_forward.1} parent=1 // pred_check_branch
      %42 = sbr.rel (0) target = $region49
    $region48: #{transformer_forward.1} parent=1 // pred_region
      _
    $region49: #{transformer_forward.1} parent=1 // pred_fallthru
      _
    // Predicated region
    $region50: #{transformer_forward.1} parent=1 // pred_check
      _
    $region51: #{transformer_forward.1} parent=1 // pred_check_branch
      %44 = sbr.rel (0) target = $region53
    $region52: #{transformer_forward.1} parent=1 // pred_region
      _
    $region53: #{transformer_forward.1} parent=1 // pred_fallthru
      _
    %v45 = vld [vmem:[%s0] sm:$0xff]
    %v46 = vld [vmem:[%s0 + $0x8] sm:$0xff]
    %v47 = vld [vmem:[%s1] sm:$0xff]
    %v48 = vadd.f32 %v45, %v47
    %v49 = vadd.f32 %v46, %v47
    %v50 = vld [vmem:[%s2] sm:$0xff]
    %v51 = vld [vmem:[%s2 + $0x8] sm:$0xff]
    %v52 = vld [vmem:[%s3] sm:$0x1]
    %v54 = vlaneseq
    %v55 = vshrl.u32 %v54, 7
    %v56 = vsub.s32 0, %v55
    %v57 = vrot.slane %v52, %v56
    %vm59 = vcmask 130048
    %v61 = vsel %vm59, %v48, 0
    %v64 = vsel %vm59, %v49, 0
    %66 = vmatprep.subr.mxu0 0.0
    %67 = vmatpush1.msra.mxu0 0.0
    %68 = vmatprep.subr.mxu0 0.0
    %69 = vmatpush1.msra.mxu0 0.0
    %70 = vmatprep.subr.mxu0 0.0
    %71 = vmatpush1.msra.mxu0 0.0
    %72 = vmatprep.subr.mxu0 0.0
    %73 = vmatpush1.msra.mxu0 0.0
    %74 = vmatprep.subr.mxu0 0.0
    %75 = vmatpush1.msra.mxu0 0.0
    %76 = vmatprep.subr.mxu0 0.0
    %77 = vmatpush1.msra.mxu0 0.0
    %78 = vmatprep.subr.mxu0 0.0
    %79 = vmatpush1.msra.mxu0 0.0
    %80 = vmatprep.subr.mxu0 0.0
    %81 = vmatpush1.msra.mxu0 0.0
    %82 = vmatprep.subr.mxu0 0.0
    %83 = vmatpush1.msra.mxu0 0.0
    %84 = vmatprep.subr.mxu0 0.0
    %85 = vmatpush1.msra.mxu0 0.0
    %86 = vmatprep.subr.mxu0 0.0
    %87 = vmatpush1.msra.mxu0 0.0
    %88 = vmatprep.subr.mxu0 0.0
    %89 = vmatpush1.msra.mxu0 0.0
    %90 = vmatprep.subr.mxu0 0.0
    %91 = vmatpush1.msra.mxu0 0.0
    %92 = vmatprep.subr.mxu0 0.0
    %93 = vmatpush1.msra.mxu0 0.0
    %94 = vmatprep.subr.mxu0 0.0
    %95 = vmatpush1.msra.mxu0 %v51
    %96 = vmatprep.subr.mxu0 0.0
    %97 = vmatpush1.msra.mxu0 %v50
    %98 = vmatprep.subr.mxu0 0.0
    %99 = vmatpush2.msra.mxu0 0.0
    %100 = vmatprep.subr.mxu0 0.0
    %101 = vmatpush2.msra.mxu0 0.0
    %102 = vmatprep.subr.mxu0 0.0
    %103 = vmatpush2.msra.mxu0 0.0
    %104 = vmatprep.subr.mxu0 0.0
    %105 = vmatpush2.msra.mxu0 0.0
    %106 = vmatprep.subr.mxu0 0.0
    %107 = vmatpush2.msra.mxu0 0.0
    %108 = vmatprep.subr.mxu0 0.0
    %109 = vmatpush2.msra.mxu0 0.0
    %110 = vmatprep.subr.mxu0 0.0
    %111 = vmatpush2.msra.mxu0 0.0
    %112 = vmatprep.subr.mxu0 0.0
    %113 = vmatpush2.msra.mxu0 0.0
    %114 = vmatprep.subr.mxu0 0.0
    %115 = vmatpush2.msra.mxu0 0.0
    %116 = vmatprep.subr.mxu0 0.0
    %117 = vmatpush2.msra.mxu0 0.0
    %118 = vmatprep.subr.mxu0 0.0
    %119 = vmatpush2.msra.mxu0 0.0
    %120 = vmatprep.subr.mxu0 0.0
    %121 = vmatpush2.msra.mxu0 0.0
    %122 = vmatprep.subr.mxu0 0.0
    %123 = vmatpush2.msra.mxu0 0.0
    %124 = vmatprep.subr.mxu0 0.0
    %125 = vmatpush2.msra.mxu0 0.0
    %126 = vmatprep.subr.mxu0 0.0
    %127 = vmatpush2.msra.mxu0 0.0
    %128 = vmatprep.subr.mxu0 0.0
    %129 = vmatpush2.msra.mxu0 0.0
    %130 = vmatprep.mubr.f32.mxu0 0.0
    %131 = vmatmul.mubr.f32.gmra.mxu0 %v61
    %v132 = vpop.f32.mrf.mxu0
    %v133 = vadd.f32 %v57, %v132
    %v134 = vpop.f32.mrf.mxu0
    %135 = vmatprep.mubr.f32.mxu0 0.0
    %136 = vmatmul.mubr.f32.gmra.mxu0 %v64
    %v137 = vpop.f32.mrf.mxu0
    %v138 = vadd.f32 %v57, %v137
    %v139 = vpop.f32.mrf.mxu0
    %140 = vdwg.mxu0
    %v141 = vld [vmem:[%s4] sm:$0xff]
    %v142 = vld [vmem:[%s4 + $0x8] sm:$0xff]
    %v143 = vld [vmem:[%s4 + $0x10] sm:$0xff]
    %v144 = vld [vmem:[%s4 + $0x18] sm:$0xff]
    %v145 = vld [vmem:[%s4 + $0x20] sm:$0xff]
    %v146 = vld [vmem:[%s4 + $0x28] sm:$0xff]
    %v147 = vld [vmem:[%s4 + $0x30] sm:$0xff]
    %v148 = vld [vmem:[%s4 + $0x38] sm:$0xff]
    %v149 = vld [vmem:[%s4 + $0x40] sm:$0xff]
    %v150 = vld [vmem:[%s4 + $0x48] sm:$0xff]
    %v151 = vld [vmem:[%s4 + $0x50] sm:$0xff]
    %v152 = vld [vmem:[%s4 + $0x58] sm:$0xff]
    %v153 = vld [vmem:[%s4 + $0x60] sm:$0xff]
    %v154 = vld [vmem:[%s4 + $0x68] sm:$0xff]
    %v155 = vld [vmem:[%s4 + $0x70] sm:$0xff]
    %v156 = vld [vmem:[%s4 + $0x78] sm:$0xff]
    %v157 = vld [vmem:[%s5] sm:$0x3]
    %v159 = vlaneseq
    %v160 = vshrl.u32 %v159, 7
    %v161 = vsub.s32 0, %v160
    %v162 = vrot.slane %v157, %v161
    %v163 = vlaneseq
    %v164 = vshrl.u32 %v163, 7
    %v165 = vsub.s32 1, %v164
    %v166 = vrot.slane %v157, %v165
    %vm169 = vcmask 523264
    %v171 = vsel %vm169, %v133, 0
    %v174 = vsel %vm169, %v138, 0
    %176 = vmatprep.subr.mxu0 0.0
    %177 = vmatpush1.msra.mxu0 0.0
    %178 = vmatprep.subr.mxu0 0.0
    %179 = vmatpush1.msra.mxu0 0.0
    %180 = vmatprep.subr.mxu0 0.0
    %181 = vmatpush1.msra.mxu0 0.0
    %182 = vmatprep.subr.mxu0 0.0
    %183 = vmatpush1.msra.mxu0 0.0
    %184 = vmatprep.subr.mxu0 0.0
    %185 = vmatpush1.msra.mxu0 0.0
    %186 = vmatprep.subr.mxu0 0.0
    %187 = vmatpush1.msra.mxu0 0.0
    %188 = vmatprep.subr.mxu0 0.0
    %189 = vmatpush1.msra.mxu0 0.0
    %190 = vmatprep.subr.mxu0 0.0
    %191 = vmatpush1.msra.mxu0 0.0
    %192 = vmatprep.subr.mxu0 %v156
    %193 = vmatpush1.msra.mxu0 %v155
    %194 = vmatprep.subr.mxu0 %v154
    %195 = vmatpush1.msra.mxu0 %v153
    %196 = vmatprep.subr.mxu0 %v152
    %197 = vmatpush1.msra.mxu0 %v151
    %198 = vmatprep.subr.mxu0 %v150
    %199 = vmatpush1.msra.mxu0 %v149
    %200 = vmatprep.subr.mxu0 %v148
    %201 = vmatpush1.msra.mxu0 %v147
    %202 = vmatprep.subr.mxu0 %v146
    %203 = vmatpush1.msra.mxu0 %v145
    %204 = vmatprep.subr.mxu0 %v144
    %205 = vmatpush1.msra.mxu0 %v143
    %206 = vmatprep.subr.mxu0 %v142
    %207 = vmatpush1.msra.mxu0 %v141
    %208 = vmatprep.subr.mxu0 0.0
    %209 = vmatpush2.msra.mxu0 0.0
    %210 = vmatprep.subr.mxu0 0.0
    %211 = vmatpush2.msra.mxu0 0.0
    %212 = vmatprep.subr.mxu0 0.0
    %213 = vmatpush2.msra.mxu0 0.0
    %214 = vmatprep.subr.mxu0 0.0
    %215 = vmatpush2.msra.mxu0 0.0
    %216 = vmatprep.subr.mxu0 0.0
    %217 = vmatpush2.msra.mxu0 0.0
    %218 = vmatprep.subr.mxu0 0.0
    %219 = vmatpush2.msra.mxu0 0.0
    %220 = vmatprep.subr.mxu0 0.0
    %221 = vmatpush2.msra.mxu0 0.0
    %222 = vmatprep.subr.mxu0 0.0
    %223 = vmatpush2.msra.mxu0 0.0
    %224 = vmatprep.subr.mxu0 0.0
    %225 = vmatpush2.msra.mxu0 0.0
    %226 = vmatprep.subr.mxu0 0.0
    %227 = vmatpush2.msra.mxu0 0.0
    %228 = vmatprep.subr.mxu0 0.0
    %229 = vmatpush2.msra.mxu0 0.0
    %230 = vmatprep.subr.mxu0 0.0
    %231 = vmatpush2.msra.mxu0 0.0
    %232 = vmatprep.subr.mxu0 0.0
    %233 = vmatpush2.msra.mxu0 0.0
    %234 = vmatprep.subr.mxu0 0.0
    %235 = vmatpush2.msra.mxu0 0.0
    %236 = vmatprep.subr.mxu0 0.0
    %237 = vmatpush2.msra.mxu0 0.0
    %238 = vmatprep.subr.mxu0 0.0
    %239 = vmatpush2.msra.mxu0 0.0
    %240 = vmatprep.mubr.f32.mxu0 0.0
    %241 = vmatmul.mubr.f32.gmra.mxu0 %v171
    %v242 = vpop.f32.mrf.mxu0
    %v243 = vadd.f32 %v162, %v242
    %v244 = vpop.f32.mrf.mxu0
    %v245 = vadd.f32 %v166, %v244
    %246 = vmatprep.mubr.f32.mxu0 0.0
    %247 = vmatmul.mubr.f32.gmra.mxu0 %v174
    %v248 = vpop.f32.mrf.mxu0
    %v249 = vadd.f32 %v162, %v248
    %v250 = vpop.f32.mrf.mxu0
    %v251 = vadd.f32 %v166, %v250
    %252 = vdwg.mxu0
    %v253 = vmul.f32 %v243, 0.17677669
    %v254 = vmul.f32 %v249, 0.17677669
    %v255 = vld [vmem:[%s6] sm:$0xff]
    %v256 = vld [vmem:[%s6 + $0x8] sm:$0xff]
    %v257 = vld [vmem:[%s6 + $0x10] sm:$0xff]
    %v258 = vld [vmem:[%s6 + $0x18] sm:$0xff]
    %v259 = vld [vmem:[%s6 + $0x20] sm:$0xff]
    %v260 = vld [vmem:[%s6 + $0x28] sm:$0xff]
    %v261 = vld [vmem:[%s6 + $0x30] sm:$0xff]
    %v262 = vld [vmem:[%s6 + $0x38] sm:$0xff]
    %264 = vrot.lane.b32.xlu0 %v243, 64
    %v265 = vpop.permute.xlu0 %264
    %vm266 = vcmask 261120
    %v268 = vsel %vm266, %v253, 0
    %v270 = vsel %vm266, %v265, 0
    %272 = vmatprep.subr.mxu0 0.0
    %273 = vmatpush1.xpose.msra.mxu0 0.0
    %274 = vmatprep.subr.mxu0 0.0
    %275 = vmatpush1.xpose.msra.mxu0 0.0
    %276 = vmatprep.subr.mxu0 0.0
    %277 = vmatpush1.xpose.msra.mxu0 0.0
    %278 = vmatprep.subr.mxu0 0.0
    %279 = vmatpush1.xpose.msra.mxu0 0.0
    %280 = vmatprep.subr.mxu0 0.0
    %281 = vmatpush1.xpose.msra.mxu0 0.0
    %282 = vmatprep.subr.mxu0 0.0
    %283 = vmatpush1.xpose.msra.mxu0 0.0
    %284 = vmatprep.subr.mxu0 0.0
    %285 = vmatpush1.xpose.msra.mxu0 0.0
    %286 = vmatprep.subr.mxu0 0.0
    %287 = vmatpush1.xpose.msra.mxu0 0.0
    %288 = vmatprep.subr.mxu0 0.0
    %289 = vmatpush1.xpose.msra.mxu0 0.0
    %290 = vmatprep.subr.mxu0 0.0
    %291 = vmatpush1.xpose.msra.mxu0 0.0
    %292 = vmatprep.subr.mxu0 0.0
    %293 = vmatpush1.xpose.msra.mxu0 0.0
    %294 = vmatprep.subr.mxu0 0.0
    %295 = vmatpush1.xpose.msra.mxu0 0.0
    %296 = vmatprep.subr.mxu0 0.0
    %297 = vmatpush1.xpose.msra.mxu0 0.0
    %298 = vmatprep.subr.mxu0 0.0
    %299 = vmatpush1.xpose.msra.mxu0 0.0
    %300 = vmatprep.subr.mxu0 0.0
    %301 = vmatpush1.xpose.msra.mxu0 0.0
    %302 = vmatprep.subr.mxu0 0.0
    %303 = vmatpush1.xpose.msra.mxu0 %v270
    %304 = vmatprep.subr.mxu0 0.0
    %305 = vmatpush2.xpose.msra.mxu0 0.0
    %306 = vmatprep.subr.mxu0 0.0
    %307 = vmatpush2.xpose.msra.mxu0 0.0
    %308 = vmatprep.subr.mxu0 0.0
    %309 = vmatpush2.xpose.msra.mxu0 0.0
    %310 = vmatprep.subr.mxu0 0.0
    %311 = vmatpush2.xpose.msra.mxu0 0.0
    %312 = vmatprep.subr.mxu0 0.0
    %313 = vmatpush2.xpose.msra.mxu0 0.0
    %314 = vmatprep.subr.mxu0 0.0
    %315 = vmatpush2.xpose.msra.mxu0 0.0
    %316 = vmatprep.subr.mxu0 0.0
    %317 = vmatpush2.xpose.msra.mxu0 0.0
    %318 = vmatprep.subr.mxu0 0.0
    %319 = vmatpush2.xpose.msra.mxu0 0.0
    %320 = vmatprep.subr.mxu0 0.0
    %321 = vmatpush2.xpose.msra.mxu0 0.0
    %322 = vmatprep.subr.mxu0 0.0
    %323 = vmatpush2.xpose.msra.mxu0 0.0
    %324 = vmatprep.subr.mxu0 0.0
    %325 = vmatpush2.xpose.msra.mxu0 0.0
    %326 = vmatprep.subr.mxu0 0.0
    %327 = vmatpush2.xpose.msra.mxu0 0.0
    %328 = vmatprep.subr.mxu0 0.0
    %329 = vmatpush2.xpose.msra.mxu0 0.0
    %330 = vmatprep.subr.mxu0 0.0
    %331 = vmatpush2.xpose.msra.mxu0 0.0
    %332 = vmatprep.subr.mxu0 0.0
    %333 = vmatpush2.xpose.msra.mxu0 0.0
    %334 = vmatprep.subr.mxu0 0.0
    %335 = vmatpush2.xpose.msra.mxu0 0.0
    %336 = vmatprep.mubr.f32.mxu0 0.0
    %337 = vmatmul.mubr.f32.gmra.mxu0 %v268
    %v338 = vpop.f32.mrf.mxu0
    %v339 = vadd.f32 0.0, %v338
    %v340 = vpop.f32.mrf.mxu0
    %341 = vdwg.mxu0
    %343 = vrot.lane.b32.xlu0 %v249, 64
    %v344 = vpop.permute.xlu0 %343
    %v346 = vsel %vm266, %v254, 0
    %v348 = vsel %vm266, %v344, 0
    %350 = vmatprep.subr.mxu0 0.0
    %351 = vmatpush1.xpose.msra.mxu0 0.0
    %352 = vmatprep.subr.mxu0 0.0
    %353 = vmatpush1.xpose.msra.mxu0 0.0
    %354 = vmatprep.subr.mxu0 0.0
    %355 = vmatpush1.xpose.msra.mxu0 0.0
    %356 = vmatprep.subr.mxu0 0.0
    %357 = vmatpush1.xpose.msra.mxu0 0.0
    %358 = vmatprep.subr.mxu0 0.0
    %359 = vmatpush1.xpose.msra.mxu0 0.0
    %360 = vmatprep.subr.mxu0 0.0
    %361 = vmatpush1.xpose.msra.mxu0 0.0
    %362 = vmatprep.subr.mxu0 0.0
    %363 = vmatpush1.xpose.msra.mxu0 0.0
    %364 = vmatprep.subr.mxu0 0.0
    %365 = vmatpush1.xpose.msra.mxu0 0.0
    %366 = vmatprep.subr.mxu0 0.0
    %367 = vmatpush1.xpose.msra.mxu0 0.0
    %368 = vmatprep.subr.mxu0 0.0
    %369 = vmatpush1.xpose.msra.mxu0 0.0
    %370 = vmatprep.subr.mxu0 0.0
    %371 = vmatpush1.xpose.msra.mxu0 0.0
    %372 = vmatprep.subr.mxu0 0.0
    %373 = vmatpush1.xpose.msra.mxu0 0.0
    %374 = vmatprep.subr.mxu0 0.0
    %375 = vmatpush1.xpose.msra.mxu0 0.0
    %376 = vmatprep.subr.mxu0 0.0
    %377 = vmatpush1.xpose.msra.mxu0 0.0
    %378 = vmatprep.subr.mxu0 0.0
    %379 = vmatpush1.xpose.msra.mxu0 0.0
    %380 = vmatprep.subr.mxu0 0.0
    %381 = vmatpush1.xpose.msra.mxu0 %v348
    %382 = vmatprep.subr.mxu0 0.0
    %383 = vmatpush2.xpose.msra.mxu0 0.0
    %384 = vmatprep.subr.mxu0 0.0
    %385 = vmatpush2.xpose.msra.mxu0 0.0
    %386 = vmatprep.subr.mxu0 0.0
    %387 = vmatpush2.xpose.msra.mxu0 0.0
    %388 = vmatprep.subr.mxu0 0.0
    %389 = vmatpush2.xpose.msra.mxu0 0.0
    %390 = vmatprep.subr.mxu0 0.0
    %391 = vmatpush2.xpose.msra.mxu0 0.0
    %392 = vmatprep.subr.mxu0 0.0
    %393 = vmatpush2.xpose.msra.mxu0 0.0
    %394 = vmatprep.subr.mxu0 0.0
    %395 = vmatpush2.xpose.msra.mxu0 0.0
    %396 = vmatprep.subr.mxu0 0.0
    %397 = vmatpush2.xpose.msra.mxu0 0.0
    %398 = vmatprep.subr.mxu0 0.0
    %399 = vmatpush2.xpose.msra.mxu0 0.0
    %400 = vmatprep.subr.mxu0 0.0
    %401 = vmatpush2.xpose.msra.mxu0 0.0
    %402 = vmatprep.subr.mxu0 0.0
    %403 = vmatpush2.xpose.msra.mxu0 0.0
    %404 = vmatprep.subr.mxu0 0.0
    %405 = vmatpush2.xpose.msra.mxu0 0.0
    %406 = vmatprep.subr.mxu0 0.0
    %407 = vmatpush2.xpose.msra.mxu0 0.0
    %408 = vmatprep.subr.mxu0 0.0
    %409 = vmatpush2.xpose.msra.mxu0 0.0
    %410 = vmatprep.subr.mxu0 0.0
    %411 = vmatpush2.xpose.msra.mxu0 0.0
    %412 = vmatprep.subr.mxu0 0.0
    %413 = vmatpush2.xpose.msra.mxu0 0.0
    %414 = vmatprep.mubr.f32.mxu0 0.0
    %415 = vmatmul.mubr.f32.gmra.mxu0 %v346
    %v416 = vpop.f32.mrf.mxu0
    %v417 = vadd.f32 0.0, %v416
    %v418 = vpop.f32.mrf.mxu0
    %419 = vdwg.mxu0
    %vm420 = vcmask 64512
    %v421 = vsel %vm420, %v339, -inf
    %422 = vmax.xlane.f32.xlu0 %v421
    %v423 = vpop.xlane.xlu0 %422
    %v424 = vsel %vm420, %v417, -inf
    %425 = vmax.xlane.f32.xlu0 %v424
    %v426 = vpop.xlane.xlu0 %425
    %v427 = vsub.f32 %v339, %v423
    %v428 = vsub.f32 %v417, %v426
    %v429 = vmul.f32 %v427, 1.442695
    %v430 = vpow.pop %v429
    %v431 = vmul.f32 %v428, 1.442695
    %v432 = vpow.pop %v431
    %v433 = vsel %vm420, %v430, 0.0
    %434 = vadd.xlane.f32.xlu0 %v433
    %v435 = vpop.xlane.xlu0 %434
    %v436 = vsel %vm420, %v432, 0.0
    %437 = vadd.xlane.f32.xlu0 %v436
    %v438 = vpop.xlane.xlu0 %437
    %v439 = vrcp.pop %v435
    %v440 = vrcp.pop %v438
    %v441 = vmul.f32 %v430, %v439
    %v442 = vmul.f32 %v432, %v440
    %v444 = vsel %vm420, %v441, 0
    %446 = vmatprep.subr.mxu0 0.0
    %447 = vmatpush1.msra.mxu0 0.0
    %448 = vmatprep.subr.mxu0 0.0
    %449 = vmatpush1.msra.mxu0 0.0
    %450 = vmatprep.subr.mxu0 0.0
    %451 = vmatpush1.msra.mxu0 0.0
    %452 = vmatprep.subr.mxu0 0.0
    %453 = vmatpush1.msra.mxu0 0.0
    %454 = vmatprep.subr.mxu0 0.0
    %455 = vmatpush1.msra.mxu0 0.0
    %456 = vmatprep.subr.mxu0 0.0
    %457 = vmatpush1.msra.mxu0 0.0
    %458 = vmatprep.subr.mxu0 0.0
    %459 = vmatpush1.msra.mxu0 0.0
    %460 = vmatprep.subr.mxu0 0.0
    %461 = vmatpush1.msra.mxu0 0.0
    %462 = vmatprep.subr.mxu0 0.0
    %463 = vmatpush1.msra.mxu0 0.0
    %464 = vmatprep.subr.mxu0 0.0
    %465 = vmatpush1.msra.mxu0 0.0
    %466 = vmatprep.subr.mxu0 0.0
    %467 = vmatpush1.msra.mxu0 0.0
    %468 = vmatprep.subr.mxu0 0.0
    %469 = vmatpush1.msra.mxu0 0.0
    %470 = vmatprep.subr.mxu0 0.0
    %471 = vmatpush1.msra.mxu0 0.0
    %472 = vmatprep.subr.mxu0 0.0
    %473 = vmatpush1.msra.mxu0 0.0
    %474 = vmatprep.subr.mxu0 0.0
    %475 = vmatpush1.msra.mxu0 0.0
    %476 = vmatprep.subr.mxu0 0.0
    %477 = vmatpush1.msra.mxu0 %v245
    %478 = vmatprep.subr.mxu0 0.0
    %479 = vmatpush2.msra.mxu0 0.0
    %480 = vmatprep.subr.mxu0 0.0
    %481 = vmatpush2.msra.mxu0 0.0
    %482 = vmatprep.subr.mxu0 0.0
    %483 = vmatpush2.msra.mxu0 0.0
    %484 = vmatprep.subr.mxu0 0.0
    %485 = vmatpush2.msra.mxu0 0.0
    %486 = vmatprep.subr.mxu0 0.0
    %487 = vmatpush2.msra.mxu0 0.0
    %488 = vmatprep.subr.mxu0 0.0
    %489 = vmatpush2.msra.mxu0 0.0
    %490 = vmatprep.subr.mxu0 0.0
    %491 = vmatpush2.msra.mxu0 0.0
    %492 = vmatprep.subr.mxu0 0.0
    %493 = vmatpush2.msra.mxu0 0.0
    %494 = vmatprep.subr.mxu0 0.0
    %495 = vmatpush2.msra.mxu0 0.0
    %496 = vmatprep.subr.mxu0 0.0
    %497 = vmatpush2.msra.mxu0 0.0
    %498 = vmatprep.subr.mxu0 0.0
    %499 = vmatpush2.msra.mxu0 0.0
    %500 = vmatprep.subr.mxu0 0.0
    %501 = vmatpush2.msra.mxu0 0.0
    %502 = vmatprep.subr.mxu0 0.0
    %503 = vmatpush2.msra.mxu0 0.0
    %504 = vmatprep.subr.mxu0 0.0
    %505 = vmatpush2.msra.mxu0 0.0
    %506 = vmatprep.subr.mxu0 0.0
    %507 = vmatpush2.msra.mxu0 0.0
    %508 = vmatprep.subr.mxu0 0.0
    %509 = vmatpush2.msra.mxu0 0.0
    %510 = vmatprep.mubr.f32.mxu0 0.0
    %511 = vmatmul.mubr.f32.gmra.mxu0 %v444
    %v512 = vpop.f32.mrf.mxu0
    %v513 = vadd.f32 0.0, %v512
    %v514 = vpop.f32.mrf.mxu0
    %515 = vdwg.mxu0
    %v517 = vsel %vm420, %v442, 0
    %519 = vmatprep.subr.mxu0 0.0
    %520 = vmatpush1.msra.mxu0 0.0
    %521 = vmatprep.subr.mxu0 0.0
    %522 = vmatpush1.msra.mxu0 0.0
    %523 = vmatprep.subr.mxu0 0.0
    %524 = vmatpush1.msra.mxu0 0.0
    %525 = vmatprep.subr.mxu0 0.0
    %526 = vmatpush1.msra.mxu0 0.0
    %527 = vmatprep.subr.mxu0 0.0
    %528 = vmatpush1.msra.mxu0 0.0
    %529 = vmatprep.subr.mxu0 0.0
    %530 = vmatpush1.msra.mxu0 0.0
    %531 = vmatprep.subr.mxu0 0.0
    %532 = vmatpush1.msra.mxu0 0.0
    %533 = vmatprep.subr.mxu0 0.0
    %534 = vmatpush1.msra.mxu0 0.0
    %535 = vmatprep.subr.mxu0 0.0
    %536 = vmatpush1.msra.mxu0 0.0
    %537 = vmatprep.subr.mxu0 0.0
    %538 = vmatpush1.msra.mxu0 0.0
    %539 = vmatprep.subr.mxu0 0.0
    %540 = vmatpush1.msra.mxu0 0.0
    %541 = vmatprep.subr.mxu0 0.0
    %542 = vmatpush1.msra.mxu0 0.0
    %543 = vmatprep.subr.mxu0 0.0
    %544 = vmatpush1.msra.mxu0 0.0
    %545 = vmatprep.subr.mxu0 0.0
    %546 = vmatpush1.msra.mxu0 0.0
    %547 = vmatprep.subr.mxu0 0.0
    %548 = vmatpush1.msra.mxu0 0.0
    %549 = vmatprep.subr.mxu0 0.0
    %550 = vmatpush1.msra.mxu0 %v251
    %551 = vmatprep.subr.mxu0 0.0
    %552 = vmatpush2.msra.mxu0 0.0
    %553 = vmatprep.subr.mxu0 0.0
    %554 = vmatpush2.msra.mxu0 0.0
    %555 = vmatprep.subr.mxu0 0.0
    %556 = vmatpush2.msra.mxu0 0.0
    %557 = vmatprep.subr.mxu0 0.0
    %558 = vmatpush2.msra.mxu0 0.0
    %559 = vmatprep.subr.mxu0 0.0
    %560 = vmatpush2.msra.mxu0 0.0
    %561 = vmatprep.subr.mxu0 0.0
    %562 = vmatpush2.msra.mxu0 0.0
    %563 = vmatprep.subr.mxu0 0.0
    %564 = vmatpush2.msra.mxu0 0.0
    %565 = vmatprep.subr.mxu0 0.0
    %566 = vmatpush2.msra.mxu0 0.0
    %567 = vmatprep.subr.mxu0 0.0
    %568 = vmatpush2.msra.mxu0 0.0
    %569 = vmatprep.subr.mxu0 0.0
    %570 = vmatpush2.msra.mxu0 0.0
    %571 = vmatprep.subr.mxu0 0.0
    %572 = vmatpush2.msra.mxu0 0.0
    %573 = vmatprep.subr.mxu0 0.0
    %574 = vmatpush2.msra.mxu0 0.0
    %575 = vmatprep.subr.mxu0 0.0
    %576 = vmatpush2.msra.mxu0 0.0
    %577 = vmatprep.subr.mxu0 0.0
    %578 = vmatpush2.msra.mxu0 0.0
    %579 = vmatprep.subr.mxu0 0.0
    %580 = vmatpush2.msra.mxu0 0.0
    %581 = vmatprep.subr.mxu0 0.0
    %582 = vmatpush2.msra.mxu0 0.0
    %583 = vmatprep.mubr.f32.mxu0 0.0
    %584 = vmatmul.mubr.f32.gmra.mxu0 %v517
    %v585 = vpop.f32.mrf.mxu0
    %v586 = vadd.f32 0.0, %v585
    %v587 = vpop.f32.mrf.mxu0
    %588 = vdwg.mxu0
    %589 = vrot.lane.b32.xlu0 %v253, 96
    %v590 = vpop.permute.xlu0 %589
    %591 = vrot.lane.b32.xlu0 %v243, 32
    %v592 = vpop.permute.xlu0 %591
    %v593 = vsel %vm266, %v590, 0
    %v595 = vsel %vm266, %v592, 0
    %597 = vmatprep.subr.mxu0 0.0
    %598 = vmatpush1.xpose.msra.mxu0 0.0
    %599 = vmatprep.subr.mxu0 0.0
    %600 = vmatpush1.xpose.msra.mxu0 0.0
    %601 = vmatprep.subr.mxu0 0.0
    %602 = vmatpush1.xpose.msra.mxu0 0.0
    %603 = vmatprep.subr.mxu0 0.0
    %604 = vmatpush1.xpose.msra.mxu0 0.0
    %605 = vmatprep.subr.mxu0 0.0
    %606 = vmatpush1.xpose.msra.mxu0 0.0
    %607 = vmatprep.subr.mxu0 0.0
    %608 = vmatpush1.xpose.msra.mxu0 0.0
    %609 = vmatprep.subr.mxu0 0.0
    %610 = vmatpush1.xpose.msra.mxu0 0.0
    %611 = vmatprep.subr.mxu0 0.0
    %612 = vmatpush1.xpose.msra.mxu0 0.0
    %613 = vmatprep.subr.mxu0 0.0
    %614 = vmatpush1.xpose.msra.mxu0 0.0
    %615 = vmatprep.subr.mxu0 0.0
    %616 = vmatpush1.xpose.msra.mxu0 0.0
    %617 = vmatprep.subr.mxu0 0.0
    %618 = vmatpush1.xpose.msra.mxu0 0.0
    %619 = vmatprep.subr.mxu0 0.0
    %620 = vmatpush1.xpose.msra.mxu0 0.0
    %621 = vmatprep.subr.mxu0 0.0
    %622 = vmatpush1.xpose.msra.mxu0 0.0
    %623 = vmatprep.subr.mxu0 0.0
    %624 = vmatpush1.xpose.msra.mxu0 0.0
    %625 = vmatprep.subr.mxu0 0.0
    %626 = vmatpush1.xpose.msra.mxu0 0.0
    %627 = vmatprep.subr.mxu0 0.0
    %628 = vmatpush1.xpose.msra.mxu0 %v595
    %629 = vmatprep.subr.mxu0 0.0
    %630 = vmatpush2.xpose.msra.mxu0 0.0
    %631 = vmatprep.subr.mxu0 0.0
    %632 = vmatpush2.xpose.msra.mxu0 0.0
    %633 = vmatprep.subr.mxu0 0.0
    %634 = vmatpush2.xpose.msra.mxu0 0.0
    %635 = vmatprep.subr.mxu0 0.0
    %636 = vmatpush2.xpose.msra.mxu0 0.0
    %637 = vmatprep.subr.mxu0 0.0
    %638 = vmatpush2.xpose.msra.mxu0 0.0
    %639 = vmatprep.subr.mxu0 0.0
    %640 = vmatpush2.xpose.msra.mxu0 0.0
    %641 = vmatprep.subr.mxu0 0.0
    %642 = vmatpush2.xpose.msra.mxu0 0.0
    %643 = vmatprep.subr.mxu0 0.0
    %644 = vmatpush2.xpose.msra.mxu0 0.0
    %645 = vmatprep.subr.mxu0 0.0
    %646 = vmatpush2.xpose.msra.mxu0 0.0
    %647 = vmatprep.subr.mxu0 0.0
    %648 = vmatpush2.xpose.msra.mxu0 0.0
    %649 = vmatprep.subr.mxu0 0.0
    %650 = vmatpush2.xpose.msra.mxu0 0.0
    %651 = vmatprep.subr.mxu0 0.0
    %652 = vmatpush2.xpose.msra.mxu0 0.0
    %653 = vmatprep.subr.mxu0 0.0
    %654 = vmatpush2.xpose.msra.mxu0 0.0
    %655 = vmatprep.subr.mxu0 0.0
    %656 = vmatpush2.xpose.msra.mxu0 0.0
    %657 = vmatprep.subr.mxu0 0.0
    %658 = vmatpush2.xpose.msra.mxu0 0.0
    %659 = vmatprep.subr.mxu0 0.0
    %660 = vmatpush2.xpose.msra.mxu0 0.0
    %661 = vmatprep.mubr.f32.mxu0 0.0
    %662 = vmatmul.mubr.f32.gmra.mxu0 %v593
    %v663 = vpop.f32.mrf.mxu0
    %v664 = vadd.f32 0.0, %v663
    %v665 = vpop.f32.mrf.mxu0
    %666 = vdwg.mxu0
    %667 = vrot.lane.b32.xlu0 %v254, 96
    %v668 = vpop.permute.xlu0 %667
    %669 = vrot.lane.b32.xlu0 %v249, 32
    %v670 = vpop.permute.xlu0 %669
    %v671 = vsel %vm266, %v668, 0
    %v673 = vsel %vm266, %v670, 0
    %675 = vmatprep.subr.mxu0 0.0
    %676 = vmatpush1.xpose.msra.mxu0 0.0
    %677 = vmatprep.subr.mxu0 0.0
    %678 = vmatpush1.xpose.msra.mxu0 0.0
    %679 = vmatprep.subr.mxu0 0.0
    %680 = vmatpush1.xpose.msra.mxu0 0.0
    %681 = vmatprep.subr.mxu0 0.0
    %682 = vmatpush1.xpose.msra.mxu0 0.0
    %683 = vmatprep.subr.mxu0 0.0
    %684 = vmatpush1.xpose.msra.mxu0 0.0
    %685 = vmatprep.subr.mxu0 0.0
    %686 = vmatpush1.xpose.msra.mxu0 0.0
    %687 = vmatprep.subr.mxu0 0.0
    %688 = vmatpush1.xpose.msra.mxu0 0.0
    %689 = vmatprep.subr.mxu0 0.0
    %690 = vmatpush1.xpose.msra.mxu0 0.0
    %691 = vmatprep.subr.mxu0 0.0
    %692 = vmatpush1.xpose.msra.mxu0 0.0
    %693 = vmatprep.subr.mxu0 0.0
    %694 = vmatpush1.xpose.msra.mxu0 0.0
    %695 = vmatprep.subr.mxu0 0.0
    %696 = vmatpush1.xpose.msra.mxu0 0.0
    %697 = vmatprep.subr.mxu0 0.0
    %698 = vmatpush1.xpose.msra.mxu0 0.0
    %699 = vmatprep.subr.mxu0 0.0
    %700 = vmatpush1.xpose.msra.mxu0 0.0
    %701 = vmatprep.subr.mxu0 0.0
    %702 = vmatpush1.xpose.msra.mxu0 0.0
    %703 = vmatprep.subr.mxu0 0.0
    %704 = vmatpush1.xpose.msra.mxu0 0.0
    %705 = vmatprep.subr.mxu0 0.0
    %706 = vmatpush1.xpose.msra.mxu0 %v673
    %707 = vmatprep.subr.mxu0 0.0
    %708 = vmatpush2.xpose.msra.mxu0 0.0
    %709 = vmatprep.subr.mxu0 0.0
    %710 = vmatpush2.xpose.msra.mxu0 0.0
    %711 = vmatprep.subr.mxu0 0.0
    %712 = vmatpush2.xpose.msra.mxu0 0.0
    %713 = vmatprep.subr.mxu0 0.0
    %714 = vmatpush2.xpose.msra.mxu0 0.0
    %715 = vmatprep.subr.mxu0 0.0
    %716 = vmatpush2.xpose.msra.mxu0 0.0
    %717 = vmatprep.subr.mxu0 0.0
    %718 = vmatpush2.xpose.msra.mxu0 0.0
    %719 = vmatprep.subr.mxu0 0.0
    %720 = vmatpush2.xpose.msra.mxu0 0.0
    %721 = vmatprep.subr.mxu0 0.0
    %722 = vmatpush2.xpose.msra.mxu0 0.0
    %723 = vmatprep.subr.mxu0 0.0
    %724 = vmatpush2.xpose.msra.mxu0 0.0
    %725 = vmatprep.subr.mxu0 0.0
    %726 = vmatpush2.xpose.msra.mxu0 0.0
    %727 = vmatprep.subr.mxu0 0.0
    %728 = vmatpush2.xpose.msra.mxu0 0.0
    %729 = vmatprep.subr.mxu0 0.0
    %730 = vmatpush2.xpose.msra.mxu0 0.0
    %731 = vmatprep.subr.mxu0 0.0
    %732 = vmatpush2.xpose.msra.mxu0 0.0
    %733 = vmatprep.subr.mxu0 0.0
    %734 = vmatpush2.xpose.msra.mxu0 0.0
    %735 = vmatprep.subr.mxu0 0.0
    %736 = vmatpush2.xpose.msra.mxu0 0.0
    %737 = vmatprep.subr.mxu0 0.0
    %738 = vmatpush2.xpose.msra.mxu0 0.0
    %739 = vmatprep.mubr.f32.mxu0 0.0
    %740 = vmatmul.mubr.f32.gmra.mxu0 %v671
    %v741 = vpop.f32.mrf.mxu0
    %v742 = vadd.f32 0.0, %v741
    %v743 = vpop.f32.mrf.mxu0
    %744 = vdwg.mxu0
    %v745 = vsel %vm420, %v664, -inf
    %746 = vmax.xlane.f32.xlu0 %v745
    %v747 = vpop.xlane.xlu0 %746
    %v748 = vsel %vm420, %v742, -inf
    %749 = vmax.xlane.f32.xlu0 %v748
    %v750 = vpop.xlane.xlu0 %749
    %v751 = vsub.f32 %v664, %v747
    %v752 = vsub.f32 %v742, %v750
    %v753 = vmul.f32 %v751, 1.442695
    %v754 = vpow.pop %v753
    %v755 = vmul.f32 %v752, 1.442695
    %v756 = vpow.pop %v755
    %v757 = vsel %vm420, %v754, 0.0
    %758 = vadd.xlane.f32.xlu0 %v757
    %v759 = vpop.xlane.xlu0 %758
    %v760 = vsel %vm420, %v756, 0.0
    %761 = vadd.xlane.f32.xlu0 %v760
    %v762 = vpop.xlane.xlu0 %761
    %v763 = vrcp.pop %v759
    %v764 = vrcp.pop %v762
    %v765 = vmul.f32 %v754, %v763
    %v766 = vmul.f32 %v756, %v764
    %768 = vrot.lane.b32.xlu0 %v245, 96
    %v769 = vpop.permute.xlu0 %768
    %v772 = vsel %vm420, %v765, 0
    %774 = vmatprep.subr.mxu0 0.0
    %775 = vmatpush1.msra.mxu0 0.0
    %776 = vmatprep.subr.mxu0 0.0
    %777 = vmatpush1.msra.mxu0 0.0
    %778 = vmatprep.subr.mxu0 0.0
    %779 = vmatpush1.msra.mxu0 0.0
    %780 = vmatprep.subr.mxu0 0.0
    %781 = vmatpush1.msra.mxu0 0.0
    %782 = vmatprep.subr.mxu0 0.0
    %783 = vmatpush1.msra.mxu0 0.0
    %784 = vmatprep.subr.mxu0 0.0
    %785 = vmatpush1.msra.mxu0 0.0
    %786 = vmatprep.subr.mxu0 0.0
    %787 = vmatpush1.msra.mxu0 0.0
    %788 = vmatprep.subr.mxu0 0.0
    %789 = vmatpush1.msra.mxu0 0.0
    %790 = vmatprep.subr.mxu0 0.0
    %791 = vmatpush1.msra.mxu0 0.0
    %792 = vmatprep.subr.mxu0 0.0
    %793 = vmatpush1.msra.mxu0 0.0
    %794 = vmatprep.subr.mxu0 0.0
    %795 = vmatpush1.msra.mxu0 0.0
    %796 = vmatprep.subr.mxu0 0.0
    %797 = vmatpush1.msra.mxu0 0.0
    %798 = vmatprep.subr.mxu0 0.0
    %799 = vmatpush1.msra.mxu0 0.0
    %800 = vmatprep.subr.mxu0 0.0
    %801 = vmatpush1.msra.mxu0 0.0
    %802 = vmatprep.subr.mxu0 0.0
    %803 = vmatpush1.msra.mxu0 0.0
    %804 = vmatprep.subr.mxu0 0.0
    %805 = vmatpush1.msra.mxu0 %v769
    %806 = vmatprep.subr.mxu0 0.0
    %807 = vmatpush2.msra.mxu0 0.0
    %808 = vmatprep.subr.mxu0 0.0
    %809 = vmatpush2.msra.mxu0 0.0
    %810 = vmatprep.subr.mxu0 0.0
    %811 = vmatpush2.msra.mxu0 0.0
    %812 = vmatprep.subr.mxu0 0.0
    %813 = vmatpush2.msra.mxu0 0.0
    %814 = vmatprep.subr.mxu0 0.0
    %815 = vmatpush2.msra.mxu0 0.0
    %816 = vmatprep.subr.mxu0 0.0
    %817 = vmatpush2.msra.mxu0 0.0
    %818 = vmatprep.subr.mxu0 0.0
    %819 = vmatpush2.msra.mxu0 0.0
    %820 = vmatprep.subr.mxu0 0.0
    %821 = vmatpush2.msra.mxu0 0.0
    %822 = vmatprep.subr.mxu0 0.0
    %823 = vmatpush2.msra.mxu0 0.0
    %824 = vmatprep.subr.mxu0 0.0
    %825 = vmatpush2.msra.mxu0 0.0
    %826 = vmatprep.subr.mxu0 0.0
    %827 = vmatpush2.msra.mxu0 0.0
    %828 = vmatprep.subr.mxu0 0.0
    %829 = vmatpush2.msra.mxu0 0.0
    %830 = vmatprep.subr.mxu0 0.0
    %831 = vmatpush2.msra.mxu0 0.0
    %832 = vmatprep.subr.mxu0 0.0
    %833 = vmatpush2.msra.mxu0 0.0
    %834 = vmatprep.subr.mxu0 0.0
    %835 = vmatpush2.msra.mxu0 0.0
    %836 = vmatprep.subr.mxu0 0.0
    %837 = vmatpush2.msra.mxu0 0.0
    %838 = vmatprep.mubr.f32.mxu0 0.0
    %839 = vmatmul.mubr.f32.gmra.mxu0 %v772
    %v840 = vpop.f32.mrf.mxu0
    %v841 = vadd.f32 0.0, %v840
    %v842 = vpop.f32.mrf.mxu0
    %843 = vdwg.mxu0
    %845 = vrot.lane.b32.xlu0 %v251, 96
    %v846 = vpop.permute.xlu0 %845
    %v849 = vsel %vm420, %v766, 0
    %851 = vmatprep.subr.mxu0 0.0
    %852 = vmatpush1.msra.mxu0 0.0
    %853 = vmatprep.subr.mxu0 0.0
    %854 = vmatpush1.msra.mxu0 0.0
    %855 = vmatprep.subr.mxu0 0.0
    %856 = vmatpush1.msra.mxu0 0.0
    %857 = vmatprep.subr.mxu0 0.0
    %858 = vmatpush1.msra.mxu0 0.0
    %859 = vmatprep.subr.mxu0 0.0
    %860 = vmatpush1.msra.mxu0 0.0
    %861 = vmatprep.subr.mxu0 0.0
    %862 = vmatpush1.msra.mxu0 0.0
    %863 = vmatprep.subr.mxu0 0.0
    %864 = vmatpush1.msra.mxu0 0.0
    %865 = vmatprep.subr.mxu0 0.0
    %866 = vmatpush1.msra.mxu0 0.0
    %867 = vmatprep.subr.mxu0 0.0
    %868 = vmatpush1.msra.mxu0 0.0
    %869 = vmatprep.subr.mxu0 0.0
    %870 = vmatpush1.msra.mxu0 0.0
    %871 = vmatprep.subr.mxu0 0.0
    %872 = vmatpush1.msra.mxu0 0.0
    %873 = vmatprep.subr.mxu0 0.0
    %874 = vmatpush1.msra.mxu0 0.0
    %875 = vmatprep.subr.mxu0 0.0
    %876 = vmatpush1.msra.mxu0 0.0
    %877 = vmatprep.subr.mxu0 0.0
    %878 = vmatpush1.msra.mxu0 0.0
    %879 = vmatprep.subr.mxu0 0.0
    %880 = vmatpush1.msra.mxu0 0.0
    %881 = vmatprep.subr.mxu0 0.0
    %882 = vmatpush1.msra.mxu0 %v846
    %883 = vmatprep.subr.mxu0 0.0
    %884 = vmatpush2.msra.mxu0 0.0
    %885 = vmatprep.subr.mxu0 0.0
    %886 = vmatpush2.msra.mxu0 0.0
    %887 = vmatprep.subr.mxu0 0.0
    %888 = vmatpush2.msra.mxu0 0.0
    %889 = vmatprep.subr.mxu0 0.0
    %890 = vmatpush2.msra.mxu0 0.0
    %891 = vmatprep.subr.mxu0 0.0
    %892 = vmatpush2.msra.mxu0 0.0
    %893 = vmatprep.subr.mxu0 0.0
    %894 = vmatpush2.msra.mxu0 0.0
    %895 = vmatprep.subr.mxu0 0.0
    %896 = vmatpush2.msra.mxu0 0.0
    %897 = vmatprep.subr.mxu0 0.0
    %898 = vmatpush2.msra.mxu0 0.0
    %899 = vmatprep.subr.mxu0 0.0
    %900 = vmatpush2.msra.mxu0 0.0
    %901 = vmatprep.subr.mxu0 0.0
    %902 = vmatpush2.msra.mxu0 0.0
    %903 = vmatprep.subr.mxu0 0.0
    %904 = vmatpush2.msra.mxu0 0.0
    %905 = vmatprep.subr.mxu0 0.0
    %906 = vmatpush2.msra.mxu0 0.0
    %907 = vmatprep.subr.mxu0 0.0
    %908 = vmatpush2.msra.mxu0 0.0
    %909 = vmatprep.subr.mxu0 0.0
    %910 = vmatpush2.msra.mxu0 0.0
    %911 = vmatprep.subr.mxu0 0.0
    %912 = vmatpush2.msra.mxu0 0.0
    %913 = vmatprep.subr.mxu0 0.0
    %914 = vmatpush2.msra.mxu0 0.0
    %915 = vmatprep.mubr.f32.mxu0 0.0
    %916 = vmatmul.mubr.f32.gmra.mxu0 %v849
    %v917 = vpop.f32.mrf.mxu0
    %v918 = vadd.f32 0.0, %v917
    %v919 = vpop.f32.mrf.mxu0
    %920 = vdwg.mxu0
    %v922 = vsel %vm266, %v841, 0
    %v925 = vsel %vm266, %v918, 0
    %927 = vmatprep.subr.mxu0 0.0
    %928 = vmatpush1.msra.mxu0 0.0
    %929 = vmatprep.subr.mxu0 0.0
    %930 = vmatpush1.msra.mxu0 0.0
    %931 = vmatprep.subr.mxu0 0.0
    %932 = vmatpush1.msra.mxu0 0.0
    %933 = vmatprep.subr.mxu0 0.0
    %934 = vmatpush1.msra.mxu0 0.0
    %935 = vmatprep.subr.mxu0 0.0
    %936 = vmatpush1.msra.mxu0 0.0
    %937 = vmatprep.subr.mxu0 0.0
    %938 = vmatpush1.msra.mxu0 0.0
    %939 = vmatprep.subr.mxu0 0.0
    %940 = vmatpush1.msra.mxu0 0.0
    %941 = vmatprep.subr.mxu0 0.0
    %942 = vmatpush1.msra.mxu0 0.0
    %943 = vmatprep.subr.mxu0 0.0
    %944 = vmatpush1.msra.mxu0 0.0
    %945 = vmatprep.subr.mxu0 0.0
    %946 = vmatpush1.msra.mxu0 0.0
    %947 = vmatprep.subr.mxu0 0.0
    %948 = vmatpush1.msra.mxu0 0.0
    %949 = vmatprep.subr.mxu0 0.0
    %950 = vmatpush1.msra.mxu0 0.0
    %951 = vmatprep.subr.mxu0 0.0
    %952 = vmatpush1.msra.mxu0 %v262
    %953 = vmatprep.subr.mxu0 0.0
    %954 = vmatpush1.msra.mxu0 %v261
    %955 = vmatprep.subr.mxu0 0.0
    %956 = vmatpush1.msra.mxu0 %v260
    %957 = vmatprep.subr.mxu0 0.0
    %958 = vmatpush1.msra.mxu0 %v259
    %959 = vmatprep.subr.mxu0 0.0
    %960 = vmatpush2.msra.mxu0 0.0
    %961 = vmatprep.subr.mxu0 0.0
    %962 = vmatpush2.msra.mxu0 0.0
    %963 = vmatprep.subr.mxu0 0.0
    %964 = vmatpush2.msra.mxu0 0.0
    %965 = vmatprep.subr.mxu0 0.0
    %966 = vmatpush2.msra.mxu0 0.0
    %967 = vmatprep.subr.mxu0 0.0
    %968 = vmatpush2.msra.mxu0 0.0
    %969 = vmatprep.subr.mxu0 0.0
    %970 = vmatpush2.msra.mxu0 0.0
    %971 = vmatprep.subr.mxu0 0.0
    %972 = vmatpush2.msra.mxu0 0.0
    %973 = vmatprep.subr.mxu0 0.0
    %974 = vmatpush2.msra.mxu0 0.0
    %975 = vmatprep.subr.mxu0 0.0
    %976 = vmatpush2.msra.mxu0 0.0
    %977 = vmatprep.subr.mxu0 0.0
    %978 = vmatpush2.msra.mxu0 0.0
    %979 = vmatprep.subr.mxu0 0.0
    %980 = vmatpush2.msra.mxu0 0.0
    %981 = vmatprep.subr.mxu0 0.0
    %982 = vmatpush2.msra.mxu0 0.0
    %983 = vmatprep.subr.mxu0 0.0
    %984 = vmatpush2.msra.mxu0 0.0
    %985 = vmatprep.subr.mxu0 0.0
    %986 = vmatpush2.msra.mxu0 0.0
    %987 = vmatprep.subr.mxu0 0.0
    %988 = vmatpush2.msra.mxu0 0.0
    %989 = vmatprep.subr.mxu0 0.0
    %990 = vmatpush2.msra.mxu0 0.0
    %991 = vmatprep.mubr.f32.mxu0 0.0
    %992 = vmatmul.mubr.f32.gmra.mxu0 %v922
    %v993 = vpop.f32.mrf.mxu0
    %v994 = vadd.f32 0.0, %v993
    %v995 = vpop.f32.mrf.mxu0
    %996 = vmatprep.mubr.f32.mxu0 0.0
    %997 = vmatmul.mubr.f32.gmra.mxu0 %v925
    %v998 = vpop.f32.mrf.mxu0
    %v999 = vadd.f32 0.0, %v998
    %v1000 = vpop.f32.mrf.mxu0
    %1001 = vdwg.mxu0
    %v1003 = vsel %vm266, %v513, 0
    %v1006 = vsel %vm266, %v586, 0
    %1008 = vmatprep.subr.mxu0 0.0
    %1009 = vmatpush1.msra.mxu0 0.0
    %1010 = vmatprep.subr.mxu0 0.0
    %1011 = vmatpush1.msra.mxu0 0.0
    %1012 = vmatprep.subr.mxu0 0.0
    %1013 = vmatpush1.msra.mxu0 0.0
    %1014 = vmatprep.subr.mxu0 0.0
    %1015 = vmatpush1.msra.mxu0 0.0
    %1016 = vmatprep.subr.mxu0 0.0
    %1017 = vmatpush1.msra.mxu0 0.0
    %1018 = vmatprep.subr.mxu0 0.0
    %1019 = vmatpush1.msra.mxu0 0.0
    %1020 = vmatprep.subr.mxu0 0.0
    %1021 = vmatpush1.msra.mxu0 0.0
    %1022 = vmatprep.subr.mxu0 0.0
    %1023 = vmatpush1.msra.mxu0 0.0
    %1024 = vmatprep.subr.mxu0 0.0
    %1025 = vmatpush1.msra.mxu0 0.0
    %1026 = vmatprep.subr.mxu0 0.0
    %1027 = vmatpush1.msra.mxu0 0.0
    %1028 = vmatprep.subr.mxu0 0.0
    %1029 = vmatpush1.msra.mxu0 0.0
    %1030 = vmatprep.subr.mxu0 0.0
    %1031 = vmatpush1.msra.mxu0 0.0
    %1032 = vmatprep.subr.mxu0 0.0
    %1033 = vmatpush1.msra.mxu0 %v258
    %1034 = vmatprep.subr.mxu0 0.0
    %1035 = vmatpush1.msra.mxu0 %v257
    %1036 = vmatprep.subr.mxu0 0.0
    %1037 = vmatpush1.msra.mxu0 %v256
    %1038 = vmatprep.subr.mxu0 0.0
    %1039 = vmatpush1.msra.mxu0 %v255
    %1040 = vmatprep.subr.mxu0 0.0
    %1041 = vmatpush2.msra.mxu0 0.0
    %1042 = vmatprep.subr.mxu0 0.0
    %1043 = vmatpush2.msra.mxu0 0.0
    %1044 = vmatprep.subr.mxu0 0.0
    %1045 = vmatpush2.msra.mxu0 0.0
    %1046 = vmatprep.subr.mxu0 0.0
    %1047 = vmatpush2.msra.mxu0 0.0
    %1048 = vmatprep.subr.mxu0 0.0
    %1049 = vmatpush2.msra.mxu0 0.0
    %1050 = vmatprep.subr.mxu0 0.0
    %1051 = vmatpush2.msra.mxu0 0.0
    %1052 = vmatprep.subr.mxu0 0.0
    %1053 = vmatpush2.msra.mxu0 0.0
    %1054 = vmatprep.subr.mxu0 0.0
    %1055 = vmatpush2.msra.mxu0 0.0
    %1056 = vmatprep.subr.mxu0 0.0
    %1057 = vmatpush2.msra.mxu0 0.0
    %1058 = vmatprep.subr.mxu0 0.0
    %1059 = vmatpush2.msra.mxu0 0.0
    %1060 = vmatprep.subr.mxu0 0.0
    %1061 = vmatpush2.msra.mxu0 0.0
    %1062 = vmatprep.subr.mxu0 0.0
    %1063 = vmatpush2.msra.mxu0 0.0
    %1064 = vmatprep.subr.mxu0 0.0
    %1065 = vmatpush2.msra.mxu0 0.0
    %1066 = vmatprep.subr.mxu0 0.0
    %1067 = vmatpush2.msra.mxu0 0.0
    %1068 = vmatprep.subr.mxu0 0.0
    %1069 = vmatpush2.msra.mxu0 0.0
    %1070 = vmatprep.subr.mxu0 0.0
    %1071 = vmatpush2.msra.mxu0 0.0
    %1072 = vmatprep.mubr.f32.mxu0 0.0
    %1073 = vmatmul.mubr.f32.gmra.mxu0 %v1003
    %v1074 = vpop.f32.mrf.mxu0
    %v1075 = vadd.f32 %v994, %v1074
    %v1076 = vpop.f32.mrf.mxu0
    %1077 = vmatprep.mubr.f32.mxu0 0.0
    %1078 = vmatmul.mubr.f32.gmra.mxu0 %v1006
    %v1079 = vpop.f32.mrf.mxu0
    %v1080 = vadd.f32 %v999, %v1079
    %v1081 = vpop.f32.mrf.mxu0
    %1082 = vdwg.mxu0
    %v1083 = vld [vmem:[%s7] sm:$0x1]
    %v1085 = vlaneseq
    %v1086 = vshrl.u32 %v1085, 7
    %v1087 = vsub.s32 0, %v1086
    %v1088 = vrot.slane %v1083, %v1087
    %v1090 = vadd.f32 %v1075, %v1088
    %v1091 = vadd.f32 %v1080, %v1088
    %v1092 = vld [vmem:[%s12] sm:$0xf]
    %v1093 = vadd.f32 %v133, %v1090
    %v1094 = vadd.f32 %v138, %v1091
    %v1095 = vsel %vm169, %v1093, 0.0
    %1096 = vadd.xlane.f32.xlu0 %v1095
    %v1097 = vpop.xlane.xlu0 %1096
    %v1098 = vsel %vm169, %v1094, 0.0
    %1099 = vadd.xlane.f32.xlu0 %v1098
    %v1100 = vpop.xlane.xlu0 %1099
    %v1101 = vrcp.pop 64.0
    %v1102 = vmul.f32 %v1097, %v1101
    %v1103 = vmul.f32 %v1100, %v1101
    %v1104 = vsub.f32 %v1093, %v1102
    %v1105 = vsub.f32 %v1094, %v1103
    %v1106 = vmul.f32 %v1104, %v1104
    %v1107 = vmul.f32 %v1105, %v1105
    %v1108 = vsel %vm169, %v1106, 0.0
    %1109 = vadd.xlane.f32.xlu0 %v1108
    %v1110 = vpop.xlane.xlu0 %1109
    %v1111 = vsel %vm169, %v1107, 0.0
    %1112 = vadd.xlane.f32.xlu0 %v1111
    %v1113 = vpop.xlane.xlu0 %1112
    %v1114 = vmul.f32 %v1110, %v1101
    %v1115 = vmul.f32 %v1113, %v1101
    %v1116 = vadd.f32 %v1114, 1e-05
    %v1117 = vadd.f32 %v1115, 1e-05
    %v1118 = vrsqrt.pop %v1116
    %v1119 = vrsqrt.pop %v1117
    %v1120 = vmul.f32 %v1104, %v1118
    %v1121 = vmul.f32 %v1105, %v1119
    %v1122 = vlaneseq
    %v1123 = vshrl.u32 %v1122, 7
    %v1124 = vsub.s32 0, %v1123
    %v1125 = vrot.slane %v1092, %v1124
    %v1126 = vmul.f32 %v1120, %v1125
    %v1127 = vmul.f32 %v1121, %v1125
    %v1128 = vlaneseq
    %v1129 = vshrl.u32 %v1128, 7
    %v1130 = vsub.s32 1, %v1129
    %v1131 = vrot.slane %v1092, %v1130
    %v1132 = vadd.f32 %v1126, %v1131
    %v1133 = vadd.f32 %v1127, %v1131
    %v1134 = vld [vmem:[%s8] sm:$0xff]
    %v1135 = vld [vmem:[%s8 + $0x8] sm:$0xff]
    %v1136 = vld [vmem:[%s8 + $0x10] sm:$0xff]
    %v1137 = vld [vmem:[%s8 + $0x18] sm:$0xff]
    %v1138 = vld [vmem:[%s8 + $0x20] sm:$0xff]
    %v1139 = vld [vmem:[%s8 + $0x28] sm:$0xff]
    %v1140 = vld [vmem:[%s8 + $0x30] sm:$0xff]
    %v1141 = vld [vmem:[%s8 + $0x38] sm:$0xff]
    %v1142 = vld [vmem:[%s8 + $0x40] sm:$0xff]
    %v1143 = vld [vmem:[%s8 + $0x48] sm:$0xff]
    %v1144 = vld [vmem:[%s8 + $0x50] sm:$0xff]
    %v1145 = vld [vmem:[%s8 + $0x58] sm:$0xff]
    %v1146 = vld [vmem:[%s8 + $0x60] sm:$0xff]
    %v1147 = vld [vmem:[%s8 + $0x68] sm:$0xff]
    %v1148 = vld [vmem:[%s8 + $0x70] sm:$0xff]
    %v1149 = vld [vmem:[%s8 + $0x78] sm:$0xff]
    %v1150 = vld [vmem:[%s9] sm:$0x3]
    %v1152 = vlaneseq
    %v1153 = vshrl.u32 %v1152, 7
    %v1154 = vsub.s32 0, %v1153
    %v1155 = vrot.slane %v1150, %v1154
    %v1156 = vlaneseq
    %v1157 = vshrl.u32 %v1156, 7
    %v1158 = vsub.s32 1, %v1157
    %v1159 = vrot.slane %v1150, %v1158
    %v1163 = vsel %vm169, %v1132, 0
    %v1166 = vsel %vm169, %v1133, 0
    %1168 = vmatprep.subr.mxu0 0.0
    %1169 = vmatpush1.msra.mxu0 0.0
    %1170 = vmatprep.subr.mxu0 0.0
    %1171 = vmatpush1.msra.mxu0 0.0
    %1172 = vmatprep.subr.mxu0 0.0
    %1173 = vmatpush1.msra.mxu0 0.0
    %1174 = vmatprep.subr.mxu0 0.0
    %1175 = vmatpush1.msra.mxu0 0.0
    %1176 = vmatprep.subr.mxu0 0.0
    %1177 = vmatpush1.msra.mxu0 0.0
    %1178 = vmatprep.subr.mxu0 0.0
    %1179 = vmatpush1.msra.mxu0 0.0
    %1180 = vmatprep.subr.mxu0 0.0
    %1181 = vmatpush1.msra.mxu0 0.0
    %1182 = vmatprep.subr.mxu0 0.0
    %1183 = vmatpush1.msra.mxu0 0.0
    %1184 = vmatprep.subr.mxu0 %v1149
    %1185 = vmatpush1.msra.mxu0 %v1148
    %1186 = vmatprep.subr.mxu0 %v1147
    %1187 = vmatpush1.msra.mxu0 %v1146
    %1188 = vmatprep.subr.mxu0 %v1145
    %1189 = vmatpush1.msra.mxu0 %v1144
    %1190 = vmatprep.subr.mxu0 %v1143
    %1191 = vmatpush1.msra.mxu0 %v1142
    %1192 = vmatprep.subr.mxu0 %v1141
    %1193 = vmatpush1.msra.mxu0 %v1140
    %1194 = vmatprep.subr.mxu0 %v1139
    %1195 = vmatpush1.msra.mxu0 %v1138
    %1196 = vmatprep.subr.mxu0 %v1137
    %1197 = vmatpush1.msra.mxu0 %v1136
    %1198 = vmatprep.subr.mxu0 %v1135
    %1199 = vmatpush1.msra.mxu0 %v1134
    %1200 = vmatprep.subr.mxu0 0.0
    %1201 = vmatpush2.msra.mxu0 0.0
    %1202 = vmatprep.subr.mxu0 0.0
    %1203 = vmatpush2.msra.mxu0 0.0
    %1204 = vmatprep.subr.mxu0 0.0
    %1205 = vmatpush2.msra.mxu0 0.0
    %1206 = vmatprep.subr.mxu0 0.0
    %1207 = vmatpush2.msra.mxu0 0.0
    %1208 = vmatprep.subr.mxu0 0.0
    %1209 = vmatpush2.msra.mxu0 0.0
    %1210 = vmatprep.subr.mxu0 0.0
    %1211 = vmatpush2.msra.mxu0 0.0
    %1212 = vmatprep.subr.mxu0 0.0
    %1213 = vmatpush2.msra.mxu0 0.0
    %1214 = vmatprep.subr.mxu0 0.0
    %1215 = vmatpush2.msra.mxu0 0.0
    %1216 = vmatprep.subr.mxu0 0.0
    %1217 = vmatpush2.msra.mxu0 0.0
    %1218 = vmatprep.subr.mxu0 0.0
    %1219 = vmatpush2.msra.mxu0 0.0
    %1220 = vmatprep.subr.mxu0 0.0
    %1221 = vmatpush2.msra.mxu0 0.0
    %1222 = vmatprep.subr.mxu0 0.0
    %1223 = vmatpush2.msra.mxu0 0.0
    %1224 = vmatprep.subr.mxu0 0.0
    %1225 = vmatpush2.msra.mxu0 0.0
    %1226 = vmatprep.subr.mxu0 0.0
    %1227 = vmatpush2.msra.mxu0 0.0
    %1228 = vmatprep.subr.mxu0 0.0
    %1229 = vmatpush2.msra.mxu0 0.0
    %1230 = vmatprep.subr.mxu0 0.0
    %1231 = vmatpush2.msra.mxu0 0.0
    %1232 = vmatprep.mubr.f32.mxu0 0.0
    %1233 = vmatmul.mubr.f32.gmra.mxu0 %v1163
    %v1234 = vpop.f32.mrf.mxu0
    %v1235 = vadd.f32 %v1155, %v1234
    %v1236 = vpop.f32.mrf.mxu0
    %v1237 = vadd.f32 %v1159, %v1236
    %1238 = vmatprep.mubr.f32.mxu0 0.0
    %1239 = vmatmul.mubr.f32.gmra.mxu0 %v1166
    %v1240 = vpop.f32.mrf.mxu0
    %v1241 = vadd.f32 %v1155, %v1240
    %v1242 = vpop.f32.mrf.mxu0
    %v1243 = vadd.f32 %v1159, %v1242
    %1244 = vdwg.mxu0
    %v1245 = vmax.f32 %v1235, 0.0
    %v1246 = vmax.f32 %v1237, 0.0
    %v1247 = vmax.f32 %v1241, 0.0
    %v1248 = vmax.f32 %v1243, 0.0
    %v1249 = vld [vmem:[%s10] sm:$0xff]
    %v1250 = vld [vmem:[%s10 + $0x8] sm:$0xff]
    %v1251 = vld [vmem:[%s10 + $0x10] sm:$0xff]
    %v1252 = vld [vmem:[%s10 + $0x18] sm:$0xff]
    %v1253 = vld [vmem:[%s10 + $0x20] sm:$0xff]
    %v1254 = vld [vmem:[%s10 + $0x28] sm:$0xff]
    %v1255 = vld [vmem:[%s10 + $0x30] sm:$0xff]
    %v1256 = vld [vmem:[%s10 + $0x38] sm:$0xff]
    %v1257 = vld [vmem:[%s10 + $0x40] sm:$0xff]
    %v1258 = vld [vmem:[%s10 + $0x48] sm:$0xff]
    %v1259 = vld [vmem:[%s10 + $0x50] sm:$0xff]
    %v1260 = vld [vmem:[%s10 + $0x58] sm:$0xff]
    %v1261 = vld [vmem:[%s10 + $0x60] sm:$0xff]
    %v1262 = vld [vmem:[%s10 + $0x68] sm:$0xff]
    %v1263 = vld [vmem:[%s10 + $0x70] sm:$0xff]
    %v1264 = vld [vmem:[%s10 + $0x78] sm:$0xff]
    %v1265 = vld [vmem:[%s10 + $0x80] sm:$0xff]
    %v1266 = vld [vmem:[%s10 + $0x88] sm:$0xff]
    %v1267 = vld [vmem:[%s10 + $0x90] sm:$0xff]
    %v1268 = vld [vmem:[%s10 + $0x98] sm:$0xff]
    %v1269 = vld [vmem:[%s10 + $0xa0] sm:$0xff]
    %v1270 = vld [vmem:[%s10 + $0xa8] sm:$0xff]
    %v1271 = vld [vmem:[%s10 + $0xb0] sm:$0xff]
    %v1272 = vld [vmem:[%s10 + $0xb8] sm:$0xff]
    %v1273 = vld [vmem:[%s10 + $0xc0] sm:$0xff]
    %v1274 = vld [vmem:[%s10 + $0xc8] sm:$0xff]
    %v1275 = vld [vmem:[%s10 + $0xd0] sm:$0xff]
    %v1276 = vld [vmem:[%s10 + $0xd8] sm:$0xff]
    %v1277 = vld [vmem:[%s10 + $0xe0] sm:$0xff]
    %v1278 = vld [vmem:[%s10 + $0xe8] sm:$0xff]
    %v1279 = vld [vmem:[%s10 + $0xf0] sm:$0xff]
    %v1280 = vld [vmem:[%s10 + $0xf8] sm:$0xff]
    %v1281 = vld [vmem:[%s11] sm:$0x1]
    %v1283 = vlaneseq
    %v1284 = vshrl.u32 %v1283, 7
    %v1285 = vsub.s32 0, %v1284
    %v1286 = vrot.slane %v1281, %v1285
    %1288 = vmatprep.subr.mxu0 0.0
    %1289 = vmatpush1.msra.mxu0 %v1264
    %1290 = vmatprep.subr.mxu0 0.0
    %1291 = vmatpush1.msra.mxu0 %v1263
    %1292 = vmatprep.subr.mxu0 0.0
    %1293 = vmatpush1.msra.mxu0 %v1262
    %1294 = vmatprep.subr.mxu0 0.0
    %1295 = vmatpush1.msra.mxu0 %v1261
    %1296 = vmatprep.subr.mxu0 0.0
    %1297 = vmatpush1.msra.mxu0 %v1260
    %1298 = vmatprep.subr.mxu0 0.0
    %1299 = vmatpush1.msra.mxu0 %v1259
    %1300 = vmatprep.subr.mxu0 0.0
    %1301 = vmatpush1.msra.mxu0 %v1258
    %1302 = vmatprep.subr.mxu0 0.0
    %1303 = vmatpush1.msra.mxu0 %v1257
    %1304 = vmatprep.subr.mxu0 0.0
    %1305 = vmatpush1.msra.mxu0 %v1256
    %1306 = vmatprep.subr.mxu0 0.0
    %1307 = vmatpush1.msra.mxu0 %v1255
    %1308 = vmatprep.subr.mxu0 0.0
    %1309 = vmatpush1.msra.mxu0 %v1254
    %1310 = vmatprep.subr.mxu0 0.0
    %1311 = vmatpush1.msra.mxu0 %v1253
    %1312 = vmatprep.subr.mxu0 0.0
    %1313 = vmatpush1.msra.mxu0 %v1252
    %1314 = vmatprep.subr.mxu0 0.0
    %1315 = vmatpush1.msra.mxu0 %v1251
    %1316 = vmatprep.subr.mxu0 0.0
    %1317 = vmatpush1.msra.mxu0 %v1250
    %1318 = vmatprep.subr.mxu0 0.0
    %1319 = vmatpush1.msra.mxu0 %v1249
    %1320 = vmatprep.subr.mxu0 0.0
    %1321 = vmatpush2.msra.mxu0 %v1280
    %1322 = vmatprep.subr.mxu0 0.0
    %1323 = vmatpush2.msra.mxu0 %v1279
    %1324 = vmatprep.subr.mxu0 0.0
    %1325 = vmatpush2.msra.mxu0 %v1278
    %1326 = vmatprep.subr.mxu0 0.0
    %1327 = vmatpush2.msra.mxu0 %v1277
    %1328 = vmatprep.subr.mxu0 0.0
    %1329 = vmatpush2.msra.mxu0 %v1276
    %1330 = vmatprep.subr.mxu0 0.0
    %1331 = vmatpush2.msra.mxu0 %v1275
    %1332 = vmatprep.subr.mxu0 0.0
    %1333 = vmatpush2.msra.mxu0 %v1274
    %1334 = vmatprep.subr.mxu0 0.0
    %1335 = vmatpush2.msra.mxu0 %v1273
    %1336 = vmatprep.subr.mxu0 0.0
    %1337 = vmatpush2.msra.mxu0 %v1272
    %1338 = vmatprep.subr.mxu0 0.0
    %1339 = vmatpush2.msra.mxu0 %v1271
    %1340 = vmatprep.subr.mxu0 0.0
    %1341 = vmatpush2.msra.mxu0 %v1270
    %1342 = vmatprep.subr.mxu0 0.0
    %1343 = vmatpush2.msra.mxu0 %v1269
    %1344 = vmatprep.subr.mxu0 0.0
    %1345 = vmatpush2.msra.mxu0 %v1268
    %1346 = vmatprep.subr.mxu0 0.0
    %1347 = vmatpush2.msra.mxu0 %v1267
    %1348 = vmatprep.subr.mxu0 0.0
    %1349 = vmatpush2.msra.mxu0 %v1266
    %1350 = vmatprep.subr.mxu0 0.0
    %1351 = vmatpush2.msra.mxu0 %v1265
    %1352 = vmatprep.mubr.f32.mxu0 %v1246
    %1353 = vmatmul.mubr.f32.gmra.mxu0 %v1245
    %v1354 = vpop.f32.mrf.mxu0
    %v1355 = vadd.f32 %v1286, %v1354
    %v1356 = vpop.f32.mrf.mxu0
    %1357 = vmatprep.mubr.f32.mxu0 %v1248
    %1358 = vmatmul.mubr.f32.gmra.mxu0 %v1247
    %v1359 = vpop.f32.mrf.mxu0
    %v1360 = vadd.f32 %v1286, %v1359
    %v1361 = vpop.f32.mrf.mxu0
    %1362 = vdwg.mxu0
    %v1363 = vadd.f32 %v1132, %v1355
    %v1364 = vadd.f32 %v1133, %v1360
    %v1365 = vsel %vm169, %v1363, 0.0
    %1366 = vadd.xlane.f32.xlu0 %v1365
    %v1367 = vpop.xlane.xlu0 %1366
    %v1368 = vsel %vm169, %v1364, 0.0
    %1369 = vadd.xlane.f32.xlu0 %v1368
    %v1370 = vpop.xlane.xlu0 %1369
    %v1371 = vmul.f32 %v1367, %v1101
    %v1372 = vmul.f32 %v1370, %v1101
    %v1373 = vsub.f32 %v1363, %v1371
    %v1374 = vsub.f32 %v1364, %v1372
    %v1375 = vmul.f32 %v1373, %v1373
    %v1376 = vmul.f32 %v1374, %v1374
    %v1377 = vsel %vm169, %v1375, 0.0
    %1378 = vadd.xlane.f32.xlu0 %v1377
    %v1379 = vpop.xlane.xlu0 %1378
    %v1380 = vsel %vm169, %v1376, 0.0
    %1381 = vadd.xlane.f32.xlu0 %v1380
    %v1382 = vpop.xlane.xlu0 %1381
    %v1383 = vmul.f32 %v1379, %v1101
    %v1384 = vmul.f32 %v1382, %v1101
    %v1385 = vadd.f32 %v1383, 1e-05
    %v1386 = vadd.f32 %v1384, 1e-05
    %v1387 = vrsqrt.pop %v1385
    %v1388 = vrsqrt.pop %v1386
    %v1389 = vmul.f32 %v1373, %v1387
    %v1390 = vmul.f32 %v1374, %v1388
    %v1391 = vlaneseq
    %v1392 = vshrl.u32 %v1391, 7
    %v1393 = vsub.s32 2, %v1392
    %v1394 = vrot.slane %v1092, %v1393
    %v1395 = vmul.f32 %v1389, %v1394
    %v1396 = vmul.f32 %v1390, %v1394
    %v1397 = vlaneseq
    %v1398 = vshrl.u32 %v1397, 7
    %v1399 = vsub.s32 3, %v1398
    %v1400 = vrot.slane %v1092, %v1399
    %v1401 = vadd.f32 %v1395, %v1400
    %v1402 = vadd.f32 %v1396, %v1400
    %s1403 = scalar_lea.vmem %s4, 128
    %v1404 = vld [vmem:[%s1403] sm:$0xff]
    %v1405 = vld [vmem:[%s1403 + $0x8] sm:$0xff]
    %v1406 = vld [vmem:[%s1403 + $0x10] sm:$0xff]
    %v1407 = vld [vmem:[%s1403 + $0x18] sm:$0xff]
    %v1408 = vld [vmem:[%s1403 + $0x20] sm:$0xff]
    %v1409 = vld [vmem:[%s1403 + $0x28] sm:$0xff]
    %v1410 = vld [vmem:[%s1403 + $0x30] sm:$0xff]
    %v1411 = vld [vmem:[%s1403 + $0x38] sm:$0xff]
    %v1412 = vld [vmem:[%s1403 + $0x40] sm:$0xff]
    %v1413 = vld [vmem:[%s1403 + $0x48] sm:$0xff]
    %v1414 = vld [vmem:[%s1403 + $0x50] sm:$0xff]
    %v1415 = vld [vmem:[%s1403 + $0x58] sm:$0xff]
    %v1416 = vld [vmem:[%s1403 + $0x60] sm:$0xff]
    %v1417 = vld [vmem:[%s1403 + $0x68] sm:$0xff]
    %v1418 = vld [vmem:[%s1403 + $0x70] sm:$0xff]
    %v1419 = vld [vmem:[%s1403 + $0x78] sm:$0xff]
    %s1420 = scalar_lea.vmem %s5, 2
    %v1421 = vld [vmem:[%s1420] sm:$0x3]
    %v1423 = vlaneseq
    %v1424 = vshrl.u32 %v1423, 7
    %v1425 = vsub.s32 0, %v1424
    %v1426 = vrot.slane %v1421, %v1425
    %v1427 = vlaneseq
    %v1428 = vshrl.u32 %v1427, 7
    %v1429 = vsub.s32 1, %v1428
    %v1430 = vrot.slane %v1421, %v1429
    %v1434 = vsel %vm169, %v1401, 0
    %v1437 = vsel %vm169, %v1402, 0
    %1439 = vmatprep.subr.mxu0 0.0
    %1440 = vmatpush1.msra.mxu0 0.0
    %1441 = vmatprep.subr.mxu0 0.0
    %1442 = vmatpush1.msra.mxu0 0.0
    %1443 = vmatprep.subr.mxu0 0.0
    %1444 = vmatpush1.msra.mxu0 0.0
    %1445 = vmatprep.subr.mxu0 0.0
    %1446 = vmatpush1.msra.mxu0 0.0
    %1447 = vmatprep.subr.mxu0 0.0
    %1448 = vmatpush1.msra.mxu0 0.0
    %1449 = vmatprep.subr.mxu0 0.0
    %1450 = vmatpush1.msra.mxu0 0.0
    %1451 = vmatprep.subr.mxu0 0.0
    %1452 = vmatpush1.msra.mxu0 0.0
    %1453 = vmatprep.subr.mxu0 0.0
    %1454 = vmatpush1.msra.mxu0 0.0
    %1455 = vmatprep.subr.mxu0 %v1419
    %1456 = vmatpush1.msra.mxu0 %v1418
    %1457 = vmatprep.subr.mxu0 %v1417
    %1458 = vmatpush1.msra.mxu0 %v1416
    %1459 = vmatprep.subr.mxu0 %v1415
    %1460 = vmatpush1.msra.mxu0 %v1414
    %1461 = vmatprep.subr.mxu0 %v1413
    %1462 = vmatpush1.msra.mxu0 %v1412
    %1463 = vmatprep.subr.mxu0 %v1411
    %1464 = vmatpush1.msra.mxu0 %v1410
    %1465 = vmatprep.subr.mxu0 %v1409
    %1466 = vmatpush1.msra.mxu0 %v1408
    %1467 = vmatprep.subr.mxu0 %v1407
    %1468 = vmatpush1.msra.mxu0 %v1406
    %1469 = vmatprep.subr.mxu0 %v1405
    %1470 = vmatpush1.msra.mxu0 %v1404
    %1471 = vmatprep.subr.mxu0 0.0
    %1472 = vmatpush2.msra.mxu0 0.0
    %1473 = vmatprep.subr.mxu0 0.0
    %1474 = vmatpush2.msra.mxu0 0.0
    %1475 = vmatprep.subr.mxu0 0.0
    %1476 = vmatpush2.msra.mxu0 0.0
    %1477 = vmatprep.subr.mxu0 0.0
    %1478 = vmatpush2.msra.mxu0 0.0
    %1479 = vmatprep.subr.mxu0 0.0
    %1480 = vmatpush2.msra.mxu0 0.0
    %1481 = vmatprep.subr.mxu0 0.0
    %1482 = vmatpush2.msra.mxu0 0.0
    %1483 = vmatprep.subr.mxu0 0.0
    %1484 = vmatpush2.msra.mxu0 0.0
    %1485 = vmatprep.subr.mxu0 0.0
    %1486 = vmatpush2.msra.mxu0 0.0
    %1487 = vmatprep.subr.mxu0 0.0
    %1488 = vmatpush2.msra.mxu0 0.0
    %1489 = vmatprep.subr.mxu0 0.0
    %1490 = vmatpush2.msra.mxu0 0.0
    %1491 = vmatprep.subr.mxu0 0.0
    %1492 = vmatpush2.msra.mxu0 0.0
    %1493 = vmatprep.subr.mxu0 0.0
    %1494 = vmatpush2.msra.mxu0 0.0
    %1495 = vmatprep.subr.mxu0 0.0
    %1496 = vmatpush2.msra.mxu0 0.0
    %1497 = vmatprep.subr.mxu0 0.0
    %1498 = vmatpush2.msra.mxu0 0.0
    %1499 = vmatprep.subr.mxu0 0.0
    %1500 = vmatpush2.msra.mxu0 0.0
    %1501 = vmatprep.subr.mxu0 0.0
    %1502 = vmatpush2.msra.mxu0 0.0
    %1503 = vmatprep.mubr.f32.mxu0 0.0
    %1504 = vmatmul.mubr.f32.gmra.mxu0 %v1434
    %v1505 = vpop.f32.mrf.mxu0
    %v1506 = vadd.f32 %v1426, %v1505
    %v1507 = vpop.f32.mrf.mxu0
    %v1508 = vadd.f32 %v1430, %v1507
    %1509 = vmatprep.mubr.f32.mxu0 0.0
    %1510 = vmatmul.mubr.f32.gmra.mxu0 %v1437
    %v1511 = vpop.f32.mrf.mxu0
    %v1512 = vadd.f32 %v1426, %v1511
    %v1513 = vpop.f32.mrf.mxu0
    %v1514 = vadd.f32 %v1430, %v1513
    %1515 = vdwg.mxu0
    %v1516 = vmul.f32 %v1506, 0.17677669
    %v1517 = vmul.f32 %v1512, 0.17677669
    %s1518 = scalar_lea.vmem %s6, 64
    %v1519 = vld [vmem:[%s1518] sm:$0xff]
    %v1520 = vld [vmem:[%s1518 + $0x8] sm:$0xff]
    %v1521 = vld [vmem:[%s1518 + $0x10] sm:$0xff]
    %v1522 = vld [vmem:[%s1518 + $0x18] sm:$0xff]
    %v1523 = vld [vmem:[%s1518 + $0x20] sm:$0xff]
    %v1524 = vld [vmem:[%s1518 + $0x28] sm:$0xff]
    %v1525 = vld [vmem:[%s1518 + $0x30] sm:$0xff]
    %v1526 = vld [vmem:[%s1518 + $0x38] sm:$0xff]
    %1528 = vrot.lane.b32.xlu0 %v1506, 64
    %v1529 = vpop.permute.xlu0 %1528
    %v1531 = vsel %vm266, %v1516, 0
    %v1533 = vsel %vm266, %v1529, 0
    %1535 = vmatprep.subr.mxu0 0.0
    %1536 = vmatpush1.xpose.msra.mxu0 0.0
    %1537 = vmatprep.subr.mxu0 0.0
    %1538 = vmatpush1.xpose.msra.mxu0 0.0
    %1539 = vmatprep.subr.mxu0 0.0
    %1540 = vmatpush1.xpose.msra.mxu0 0.0
    %1541 = vmatprep.subr.mxu0 0.0
    %1542 = vmatpush1.xpose.msra.mxu0 0.0
    %1543 = vmatprep.subr.mxu0 0.0
    %1544 = vmatpush1.xpose.msra.mxu0 0.0
    %1545 = vmatprep.subr.mxu0 0.0
    %1546 = vmatpush1.xpose.msra.mxu0 0.0
    %1547 = vmatprep.subr.mxu0 0.0
    %1548 = vmatpush1.xpose.msra.mxu0 0.0
    %1549 = vmatprep.subr.mxu0 0.0
    %1550 = vmatpush1.xpose.msra.mxu0 0.0
    %1551 = vmatprep.subr.mxu0 0.0
    %1552 = vmatpush1.xpose.msra.mxu0 0.0
    %1553 = vmatprep.subr.mxu0 0.0
    %1554 = vmatpush1.xpose.msra.mxu0 0.0
    %1555 = vmatprep.subr.mxu0 0.0
    %1556 = vmatpush1.xpose.msra.mxu0 0.0
    %1557 = vmatprep.subr.mxu0 0.0
    %1558 = vmatpush1.xpose.msra.mxu0 0.0
    %1559 = vmatprep.subr.mxu0 0.0
    %1560 = vmatpush1.xpose.msra.mxu0 0.0
    %1561 = vmatprep.subr.mxu0 0.0
    %1562 = vmatpush1.xpose.msra.mxu0 0.0
    %1563 = vmatprep.subr.mxu0 0.0
    %1564 = vmatpush1.xpose.msra.mxu0 0.0
    %1565 = vmatprep.subr.mxu0 0.0
    %1566 = vmatpush1.xpose.msra.mxu0 %v1533
    %1567 = vmatprep.subr.mxu0 0.0
    %1568 = vmatpush2.xpose.msra.mxu0 0.0
    %1569 = vmatprep.subr.mxu0 0.0
    %1570 = vmatpush2.xpose.msra.mxu0 0.0
    %1571 = vmatprep.subr.mxu0 0.0
    %1572 = vmatpush2.xpose.msra.mxu0 0.0
    %1573 = vmatprep.subr.mxu0 0.0
    %1574 = vmatpush2.xpose.msra.mxu0 0.0
    %1575 = vmatprep.subr.mxu0 0.0
    %1576 = vmatpush2.xpose.msra.mxu0 0.0
    %1577 = vmatprep.subr.mxu0 0.0
    %1578 = vmatpush2.xpose.msra.mxu0 0.0
    %1579 = vmatprep.subr.mxu0 0.0
    %1580 = vmatpush2.xpose.msra.mxu0 0.0
    %1581 = vmatprep.subr.mxu0 0.0
    %1582 = vmatpush2.xpose.msra.mxu0 0.0
    %1583 = vmatprep.subr.mxu0 0.0
    %1584 = vmatpush2.xpose.msra.mxu0 0.0
    %1585 = vmatprep.subr.mxu0 0.0
    %1586 = vmatpush2.xpose.msra.mxu0 0.0
    %1587 = vmatprep.subr.mxu0 0.0
    %1588 = vmatpush2.xpose.msra.mxu0 0.0
    %1589 = vmatprep.subr.mxu0 0.0
    %1590 = vmatpush2.xpose.msra.mxu0 0.0
    %1591 = vmatprep.subr.mxu0 0.0
    %1592 = vmatpush2.xpose.msra.mxu0 0.0
    %1593 = vmatprep.subr.mxu0 0.0
    %1594 = vmatpush2.xpose.msra.mxu0 0.0
    %1595 = vmatprep.subr.mxu0 0.0
    %1596 = vmatpush2.xpose.msra.mxu0 0.0
    %1597 = vmatprep.subr.mxu0 0.0
    %1598 = vmatpush2.xpose.msra.mxu0 0.0
    %1599 = vmatprep.mubr.f32.mxu0 0.0
    %1600 = vmatmul.mubr.f32.gmra.mxu0 %v1531
    %v1601 = vpop.f32.mrf.mxu0
    %v1602 = vadd.f32 0.0, %v1601
    %v1603 = vpop.f32.mrf.mxu0
    %1604 = vdwg.mxu0
    %1606 = vrot.lane.b32.xlu0 %v1512, 64
    %v1607 = vpop.permute.xlu0 %1606
    %v1609 = vsel %vm266, %v1517, 0
    %v1611 = vsel %vm266, %v1607, 0
    %1613 = vmatprep.subr.mxu0 0.0
    %1614 = vmatpush1.xpose.msra.mxu0 0.0
    %1615 = vmatprep.subr.mxu0 0.0
    %1616 = vmatpush1.xpose.msra.mxu0 0.0
    %1617 = vmatprep.subr.mxu0 0.0
    %1618 = vmatpush1.xpose.msra.mxu0 0.0
    %1619 = vmatprep.subr.mxu0 0.0
    %1620 = vmatpush1.xpose.msra.mxu0 0.0
    %1621 = vmatprep.subr.mxu0 0.0
    %1622 = vmatpush1.xpose.msra.mxu0 0.0
    %1623 = vmatprep.subr.mxu0 0.0
    %1624 = vmatpush1.xpose.msra.mxu0 0.0
    %1625 = vmatprep.subr.mxu0 0.0
    %1626 = vmatpush1.xpose.msra.mxu0 0.0
    %1627 = vmatprep.subr.mxu0 0.0
    %1628 = vmatpush1.xpose.msra.mxu0 0.0
    %1629 = vmatprep.subr.mxu0 0.0
    %1630 = vmatpush1.xpose.msra.mxu0 0.0
    %1631 = vmatprep.subr.mxu0 0.0
    %1632 = vmatpush1.xpose.msra.mxu0 0.0
    %1633 = vmatprep.subr.mxu0 0.0
    %1634 = vmatpush1.xpose.msra.mxu0 0.0
    %1635 = vmatprep.subr.mxu0 0.0
    %1636 = vmatpush1.xpose.msra.mxu0 0.0
    %1637 = vmatprep.subr.mxu0 0.0
    %1638 = vmatpush1.xpose.msra.mxu0 0.0
    %1639 = vmatprep.subr.mxu0 0.0
    %1640 = vmatpush1.xpose.msra.mxu0 0.0
    %1641 = vmatprep.subr.mxu0 0.0
    %1642 = vmatpush1.xpose.msra.mxu0 0.0
    %1643 = vmatprep.subr.mxu0 0.0
    %1644 = vmatpush1.xpose.msra.mxu0 %v1611
    %1645 = vmatprep.subr.mxu0 0.0
    %1646 = vmatpush2.xpose.msra.mxu0 0.0
    %1647 = vmatprep.subr.mxu0 0.0
    %1648 = vmatpush2.xpose.msra.mxu0 0.0
    %1649 = vmatprep.subr.mxu0 0.0
    %1650 = vmatpush2.xpose.msra.mxu0 0.0
    %1651 = vmatprep.subr.mxu0 0.0
    %1652 = vmatpush2.xpose.msra.mxu0 0.0
    %1653 = vmatprep.subr.mxu0 0.0
    %1654 = vmatpush2.xpose.msra.mxu0 0.0
    %1655 = vmatprep.subr.mxu0 0.0
    %1656 = vmatpush2.xpose.msra.mxu0 0.0
    %1657 = vmatprep.subr.mxu0 0.0
    %1658 = vmatpush2.xpose.msra.mxu0 0.0
    %1659 = vmatprep.subr.mxu0 0.0
    %1660 = vmatpush2.xpose.msra.mxu0 0.0
    %1661 = vmatprep.subr.mxu0 0.0
    %1662 = vmatpush2.xpose.msra.mxu0 0.0
    %1663 = vmatprep.subr.mxu0 0.0
    %1664 = vmatpush2.xpose.msra.mxu0 0.0
    %1665 = vmatprep.subr.mxu0 0.0
    %1666 = vmatpush2.xpose.msra.mxu0 0.0
    %1667 = vmatprep.subr.mxu0 0.0
    %1668 = vmatpush2.xpose.msra.mxu0 0.0
    %1669 = vmatprep.subr.mxu0 0.0
    %1670 = vmatpush2.xpose.msra.mxu0 0.0
    %1671 = vmatprep.subr.mxu0 0.0
    %1672 = vmatpush2.xpose.msra.mxu0 0.0
    %1673 = vmatprep.subr.mxu0 0.0
    %1674 = vmatpush2.xpose.msra.mxu0 0.0
    %1675 = vmatprep.subr.mxu0 0.0
    %1676 = vmatpush2.xpose.msra.mxu0 0.0
    %1677 = vmatprep.mubr.f32.mxu0 0.0
    %1678 = vmatmul.mubr.f32.gmra.mxu0 %v1609
    %v1679 = vpop.f32.mrf.mxu0
    %v1680 = vadd.f32 0.0, %v1679
    %v1681 = vpop.f32.mrf.mxu0
    %1682 = vdwg.mxu0
    %v1683 = vsel %vm420, %v1602, -inf
    %1684 = vmax.xlane.f32.xlu0 %v1683
    %v1685 = vpop.xlane.xlu0 %1684
    %v1686 = vsel %vm420, %v1680, -inf
    %1687 = vmax.xlane.f32.xlu0 %v1686
    %v1688 = vpop.xlane.xlu0 %1687
    %v1689 = vsub.f32 %v1602, %v1685
    %v1690 = vsub.f32 %v1680, %v1688
    %v1691 = vmul.f32 %v1689, 1.442695
    %v1692 = vpow.pop %v1691
    %v1693 = vmul.f32 %v1690, 1.442695
    %v1694 = vpow.pop %v1693
    %v1695 = vsel %vm420, %v1692, 0.0
    %1696 = vadd.xlane.f32.xlu0 %v1695
    %v1697 = vpop.xlane.xlu0 %1696
    %v1698 = vsel %vm420, %v1694, 0.0
    %1699 = vadd.xlane.f32.xlu0 %v1698
    %v1700 = vpop.xlane.xlu0 %1699
    %v1701 = vrcp.pop %v1697
    %v1702 = vrcp.pop %v1700
    %v1703 = vmul.f32 %v1692, %v1701
    %v1704 = vmul.f32 %v1694, %v1702
    %v1706 = vsel %vm420, %v1703, 0
    %1708 = vmatprep.subr.mxu0 0.0
    %1709 = vmatpush1.msra.mxu0 0.0
    %1710 = vmatprep.subr.mxu0 0.0
    %1711 = vmatpush1.msra.mxu0 0.0
    %1712 = vmatprep.subr.mxu0 0.0
    %1713 = vmatpush1.msra.mxu0 0.0
    %1714 = vmatprep.subr.mxu0 0.0
    %1715 = vmatpush1.msra.mxu0 0.0
    %1716 = vmatprep.subr.mxu0 0.0
    %1717 = vmatpush1.msra.mxu0 0.0
    %1718 = vmatprep.subr.mxu0 0.0
    %1719 = vmatpush1.msra.mxu0 0.0
    %1720 = vmatprep.subr.mxu0 0.0
    %1721 = vmatpush1.msra.mxu0 0.0
    %1722 = vmatprep.subr.mxu0 0.0
    %1723 = vmatpush1.msra.mxu0 0.0
    %1724 = vmatprep.subr.mxu0 0.0
    %1725 = vmatpush1.msra.mxu0 0.0
    %1726 = vmatprep.subr.mxu0 0.0
    %1727 = vmatpush1.msra.mxu0 0.0
    %1728 = vmatprep.subr.mxu0 0.0
    %1729 = vmatpush1.msra.mxu0 0.0
    %1730 = vmatprep.subr.mxu0 0.0
    %1731 = vmatpush1.msra.mxu0 0.0
    %1732 = vmatprep.subr.mxu0 0.0
    %1733 = vmatpush1.msra.mxu0 0.0
    %1734 = vmatprep.subr.mxu0 0.0
    %1735 = vmatpush1.msra.mxu0 0.0
    %1736 = vmatprep.subr.mxu0 0.0
    %1737 = vmatpush1.msra.mxu0 0.0
    %1738 = vmatprep.subr.mxu0 0.0
    %1739 = vmatpush1.msra.mxu0 %v1508
    %1740 = vmatprep.subr.mxu0 0.0
    %1741 = vmatpush2.msra.mxu0 0.0
    %1742 = vmatprep.subr.mxu0 0.0
    %1743 = vmatpush2.msra.mxu0 0.0
    %1744 = vmatprep.subr.mxu0 0.0
    %1745 = vmatpush2.msra.mxu0 0.0
    %1746 = vmatprep.subr.mxu0 0.0
    %1747 = vmatpush2.msra.mxu0 0.0
    %1748 = vmatprep.subr.mxu0 0.0
    %1749 = vmatpush2.msra.mxu0 0.0
    %1750 = vmatprep.subr.mxu0 0.0
    %1751 = vmatpush2.msra.mxu0 0.0
    %1752 = vmatprep.subr.mxu0 0.0
    %1753 = vmatpush2.msra.mxu0 0.0
    %1754 = vmatprep.subr.mxu0 0.0
    %1755 = vmatpush2.msra.mxu0 0.0
    %1756 = vmatprep.subr.mxu0 0.0
    %1757 = vmatpush2.msra.mxu0 0.0
    %1758 = vmatprep.subr.mxu0 0.0
    %1759 = vmatpush2.msra.mxu0 0.0
    %1760 = vmatprep.subr.mxu0 0.0
    %1761 = vmatpush2.msra.mxu0 0.0
    %1762 = vmatprep.subr.mxu0 0.0
    %1763 = vmatpush2.msra.mxu0 0.0
    %1764 = vmatprep.subr.mxu0 0.0
    %1765 = vmatpush2.msra.mxu0 0.0
    %1766 = vmatprep.subr.mxu0 0.0
    %1767 = vmatpush2.msra.mxu0 0.0
    %1768 = vmatprep.subr.mxu0 0.0
    %1769 = vmatpush2.msra.mxu0 0.0
    %1770 = vmatprep.subr.mxu0 0.0
    %1771 = vmatpush2.msra.mxu0 0.0
    %1772 = vmatprep.mubr.f32.mxu0 0.0
    %1773 = vmatmul.mubr.f32.gmra.mxu0 %v1706
    %v1774 = vpop.f32.mrf.mxu0
    %v1775 = vadd.f32 0.0, %v1774
    %v1776 = vpop.f32.mrf.mxu0
    %1777 = vdwg.mxu0
    %v1779 = vsel %vm420, %v1704, 0
    %1781 = vmatprep.subr.mxu0 0.0
    %1782 = vmatpush1.msra.mxu0 0.0
    %1783 = vmatprep.subr.mxu0 0.0
    %1784 = vmatpush1.msra.mxu0 0.0
    %1785 = vmatprep.subr.mxu0 0.0
    %1786 = vmatpush1.msra.mxu0 0.0
    %1787 = vmatprep.subr.mxu0 0.0
    %1788 = vmatpush1.msra.mxu0 0.0
    %1789 = vmatprep.subr.mxu0 0.0
    %1790 = vmatpush1.msra.mxu0 0.0
    %1791 = vmatprep.subr.mxu0 0.0
    %1792 = vmatpush1.msra.mxu0 0.0
    %1793 = vmatprep.subr.mxu0 0.0
    %1794 = vmatpush1.msra.mxu0 0.0
    %1795 = vmatprep.subr.mxu0 0.0
    %1796 = vmatpush1.msra.mxu0 0.0
    %1797 = vmatprep.subr.mxu0 0.0
    %1798 = vmatpush1.msra.mxu0 0.0
    %1799 = vmatprep.subr.mxu0 0.0
    %1800 = vmatpush1.msra.mxu0 0.0
    %1801 = vmatprep.subr.mxu0 0.0
    %1802 = vmatpush1.msra.mxu0 0.0
    %1803 = vmatprep.subr.mxu0 0.0
    %1804 = vmatpush1.msra.mxu0 0.0
    %1805 = vmatprep.subr.mxu0 0.0
    %1806 = vmatpush1.msra.mxu0 0.0
    %1807 = vmatprep.subr.mxu0 0.0
    %1808 = vmatpush1.msra.mxu0 0.0
    %1809 = vmatprep.subr.mxu0 0.0
    %1810 = vmatpush1.msra.mxu0 0.0
    %1811 = vmatprep.subr.mxu0 0.0
    %1812 = vmatpush1.msra.mxu0 %v1514
    %1813 = vmatprep.subr.mxu0 0.0
    %1814 = vmatpush2.msra.mxu0 0.0
    %1815 = vmatprep.subr.mxu0 0.0
    %1816 = vmatpush2.msra.mxu0 0.0
    %1817 = vmatprep.subr.mxu0 0.0
    %1818 = vmatpush2.msra.mxu0 0.0
    %1819 = vmatprep.subr.mxu0 0.0
    %1820 = vmatpush2.msra.mxu0 0.0
    %1821 = vmatprep.subr.mxu0 0.0
    %1822 = vmatpush2.msra.mxu0 0.0
    %1823 = vmatprep.subr.mxu0 0.0
    %1824 = vmatpush2.msra.mxu0 0.0
    %1825 = vmatprep.subr.mxu0 0.0
    %1826 = vmatpush2.msra.mxu0 0.0
    %1827 = vmatprep.subr.mxu0 0.0
    %1828 = vmatpush2.msra.mxu0 0.0
    %1829 = vmatprep.subr.mxu0 0.0
    %1830 = vmatpush2.msra.mxu0 0.0
    %1831 = vmatprep.subr.mxu0 0.0
    %1832 = vmatpush2.msra.mxu0 0.0
    %1833 = vmatprep.subr.mxu0 0.0
    %1834 = vmatpush2.msra.mxu0 0.0
    %1835 = vmatprep.subr.mxu0 0.0
    %1836 = vmatpush2.msra.mxu0 0.0
    %1837 = vmatprep.subr.mxu0 0.0
    %1838 = vmatpush2.msra.mxu0 0.0
    %1839 = vmatprep.subr.mxu0 0.0
    %1840 = vmatpush2.msra.mxu0 0.0
    %1841 = vmatprep.subr.mxu0 0.0
    %1842 = vmatpush2.msra.mxu0 0.0
    %1843 = vmatprep.subr.mxu0 0.0
    %1844 = vmatpush2.msra.mxu0 0.0
    %1845 = vmatprep.mubr.f32.mxu0 0.0
    %1846 = vmatmul.mubr.f32.gmra.mxu0 %v1779
    %v1847 = vpop.f32.mrf.mxu0
    %v1848 = vadd.f32 0.0, %v1847
    %v1849 = vpop.f32.mrf.mxu0
    %1850 = vdwg.mxu0
    %1851 = vrot.lane.b32.xlu0 %v1516, 96
    %v1852 = vpop.permute.xlu0 %1851
    %1853 = vrot.lane.b32.xlu0 %v1506, 32
    %v1854 = vpop.permute.xlu0 %1853
    %v1855 = vsel %vm266, %v1852, 0
    %v1857 = vsel %vm266, %v1854, 0
    %1859 = vmatprep.subr.mxu0 0.0
    %1860 = vmatpush1.xpose.msra.mxu0 0.0
    %1861 = vmatprep.subr.mxu0 0.0
    %1862 = vmatpush1.xpose.msra.mxu0 0.0
    %1863 = vmatprep.subr.mxu0 0.0
    %1864 = vmatpush1.xpose.msra.mxu0 0.0
    %1865 = vmatprep.subr.mxu0 0.0
    %1866 = vmatpush1.xpose.msra.mxu0 0.0
    %1867 = vmatprep.subr.mxu0 0.0
    %1868 = vmatpush1.xpose.msra.mxu0 0.0
    %1869 = vmatprep.subr.mxu0 0.0
    %1870 = vmatpush1.xpose.msra.mxu0 0.0
    %1871 = vmatprep.subr.mxu0 0.0
    %1872 = vmatpush1.xpose.msra.mxu0 0.0
    %1873 = vmatprep.subr.mxu0 0.0
    %1874 = vmatpush1.xpose.msra.mxu0 0.0
    %1875 = vmatprep.subr.mxu0 0.0
    %1876 = vmatpush1.xpose.msra.mxu0 0.0
    %1877 = vmatprep.subr.mxu0 0.0
    %1878 = vmatpush1.xpose.msra.mxu0 0.0
    %1879 = vmatprep.subr.mxu0 0.0
    %1880 = vmatpush1.xpose.msra.mxu0 0.0
    %1881 = vmatprep.subr.mxu0 0.0
    %1882 = vmatpush1.xpose.msra.mxu0 0.0
    %1883 = vmatprep.subr.mxu0 0.0
    %1884 = vmatpush1.xpose.msra.mxu0 0.0
    %1885 = vmatprep.subr.mxu0 0.0
    %1886 = vmatpush1.xpose.msra.mxu0 0.0
    %1887 = vmatprep.subr.mxu0 0.0
    %1888 = vmatpush1.xpose.msra.mxu0 0.0
    %1889 = vmatprep.subr.mxu0 0.0
    %1890 = vmatpush1.xpose.msra.mxu0 %v1857
    %1891 = vmatprep.subr.mxu0 0.0
    %1892 = vmatpush2.xpose.msra.mxu0 0.0
    %1893 = vmatprep.subr.mxu0 0.0
    %1894 = vmatpush2.xpose.msra.mxu0 0.0
    %1895 = vmatprep.subr.mxu0 0.0
    %1896 = vmatpush2.xpose.msra.mxu0 0.0
    %1897 = vmatprep.subr.mxu0 0.0
    %1898 = vmatpush2.xpose.msra.mxu0 0.0
    %1899 = vmatprep.subr.mxu0 0.0
    %1900 = vmatpush2.xpose.msra.mxu0 0.0
    %1901 = vmatprep.subr.mxu0 0.0
    %1902 = vmatpush2.xpose.msra.mxu0 0.0
    %1903 = vmatprep.subr.mxu0 0.0
    %1904 = vmatpush2.xpose.msra.mxu0 0.0
    %1905 = vmatprep.subr.mxu0 0.0
    %1906 = vmatpush2.xpose.msra.mxu0 0.0
    %1907 = vmatprep.subr.mxu0 0.0
    %1908 = vmatpush2.xpose.msra.mxu0 0.0
    %1909 = vmatprep.subr.mxu0 0.0
    %1910 = vmatpush2.xpose.msra.mxu0 0.0
    %1911 = vmatprep.subr.mxu0 0.0
    %1912 = vmatpush2.xpose.msra.mxu0 0.0
    %1913 = vmatprep.subr.mxu0 0.0
    %1914 = vmatpush2.xpose.msra.mxu0 0.0
    %1915 = vmatprep.subr.mxu0 0.0
    %1916 = vmatpush2.xpose.msra.mxu0 0.0
    %1917 = vmatprep.subr.mxu0 0.0
    %1918 = vmatpush2.xpose.msra.mxu0 0.0
    %1919 = vmatprep.subr.mxu0 0.0
    %1920 = vmatpush2.xpose.msra.mxu0 0.0
    %1921 = vmatprep.subr.mxu0 0.0
    %1922 = vmatpush2.xpose.msra.mxu0 0.0
    %1923 = vmatprep.mubr.f32.mxu0 0.0
    %1924 = vmatmul.mubr.f32.gmra.mxu0 %v1855
    %v1925 = vpop.f32.mrf.mxu0
    %v1926 = vadd.f32 0.0, %v1925
    %v1927 = vpop.f32.mrf.mxu0
    %1928 = vdwg.mxu0
    %1929 = vrot.lane.b32.xlu0 %v1517, 96
    %v1930 = vpop.permute.xlu0 %1929
    %1931 = vrot.lane.b32.xlu0 %v1512, 32
    %v1932 = vpop.permute.xlu0 %1931
    %v1933 = vsel %vm266, %v1930, 0
    %v1935 = vsel %vm266, %v1932, 0
    %1937 = vmatprep.subr.mxu0 0.0
    %1938 = vmatpush1.xpose.msra.mxu0 0.0
    %1939 = vmatprep.subr.mxu0 0.0
    %1940 = vmatpush1.xpose.msra.mxu0 0.0
    %1941 = vmatprep.subr.mxu0 0.0
    %1942 = vmatpush1.xpose.msra.mxu0 0.0
    %1943 = vmatprep.subr.mxu0 0.0
    %1944 = vmatpush1.xpose.msra.mxu0 0.0
    %1945 = vmatprep.subr.mxu0 0.0
    %1946 = vmatpush1.xpose.msra.mxu0 0.0
    %1947 = vmatprep.subr.mxu0 0.0
    %1948 = vmatpush1.xpose.msra.mxu0 0.0
    %1949 = vmatprep.subr.mxu0 0.0
    %1950 = vmatpush1.xpose.msra.mxu0 0.0
    %1951 = vmatprep.subr.mxu0 0.0
    %1952 = vmatpush1.xpose.msra.mxu0 0.0
    %1953 = vmatprep.subr.mxu0 0.0
    %1954 = vmatpush1.xpose.msra.mxu0 0.0
    %1955 = vmatprep.subr.mxu0 0.0
    %1956 = vmatpush1.xpose.msra.mxu0 0.0
    %1957 = vmatprep.subr.mxu0 0.0
    %1958 = vmatpush1.xpose.msra.mxu0 0.0
    %1959 = vmatprep.subr.mxu0 0.0
    %1960 = vmatpush1.xpose.msra.mxu0 0.0
    %1961 = vmatprep.subr.mxu0 0.0
    %1962 = vmatpush1.xpose.msra.mxu0 0.0
    %1963 = vmatprep.subr.mxu0 0.0
    %1964 = vmatpush1.xpose.msra.mxu0 0.0
    %1965 = vmatprep.subr.mxu0 0.0
    %1966 = vmatpush1.xpose.msra.mxu0 0.0
    %1967 = vmatprep.subr.mxu0 0.0
    %1968 = vmatpush1.xpose.msra.mxu0 %v1935
    %1969 = vmatprep.subr.mxu0 0.0
    %1970 = vmatpush2.xpose.msra.mxu0 0.0
    %1971 = vmatprep.subr.mxu0 0.0
    %1972 = vmatpush2.xpose.msra.mxu0 0.0
    %1973 = vmatprep.subr.mxu0 0.0
    %1974 = vmatpush2.xpose.msra.mxu0 0.0
    %1975 = vmatprep.subr.mxu0 0.0
    %1976 = vmatpush2.xpose.msra.mxu0 0.0
    %1977 = vmatprep.subr.mxu0 0.0
    %1978 = vmatpush2.xpose.msra.mxu0 0.0
    %1979 = vmatprep.subr.mxu0 0.0
    %1980 = vmatpush2.xpose.msra.mxu0 0.0
    %1981 = vmatprep.subr.mxu0 0.0
    %1982 = vmatpush2.xpose.msra.mxu0 0.0
    %1983 = vmatprep.subr.mxu0 0.0
    %1984 = vmatpush2.xpose.msra.mxu0 0.0
    %1985 = vmatprep.subr.mxu0 0.0
    %1986 = vmatpush2.xpose.msra.mxu0 0.0
    %1987 = vmatprep.subr.mxu0 0.0
    %1988 = vmatpush2.xpose.msra.mxu0 0.0
    %1989 = vmatprep.subr.mxu0 0.0
    %1990 = vmatpush2.xpose.msra.mxu0 0.0
    %1991 = vmatprep.subr.mxu0 0.0
    %1992 = vmatpush2.xpose.msra.mxu0 0.0
    %1993 = vmatprep.subr.mxu0 0.0
    %1994 = vmatpush2.xpose.msra.mxu0 0.0
    %1995 = vmatprep.subr.mxu0 0.0
    %1996 = vmatpush2.xpose.msra.mxu0 0.0
    %1997 = vmatprep.subr.mxu0 0.0
    %1998 = vmatpush2.xpose.msra.mxu0 0.0
    %1999 = vmatprep.subr.mxu0 0.0
    %2000 = vmatpush2.xpose.msra.mxu0 0.0
    %2001 = vmatprep.mubr.f32.mxu0 0.0
    %2002 = vmatmul.mubr.f32.gmra.mxu0 %v1933
    %v2003 = vpop.f32.mrf.mxu0
    %v2004 = vadd.f32 0.0, %v2003
    %v2005 = vpop.f32.mrf.mxu0
    %2006 = vdwg.mxu0
    %v2007 = vsel %vm420, %v1926, -inf
    %2008 = vmax.xlane.f32.xlu0 %v2007
    %v2009 = vpop.xlane.xlu0 %2008
    %v2010 = vsel %vm420, %v2004, -inf
    %2011 = vmax.xlane.f32.xlu0 %v2010
    %v2012 = vpop.xlane.xlu0 %2011
    %v2013 = vsub.f32 %v1926, %v2009
    %v2014 = vsub.f32 %v2004, %v2012
    %v2015 = vmul.f32 %v2013, 1.442695
    %v2016 = vpow.pop %v2015
    %v2017 = vmul.f32 %v2014, 1.442695
    %v2018 = vpow.pop %v2017
    %v2019 = vsel %vm420, %v2016, 0.0
    %2020 = vadd.xlane.f32.xlu0 %v2019
    %v2021 = vpop.xlane.xlu0 %2020
    %v2022 = vsel %vm420, %v2018, 0.0
    %2023 = vadd.xlane.f32.xlu0 %v2022
    %v2024 = vpop.xlane.xlu0 %2023
    %v2025 = vrcp.pop %v2021
    %v2026 = vrcp.pop %v2024
    %v2027 = vmul.f32 %v2016, %v2025
    %v2028 = vmul.f32 %v2018, %v2026
    %2030 = vrot.lane.b32.xlu0 %v1508, 96
    %v2031 = vpop.permute.xlu0 %2030
    %v2034 = vsel %vm420, %v2027, 0
    %2036 = vmatprep.subr.mxu0 0.0
    %2037 = vmatpush1.msra.mxu0 0.0
    %2038 = vmatprep.subr.mxu0 0.0
    %2039 = vmatpush1.msra.mxu0 0.0
    %2040 = vmatprep.subr.mxu0 0.0
    %2041 = vmatpush1.msra.mxu0 0.0
    %2042 = vmatprep.subr.mxu0 0.0
    %2043 = vmatpush1.msra.mxu0 0.0
    %2044 = vmatprep.subr.mxu0 0.0
    %2045 = vmatpush1.msra.mxu0 0.0
    %2046 = vmatprep.subr.mxu0 0.0
    %2047 = vmatpush1.msra.mxu0 0.0
    %2048 = vmatprep.subr.mxu0 0.0
    %2049 = vmatpush1.msra.mxu0 0.0
    %2050 = vmatprep.subr.mxu0 0.0
    %2051 = vmatpush1.msra.mxu0 0.0
    %2052 = vmatprep.subr.mxu0 0.0
    %2053 = vmatpush1.msra.mxu0 0.0
    %2054 = vmatprep.subr.mxu0 0.0
    %2055 = vmatpush1.msra.mxu0 0.0
    %2056 = vmatprep.subr.mxu0 0.0
    %2057 = vmatpush1.msra.mxu0 0.0
    %2058 = vmatprep.subr.mxu0 0.0
    %2059 = vmatpush1.msra.mxu0 0.0
    %2060 = vmatprep.subr.mxu0 0.0
    %2061 = vmatpush1.msra.mxu0 0.0
    %2062 = vmatprep.subr.mxu0 0.0
    %2063 = vmatpush1.msra.mxu0 0.0
    %2064 = vmatprep.subr.mxu0 0.0
    %2065 = vmatpush1.msra.mxu0 0.0
    %2066 = vmatprep.subr.mxu0 0.0
    %2067 = vmatpush1.msra.mxu0 %v2031
    %2068 = vmatprep.subr.mxu0 0.0
    %2069 = vmatpush2.msra.mxu0 0.0
    %2070 = vmatprep.subr.mxu0 0.0
    %2071 = vmatpush2.msra.mxu0 0.0
    %2072 = vmatprep.subr.mxu0 0.0
    %2073 = vmatpush2.msra.mxu0 0.0
    %2074 = vmatprep.subr.mxu0 0.0
    %2075 = vmatpush2.msra.mxu0 0.0
    %2076 = vmatprep.subr.mxu0 0.0
    %2077 = vmatpush2.msra.mxu0 0.0
    %2078 = vmatprep.subr.mxu0 0.0
    %2079 = vmatpush2.msra.mxu0 0.0
    %2080 = vmatprep.subr.mxu0 0.0
    %2081 = vmatpush2.msra.mxu0 0.0
    %2082 = vmatprep.subr.mxu0 0.0
    %2083 = vmatpush2.msra.mxu0 0.0
    %2084 = vmatprep.subr.mxu0 0.0
    %2085 = vmatpush2.msra.mxu0 0.0
    %2086 = vmatprep.subr.mxu0 0.0
    %2087 = vmatpush2.msra.mxu0 0.0
    %2088 = vmatprep.subr.mxu0 0.0
    %2089 = vmatpush2.msra.mxu0 0.0
    %2090 = vmatprep.subr.mxu0 0.0
    %2091 = vmatpush2.msra.mxu0 0.0
    %2092 = vmatprep.subr.mxu0 0.0
    %2093 = vmatpush2.msra.mxu0 0.0
    %2094 = vmatprep.subr.mxu0 0.0
    %2095 = vmatpush2.msra.mxu0 0.0
    %2096 = vmatprep.subr.mxu0 0.0
    %2097 = vmatpush2.msra.mxu0 0.0
    %2098 = vmatprep.subr.mxu0 0.0
    %2099 = vmatpush2.msra.mxu0 0.0
    %2100 = vmatprep.mubr.f32.mxu0 0.0
    %2101 = vmatmul.mubr.f32.gmra.mxu0 %v2034
    %v2102 = vpop.f32.mrf.mxu0
    %v2103 = vadd.f32 0.0, %v2102
    %v2104 = vpop.f32.mrf.mxu0
    %2105 = vdwg.mxu0
    %2107 = vrot.lane.b32.xlu0 %v1514, 96
    %v2108 = vpop.permute.xlu0 %2107
    %v2111 = vsel %vm420, %v2028, 0
    %2113 = vmatprep.subr.mxu0 0.0
    %2114 = vmatpush1.msra.mxu0 0.0
    %2115 = vmatprep.subr.mxu0 0.0
    %2116 = vmatpush1.msra.mxu0 0.0
    %2117 = vmatprep.subr.mxu0 0.0
    %2118 = vmatpush1.msra.mxu0 0.0
    %2119 = vmatprep.subr.mxu0 0.0
    %2120 = vmatpush1.msra.mxu0 0.0
    %2121 = vmatprep.subr.mxu0 0.0
    %2122 = vmatpush1.msra.mxu0 0.0
    %2123 = vmatprep.subr.mxu0 0.0
    %2124 = vmatpush1.msra.mxu0 0.0
    %2125 = vmatprep.subr.mxu0 0.0
    %2126 = vmatpush1.msra.mxu0 0.0
    %2127 = vmatprep.subr.mxu0 0.0
    %2128 = vmatpush1.msra.mxu0 0.0
    %2129 = vmatprep.subr.mxu0 0.0
    %2130 = vmatpush1.msra.mxu0 0.0
    %2131 = vmatprep.subr.mxu0 0.0
    %2132 = vmatpush1.msra.mxu0 0.0
    %2133 = vmatprep.subr.mxu0 0.0
    %2134 = vmatpush1.msra.mxu0 0.0
    %2135 = vmatprep.subr.mxu0 0.0
    %2136 = vmatpush1.msra.mxu0 0.0
    %2137 = vmatprep.subr.mxu0 0.0
    %2138 = vmatpush1.msra.mxu0 0.0
    %2139 = vmatprep.subr.mxu0 0.0
    %2140 = vmatpush1.msra.mxu0 0.0
    %2141 = vmatprep.subr.mxu0 0.0
    %2142 = vmatpush1.msra.mxu0 0.0
    %2143 = vmatprep.subr.mxu0 0.0
    %2144 = vmatpush1.msra.mxu0 %v2108
    %2145 = vmatprep.subr.mxu0 0.0
    %2146 = vmatpush2.msra.mxu0 0.0
    %2147 = vmatprep.subr.mxu0 0.0
    %2148 = vmatpush2.msra.mxu0 0.0
    %2149 = vmatprep.subr.mxu0 0.0
    %2150 = vmatpush2.msra.mxu0 0.0
    %2151 = vmatprep.subr.mxu0 0.0
    %2152 = vmatpush2.msra.mxu0 0.0
    %2153 = vmatprep.subr.mxu0 0.0
    %2154 = vmatpush2.msra.mxu0 0.0
    %2155 = vmatprep.subr.mxu0 0.0
    %2156 = vmatpush2.msra.mxu0 0.0
    %2157 = vmatprep.subr.mxu0 0.0
    %2158 = vmatpush2.msra.mxu0 0.0
    %2159 = vmatprep.subr.mxu0 0.0
    %2160 = vmatpush2.msra.mxu0 0.0
    %2161 = vmatprep.subr.mxu0 0.0
    %2162 = vmatpush2.msra.mxu0 0.0
    %2163 = vmatprep.subr.mxu0 0.0
    %2164 = vmatpush2.msra.mxu0 0.0
    %2165 = vmatprep.subr.mxu0 0.0
    %2166 = vmatpush2.msra.mxu0 0.0
    %2167 = vmatprep.subr.mxu0 0.0
    %2168 = vmatpush2.msra.mxu0 0.0
    %2169 = vmatprep.subr.mxu0 0.0
    %2170 = vmatpush2.msra.mxu0 0.0
    %2171 = vmatprep.subr.mxu0 0.0
    %2172 = vmatpush2.msra.mxu0 0.0
    %2173 = vmatprep.subr.mxu0 0.0
    %2174 = vmatpush2.msra.mxu0 0.0
    %2175 = vmatprep.subr.mxu0 0.0
    %2176 = vmatpush2.msra.mxu0 0.0
    %2177 = vmatprep.mubr.f32.mxu0 0.0
    %2178 = vmatmul.mubr.f32.gmra.mxu0 %v2111
    %v2179 = vpop.f32.mrf.mxu0
    %v2180 = vadd.f32 0.0, %v2179
    %v2181 = vpop.f32.mrf.mxu0
    %2182 = vdwg.mxu0
    %v2184 = vsel %vm266, %v2103, 0
    %v2187 = vsel %vm266, %v2180, 0
    %2189 = vmatprep.subr.mxu0 0.0
    %2190 = vmatpush1.msra.mxu0 0.0
    %2191 = vmatprep.subr.mxu0 0.0
    %2192 = vmatpush1.msra.mxu0 0.0
    %2193 = vmatprep.subr.mxu0 0.0
    %2194 = vmatpush1.msra.mxu0 0.0
    %2195 = vmatprep.subr.mxu0 0.0
    %2196 = vmatpush1.msra.mxu0 0.0
    %2197 = vmatprep.subr.mxu0 0.0
    %2198 = vmatpush1.msra.mxu0 0.0
    %2199 = vmatprep.subr.mxu0 0.0
    %2200 = vmatpush1.msra.mxu0 0.0
    %2201 = vmatprep.subr.mxu0 0.0
    %2202 = vmatpush1.msra.mxu0 0.0
    %2203 = vmatprep.subr.mxu0 0.0
    %2204 = vmatpush1.msra.mxu0 0.0
    %2205 = vmatprep.subr.mxu0 0.0
    %2206 = vmatpush1.msra.mxu0 0.0
    %2207 = vmatprep.subr.mxu0 0.0
    %2208 = vmatpush1.msra.mxu0 0.0
    %2209 = vmatprep.subr.mxu0 0.0
    %2210 = vmatpush1.msra.mxu0 0.0
    %2211 = vmatprep.subr.mxu0 0.0
    %2212 = vmatpush1.msra.mxu0 0.0
    %2213 = vmatprep.subr.mxu0 0.0
    %2214 = vmatpush1.msra.mxu0 %v1526
    %2215 = vmatprep.subr.mxu0 0.0
    %2216 = vmatpush1.msra.mxu0 %v1525
    %2217 = vmatprep.subr.mxu0 0.0
    %2218 = vmatpush1.msra.mxu0 %v1524
    %2219 = vmatprep.subr.mxu0 0.0
    %2220 = vmatpush1.msra.mxu0 %v1523
    %2221 = vmatprep.subr.mxu0 0.0
    %2222 = vmatpush2.msra.mxu0 0.0
    %2223 = vmatprep.subr.mxu0 0.0
    %2224 = vmatpush2.msra.mxu0 0.0
    %2225 = vmatprep.subr.mxu0 0.0
    %2226 = vmatpush2.msra.mxu0 0.0
    %2227 = vmatprep.subr.mxu0 0.0
    %2228 = vmatpush2.msra.mxu0 0.0
    %2229 = vmatprep.subr.mxu0 0.0
    %2230 = vmatpush2.msra.mxu0 0.0
    %2231 = vmatprep.subr.mxu0 0.0
    %2232 = vmatpush2.msra.mxu0 0.0
    %2233 = vmatprep.subr.mxu0 0.0
    %2234 = vmatpush2.msra.mxu0 0.0
    %2235 = vmatprep.subr.mxu0 0.0
    %2236 = vmatpush2.msra.mxu0 0.0
    %2237 = vmatprep.subr.mxu0 0.0
    %2238 = vmatpush2.msra.mxu0 0.0
    %2239 = vmatprep.subr.mxu0 0.0
    %2240 = vmatpush2.msra.mxu0 0.0
    %2241 = vmatprep.subr.mxu0 0.0
    %2242 = vmatpush2.msra.mxu0 0.0
    %2243 = vmatprep.subr.mxu0 0.0
    %2244 = vmatpush2.msra.mxu0 0.0
    %2245 = vmatprep.subr.mxu0 0.0
    %2246 = vmatpush2.msra.mxu0 0.0
    %2247 = vmatprep.subr.mxu0 0.0
    %2248 = vmatpush2.msra.mxu0 0.0
    %2249 = vmatprep.subr.mxu0 0.0
    %2250 = vmatpush2.msra.mxu0 0.0
    %2251 = vmatprep.subr.mxu0 0.0
    %2252 = vmatpush2.msra.mxu0 0.0
    %2253 = vmatprep.mubr.f32.mxu0 0.0
    %2254 = vmatmul.mubr.f32.gmra.mxu0 %v2184
    %v2255 = vpop.f32.mrf.mxu0
    %v2256 = vadd.f32 0.0, %v2255
    %v2257 = vpop.f32.mrf.mxu0
    %2258 = vmatprep.mubr.f32.mxu0 0.0
    %2259 = vmatmul.mubr.f32.gmra.mxu0 %v2187
    %v2260 = vpop.f32.mrf.mxu0
    %v2261 = vadd.f32 0.0, %v2260
    %v2262 = vpop.f32.mrf.mxu0
    %2263 = vdwg.mxu0
    %v2265 = vsel %vm266, %v1775, 0
    %v2268 = vsel %vm266, %v1848, 0
    %2270 = vmatprep.subr.mxu0 0.0
    %2271 = vmatpush1.msra.mxu0 0.0
    %2272 = vmatprep.subr.mxu0 0.0
    %2273 = vmatpush1.msra.mxu0 0.0
    %2274 = vmatprep.subr.mxu0 0.0
    %2275 = vmatpush1.msra.mxu0 0.0
    %2276 = vmatprep.subr.mxu0 0.0
    %2277 = vmatpush1.msra.mxu0 0.0
    %2278 = vmatprep.subr.mxu0 0.0
    %2279 = vmatpush1.msra.mxu0 0.0
    %2280 = vmatprep.subr.mxu0 0.0
    %2281 = vmatpush1.msra.mxu0 0.0
    %2282 = vmatprep.subr.mxu0 0.0
    %2283 = vmatpush1.msra.mxu0 0.0
    %2284 = vmatprep.subr.mxu0 0.0
    %2285 = vmatpush1.msra.mxu0 0.0
    %2286 = vmatprep.subr.mxu0 0.0
    %2287 = vmatpush1.msra.mxu0 0.0
    %2288 = vmatprep.subr.mxu0 0.0
    %2289 = vmatpush1.msra.mxu0 0.0
    %2290 = vmatprep.subr.mxu0 0.0
    %2291 = vmatpush1.msra.mxu0 0.0
    %2292 = vmatprep.subr.mxu0 0.0
    %2293 = vmatpush1.msra.mxu0 0.0
    %2294 = vmatprep.subr.mxu0 0.0
    %2295 = vmatpush1.msra.mxu0 %v1522
    %2296 = vmatprep.subr.mxu0 0.0
    %2297 = vmatpush1.msra.mxu0 %v1521
    %2298 = vmatprep.subr.mxu0 0.0
    %2299 = vmatpush1.msra.mxu0 %v1520
    %2300 = vmatprep.subr.mxu0 0.0
    %2301 = vmatpush1.msra.mxu0 %v1519
    %2302 = vmatprep.subr.mxu0 0.0
    %2303 = vmatpush2.msra.mxu0 0.0
    %2304 = vmatprep.subr.mxu0 0.0
    %2305 = vmatpush2.msra.mxu0 0.0
    %2306 = vmatprep.subr.mxu0 0.0
    %2307 = vmatpush2.msra.mxu0 0.0
    %2308 = vmatprep.subr.mxu0 0.0
    %2309 = vmatpush2.msra.mxu0 0.0
    %2310 = vmatprep.subr.mxu0 0.0
    %2311 = vmatpush2.msra.mxu0 0.0
    %2312 = vmatprep.subr.mxu0 0.0
    %2313 = vmatpush2.msra.mxu0 0.0
    %2314 = vmatprep.subr.mxu0 0.0
    %2315 = vmatpush2.msra.mxu0 0.0
    %2316 = vmatprep.subr.mxu0 0.0
    %2317 = vmatpush2.msra.mxu0 0.0
    %2318 = vmatprep.subr.mxu0 0.0
    %2319 = vmatpush2.msra.mxu0 0.0
    %2320 = vmatprep.subr.mxu0 0.0
    %2321 = vmatpush2.msra.mxu0 0.0
    %2322 = vmatprep.subr.mxu0 0.0
    %2323 = vmatpush2.msra.mxu0 0.0
    %2324 = vmatprep.subr.mxu0 0.0
    %2325 = vmatpush2.msra.mxu0 0.0
    %2326 = vmatprep.subr.mxu0 0.0
    %2327 = vmatpush2.msra.mxu0 0.0
    %2328 = vmatprep.subr.mxu0 0.0
    %2329 = vmatpush2.msra.mxu0 0.0
    %2330 = vmatprep.subr.mxu0 0.0
    %2331 = vmatpush2.msra.mxu0 0.0
    %2332 = vmatprep.subr.mxu0 0.0
    %2333 = vmatpush2.msra.mxu0 0.0
    %2334 = vmatprep.mubr.f32.mxu0 0.0
    %2335 = vmatmul.mubr.f32.gmra.mxu0 %v2265
    %v2336 = vpop.f32.mrf.mxu0
    %v2337 = vadd.f32 %v2256, %v2336
    %v2338 = vpop.f32.mrf.mxu0
    %2339 = vmatprep.mubr.f32.mxu0 0.0
    %2340 = vmatmul.mubr.f32.gmra.mxu0 %v2268
    %v2341 = vpop.f32.mrf.mxu0
    %v2342 = vadd.f32 %v2261, %v2341
    %v2343 = vpop.f32.mrf.mxu0
    %2344 = vdwg.mxu0
    %s2345 = scalar_lea.vmem %s7, 1
    %v2346 = vld [vmem:[%s2345] sm:$0x1]
    %v2348 = vlaneseq
    %v2349 = vshrl.u32 %v2348, 7
    %v2350 = vsub.s32 0, %v2349
    %v2351 = vrot.slane %v2346, %v2350
    %v2353 = vadd.f32 %v2337, %v2351
    %v2354 = vadd.f32 %v2342, %v2351
    %s2355 = scalar_lea.vmem %s12, 4
    %v2356 = vld [vmem:[%s2355] sm:$0xf]
    %v2357 = vadd.f32 %v1401, %v2353
    %v2358 = vadd.f32 %v1402, %v2354
    %v2359 = vsel %vm169, %v2357, 0.0
    %2360 = vadd.xlane.f32.xlu0 %v2359
    %v2361 = vpop.xlane.xlu0 %2360
    %v2362 = vsel %vm169, %v2358, 0.0
    %2363 = vadd.xlane.f32.xlu0 %v2362
    %v2364 = vpop.xlane.xlu0 %2363
    %v2365 = vmul.f32 %v2361, %v1101
    %v2366 = vmul.f32 %v2364, %v1101
    %v2367 = vsub.f32 %v2357, %v2365
    %v2368 = vsub.f32 %v2358, %v2366
    %v2369 = vmul.f32 %v2367, %v2367
    %v2370 = vmul.f32 %v2368, %v2368
    %v2371 = vsel %vm169, %v2369, 0.0
    %2372 = vadd.xlane.f32.xlu0 %v2371
    %v2373 = vpop.xlane.xlu0 %2372
    %v2374 = vsel %vm169, %v2370, 0.0
    %2375 = vadd.xlane.f32.xlu0 %v2374
    %v2376 = vpop.xlane.xlu0 %2375
    %v2377 = vmul.f32 %v2373, %v1101
    %v2378 = vmul.f32 %v2376, %v1101
    %v2379 = vadd.f32 %v2377, 1e-05
    %v2380 = vadd.f32 %v2378, 1e-05
    %v2381 = vrsqrt.pop %v2379
    %v2382 = vrsqrt.pop %v2380
    %v2383 = vmul.f32 %v2367, %v2381
    %v2384 = vmul.f32 %v2368, %v2382
    %v2385 = vlaneseq
    %v2386 = vshrl.u32 %v2385, 7
    %v2387 = vsub.s32 0, %v2386
    %v2388 = vrot.slane %v2356, %v2387
    %v2389 = vmul.f32 %v2383, %v2388
    %v2390 = vmul.f32 %v2384, %v2388
    %v2391 = vlaneseq
    %v2392 = vshrl.u32 %v2391, 7
    %v2393 = vsub.s32 1, %v2392
    %v2394 = vrot.slane %v2356, %v2393
    %v2395 = vadd.f32 %v2389, %v2394
    %v2396 = vadd.f32 %v2390, %v2394
    %s2397 = scalar_lea.vmem %s8, 128
    %v2398 = vld [vmem:[%s2397] sm:$0xff]
    %v2399 = vld [vmem:[%s2397 + $0x8] sm:$0xff]
    %v2400 = vld [vmem:[%s2397 + $0x10] sm:$0xff]
    %v2401 = vld [vmem:[%s2397 + $0x18] sm:$0xff]
    %v2402 = vld [vmem:[%s2397 + $0x20] sm:$0xff]
    %v2403 = vld [vmem:[%s2397 + $0x28] sm:$0xff]
    %v2404 = vld [vmem:[%s2397 + $0x30] sm:$0xff]
    %v2405 = vld [vmem:[%s2397 + $0x38] sm:$0xff]
    %v2406 = vld [vmem:[%s2397 + $0x40] sm:$0xff]
    %v2407 = vld [vmem:[%s2397 + $0x48] sm:$0xff]
    %v2408 = vld [vmem:[%s2397 + $0x50] sm:$0xff]
    %v2409 = vld [vmem:[%s2397 + $0x58] sm:$0xff]
    %v2410 = vld [vmem:[%s2397 + $0x60] sm:$0xff]
    %v2411 = vld [vmem:[%s2397 + $0x68] sm:$0xff]
    %v2412 = vld [vmem:[%s2397 + $0x70] sm:$0xff]
    %v2413 = vld [vmem:[%s2397 + $0x78] sm:$0xff]
    %s2414 = scalar_lea.vmem %s9, 2
    %v2415 = vld [vmem:[%s2414] sm:$0x3]
    %v2417 = vlaneseq
    %v2418 = vshrl.u32 %v2417, 7
    %v2419 = vsub.s32 0, %v2418
    %v2420 = vrot.slane %v2415, %v2419
    %v2421 = vlaneseq
    %v2422 = vshrl.u32 %v2421, 7
    %v2423 = vsub.s32 1, %v2422
    %v2424 = vrot.slane %v2415, %v2423
    %v2428 = vsel %vm169, %v2395, 0
    %v2431 = vsel %vm169, %v2396, 0
    %2433 = vmatprep.subr.mxu0 0.0
    %2434 = vmatpush1.msra.mxu0 0.0
    %2435 = vmatprep.subr.mxu0 0.0
    %2436 = vmatpush1.msra.mxu0 0.0
    %2437 = vmatprep.subr.mxu0 0.0
    %2438 = vmatpush1.msra.mxu0 0.0
    %2439 = vmatprep.subr.mxu0 0.0
    %2440 = vmatpush1.msra.mxu0 0.0
    %2441 = vmatprep.subr.mxu0 0.0
    %2442 = vmatpush1.msra.mxu0 0.0
    %2443 = vmatprep.subr.mxu0 0.0
    %2444 = vmatpush1.msra.mxu0 0.0
    %2445 = vmatprep.subr.mxu0 0.0
    %2446 = vmatpush1.msra.mxu0 0.0
    %2447 = vmatprep.subr.mxu0 0.0
    %2448 = vmatpush1.msra.mxu0 0.0
    %2449 = vmatprep.subr.mxu0 %v2413
    %2450 = vmatpush1.msra.mxu0 %v2412
    %2451 = vmatprep.subr.mxu0 %v2411
    %2452 = vmatpush1.msra.mxu0 %v2410
    %2453 = vmatprep.subr.mxu0 %v2409
    %2454 = vmatpush1.msra.mxu0 %v2408
    %2455 = vmatprep.subr.mxu0 %v2407
    %2456 = vmatpush1.msra.mxu0 %v2406
    %2457 = vmatprep.subr.mxu0 %v2405
    %2458 = vmatpush1.msra.mxu0 %v2404
    %2459 = vmatprep.subr.mxu0 %v2403
    %2460 = vmatpush1.msra.mxu0 %v2402
    %2461 = vmatprep.subr.mxu0 %v2401
    %2462 = vmatpush1.msra.mxu0 %v2400
    %2463 = vmatprep.subr.mxu0 %v2399
    %2464 = vmatpush1.msra.mxu0 %v2398
    %2465 = vmatprep.subr.mxu0 0.0
    %2466 = vmatpush2.msra.mxu0 0.0
    %2467 = vmatprep.subr.mxu0 0.0
    %2468 = vmatpush2.msra.mxu0 0.0
    %2469 = vmatprep.subr.mxu0 0.0
    %2470 = vmatpush2.msra.mxu0 0.0
    %2471 = vmatprep.subr.mxu0 0.0
    %2472 = vmatpush2.msra.mxu0 0.0
    %2473 = vmatprep.subr.mxu0 0.0
    %2474 = vmatpush2.msra.mxu0 0.0
    %2475 = vmatprep.subr.mxu0 0.0
    %2476 = vmatpush2.msra.mxu0 0.0
    %2477 = vmatprep.subr.mxu0 0.0
    %2478 = vmatpush2.msra.mxu0 0.0
    %2479 = vmatprep.subr.mxu0 0.0
    %2480 = vmatpush2.msra.mxu0 0.0
    %2481 = vmatprep.subr.mxu0 0.0
    %2482 = vmatpush2.msra.mxu0 0.0
    %2483 = vmatprep.subr.mxu0 0.0
    %2484 = vmatpush2.msra.mxu0 0.0
    %2485 = vmatprep.subr.mxu0 0.0
    %2486 = vmatpush2.msra.mxu0 0.0
    %2487 = vmatprep.subr.mxu0 0.0
    %2488 = vmatpush2.msra.mxu0 0.0
    %2489 = vmatprep.subr.mxu0 0.0
    %2490 = vmatpush2.msra.mxu0 0.0
    %2491 = vmatprep.subr.mxu0 0.0
    %2492 = vmatpush2.msra.mxu0 0.0
    %2493 = vmatprep.subr.mxu0 0.0
    %2494 = vmatpush2.msra.mxu0 0.0
    %2495 = vmatprep.subr.mxu0 0.0
    %2496 = vmatpush2.msra.mxu0 0.0
    %2497 = vmatprep.mubr.f32.mxu0 0.0
    %2498 = vmatmul.mubr.f32.gmra.mxu0 %v2428
    %v2499 = vpop.f32.mrf.mxu0
    %v2500 = vadd.f32 %v2420, %v2499
    %v2501 = vpop.f32.mrf.mxu0
    %v2502 = vadd.f32 %v2424, %v2501
    %2503 = vmatprep.mubr.f32.mxu0 0.0
    %2504 = vmatmul.mubr.f32.gmra.mxu0 %v2431
    %v2505 = vpop.f32.mrf.mxu0
    %v2506 = vadd.f32 %v2420, %v2505
    %v2507 = vpop.f32.mrf.mxu0
    %v2508 = vadd.f32 %v2424, %v2507
    %2509 = vdwg.mxu0
    %v2510 = vmax.f32 %v2500, 0.0
    %v2511 = vmax.f32 %v2502, 0.0
    %v2512 = vmax.f32 %v2506, 0.0
    %v2513 = vmax.f32 %v2508, 0.0
    %s2514 = scalar_lea.vmem %s10, 256
    %v2515 = vld [vmem:[%s2514] sm:$0xff]
    %v2516 = vld [vmem:[%s2514 + $0x8] sm:$0xff]
    %v2517 = vld [vmem:[%s2514 + $0x10] sm:$0xff]
    %v2518 = vld [vmem:[%s2514 + $0x18] sm:$0xff]
    %v2519 = vld [vmem:[%s2514 + $0x20] sm:$0xff]
    %v2520 = vld [vmem:[%s2514 + $0x28] sm:$0xff]
    %v2521 = vld [vmem:[%s2514 + $0x30] sm:$0xff]
    %v2522 = vld [vmem:[%s2514 + $0x38] sm:$0xff]
    %v2523 = vld [vmem:[%s2514 + $0x40] sm:$0xff]
    %v2524 = vld [vmem:[%s2514 + $0x48] sm:$0xff]
    %v2525 = vld [vmem:[%s2514 + $0x50] sm:$0xff]
    %v2526 = vld [vmem:[%s2514 + $0x58] sm:$0xff]
    %v2527 = vld [vmem:[%s2514 + $0x60] sm:$0xff]
    %v2528 = vld [vmem:[%s2514 + $0x68] sm:$0xff]
    %v2529 = vld [vmem:[%s2514 + $0x70] sm:$0xff]
    %v2530 = vld [vmem:[%s2514 + $0x78] sm:$0xff]
    %v2531 = vld [vmem:[%s2514 + $0x80] sm:$0xff]
    %v2532 = vld [vmem:[%s2514 + $0x88] sm:$0xff]
    %v2533 = vld [vmem:[%s2514 + $0x90] sm:$0xff]
    %v2534 = vld [vmem:[%s2514 + $0x98] sm:$0xff]
    %v2535 = vld [vmem:[%s2514 + $0xa0] sm:$0xff]
    %v2536 = vld [vmem:[%s2514 + $0xa8] sm:$0xff]
    %v2537 = vld [vmem:[%s2514 + $0xb0] sm:$0xff]
    %v2538 = vld [vmem:[%s2514 + $0xb8] sm:$0xff]
    %v2539 = vld [vmem:[%s2514 + $0xc0] sm:$0xff]
    %v2540 = vld [vmem:[%s2514 + $0xc8] sm:$0xff]
    %v2541 = vld [vmem:[%s2514 + $0xd0] sm:$0xff]
    %v2542 = vld [vmem:[%s2514 + $0xd8] sm:$0xff]
    %v2543 = vld [vmem:[%s2514 + $0xe0] sm:$0xff]
    %v2544 = vld [vmem:[%s2514 + $0xe8] sm:$0xff]
    %v2545 = vld [vmem:[%s2514 + $0xf0] sm:$0xff]
    %v2546 = vld [vmem:[%s2514 + $0xf8] sm:$0xff]
    %s2547 = scalar_lea.vmem %s11, 1
    %v2548 = vld [vmem:[%s2547] sm:$0x1]
    %v2550 = vlaneseq
    %v2551 = vshrl.u32 %v2550, 7
    %v2552 = vsub.s32 0, %v2551
    %v2553 = vrot.slane %v2548, %v2552
    %2555 = vmatprep.subr.mxu0 0.0
    %2556 = vmatpush1.msra.mxu0 %v2530
    %2557 = vmatprep.subr.mxu0 0.0
    %2558 = vmatpush1.msra.mxu0 %v2529
    %2559 = vmatprep.subr.mxu0 0.0
    %2560 = vmatpush1.msra.mxu0 %v2528
    %2561 = vmatprep.subr.mxu0 0.0
    %2562 = vmatpush1.msra.mxu0 %v2527
    %2563 = vmatprep.subr.mxu0 0.0
    %2564 = vmatpush1.msra.mxu0 %v2526
    %2565 = vmatprep.subr.mxu0 0.0
    %2566 = vmatpush1.msra.mxu0 %v2525
    %2567 = vmatprep.subr.mxu0 0.0
    %2568 = vmatpush1.msra.mxu0 %v2524
    %2569 = vmatprep.subr.mxu0 0.0
    %2570 = vmatpush1.msra.mxu0 %v2523
    %2571 = vmatprep.subr.mxu0 0.0
    %2572 = vmatpush1.msra.mxu0 %v2522
    %2573 = vmatprep.subr.mxu0 0.0
    %2574 = vmatpush1.msra.mxu0 %v2521
    %2575 = vmatprep.subr.mxu0 0.0
    %2576 = vmatpush1.msra.mxu0 %v2520
    %2577 = vmatprep.subr.mxu0 0.0
    %2578 = vmatpush1.msra.mxu0 %v2519
    %2579 = vmatprep.subr.mxu0 0.0
    %2580 = vmatpush1.msra.mxu0 %v2518
    %2581 = vmatprep.subr.mxu0 0.0
    %2582 = vmatpush1.msra.mxu0 %v2517
    %2583 = vmatprep.subr.mxu0 0.0
    %2584 = vmatpush1.msra.mxu0 %v2516
    %2585 = vmatprep.subr.mxu0 0.0
    %2586 = vmatpush1.msra.mxu0 %v2515
    %2587 = vmatprep.subr.mxu0 0.0
    %2588 = vmatpush2.msra.mxu0 %v2546
    %2589 = vmatprep.subr.mxu0 0.0
    %2590 = vmatpush2.msra.mxu0 %v2545
    %2591 = vmatprep.subr.mxu0 0.0
    %2592 = vmatpush2.msra.mxu0 %v2544
    %2593 = vmatprep.subr.mxu0 0.0
    %2594 = vmatpush2.msra.mxu0 %v2543
    %2595 = vmatprep.subr.mxu0 0.0
    %2596 = vmatpush2.msra.mxu0 %v2542
    %2597 = vmatprep.subr.mxu0 0.0
    %2598 = vmatpush2.msra.mxu0 %v2541
    %2599 = vmatprep.subr.mxu0 0.0
    %2600 = vmatpush2.msra.mxu0 %v2540
    %2601 = vmatprep.subr.mxu0 0.0
    %2602 = vmatpush2.msra.mxu0 %v2539
    %2603 = vmatprep.subr.mxu0 0.0
    %2604 = vmatpush2.msra.mxu0 %v2538
    %2605 = vmatprep.subr.mxu0 0.0
    %2606 = vmatpush2.msra.mxu0 %v2537
    %2607 = vmatprep.subr.mxu0 0.0
    %2608 = vmatpush2.msra.mxu0 %v2536
    %2609 = vmatprep.subr.mxu0 0.0
    %2610 = vmatpush2.msra.mxu0 %v2535
    %2611 = vmatprep.subr.mxu0 0.0
    %2612 = vmatpush2.msra.mxu0 %v2534
    %2613 = vmatprep.subr.mxu0 0.0
    %2614 = vmatpush2.msra.mxu0 %v2533
    %2615 = vmatprep.subr.mxu0 0.0
    %2616 = vmatpush2.msra.mxu0 %v2532
    %2617 = vmatprep.subr.mxu0 0.0
    %2618 = vmatpush2.msra.mxu0 %v2531
    %2619 = vmatprep.mubr.f32.mxu0 %v2511
    %2620 = vmatmul.mubr.f32.gmra.mxu0 %v2510
    %v2621 = vpop.f32.mrf.mxu0
    %v2622 = vadd.f32 %v2553, %v2621
    %v2623 = vpop.f32.mrf.mxu0
    %2624 = vmatprep.mubr.f32.mxu0 %v2513
    %2625 = vmatmul.mubr.f32.gmra.mxu0 %v2512
    %v2626 = vpop.f32.mrf.mxu0
    %v2627 = vadd.f32 %v2553, %v2626
    %v2628 = vpop.f32.mrf.mxu0
    %2629 = vdwg.mxu0
    %v2630 = vadd.f32 %v2395, %v2622
    %v2631 = vadd.f32 %v2396, %v2627
    %v2632 = vsel %vm169, %v2630, 0.0
    %2633 = vadd.xlane.f32.xlu0 %v2632
    %v2634 = vpop.xlane.xlu0 %2633
    %v2635 = vsel %vm169, %v2631, 0.0
    %2636 = vadd.xlane.f32.xlu0 %v2635
    %v2637 = vpop.xlane.xlu0 %2636
    %v2638 = vmul.f32 %v2634, %v1101
    %v2639 = vmul.f32 %v2637, %v1101
    %v2640 = vsub.f32 %v2630, %v2638
    %v2641 = vsub.f32 %v2631, %v2639
    %v2642 = vmul.f32 %v2640, %v2640
    %v2643 = vmul.f32 %v2641, %v2641
    %v2644 = vsel %vm169, %v2642, 0.0
    %2645 = vadd.xlane.f32.xlu0 %v2644
    %v2646 = vpop.xlane.xlu0 %2645
    %v2647 = vsel %vm169, %v2643, 0.0
    %2648 = vadd.xlane.f32.xlu0 %v2647
    %v2649 = vpop.xlane.xlu0 %2648
    %v2650 = vmul.f32 %v2646, %v1101
    %v2651 = vmul.f32 %v2649, %v1101
    %v2652 = vadd.f32 %v2650, 1e-05
    %v2653 = vadd.f32 %v2651, 1e-05
    %v2654 = vrsqrt.pop %v2652
    %v2655 = vrsqrt.pop %v2653
    %v2656 = vmul.f32 %v2640, %v2654
    %v2657 = vmul.f32 %v2641, %v2655
    %v2658 = vlaneseq
    %v2659 = vshrl.u32 %v2658, 7
    %v2660 = vsub.s32 2, %v2659
    %v2661 = vrot.slane %v2356, %v2660
    %v2662 = vmul.f32 %v2656, %v2661
    %v2663 = vmul.f32 %v2657, %v2661
    %v2664 = vlaneseq
    %v2665 = vshrl.u32 %v2664, 7
    %v2666 = vsub.s32 3, %v2665
    %v2667 = vrot.slane %v2356, %v2666
    %v2668 = vadd.f32 %v2662, %v2667
    %v2669 = vadd.f32 %v2663, %v2667
    %v2672 = vrot.slane %v2669, 7
    %vm2675 = vcmask 523271
    %2676 = vst.msk [vmem:[#allocation2 - $0x7] sm:$0x80] %vm2675, %v2668
    %vm2677 = vcmask 516096
    %2678 = vst.msk [vmem:[#allocation2 + $0x1] sm:$0x1] %vm2677, %v2672
    // Predicated region
    $region54: #{transformer_forward.1} parent=1 // pred_check
      _
    $region55: #{transformer_forward.1} parent=1 // pred_check_branch
      %2680 = sbr.rel (0) target = $region57
    $region56: #{transformer_forward.1} parent=1 // pred_region
      %s2682 = ssub.s32 32, 32
      %2683 = vsyncadd [#allocation3], %s2682
      %s2685 = sshll.u32 [#allocation2], 4
      %s2686 = int_to_ptr.vmem [resolvable:$true] %s2685
      %2688 = dma.vmem_to_hbm [thread:$0]  %s2686, 32, %s13, [#allocation3]
    $region57: #{transformer_forward.1} parent=1 // pred_fallthru
      _
    // Predicated region
    $region58: #{transformer_forward.1} parent=1 // pred_check
      _
    $region59: #{transformer_forward.1} parent=1 // pred_check_branch
      %2690 = sbr.rel (0) target = $region61
    $region60: #{transformer_forward.1} parent=1 // pred_region
      %2691 = dma.done [#allocation3], 32
    $region61: #{transformer_forward.1} parent=1 // pred_fallthru
      _
    %2692 = vsyncpa [#allocation3], 1

</llo_original>
